<compile_context>
chip_gen: v7x
topology: tpu7x:2x2x1
jax: 0.10.0
libtpu: 0.0.40
codegen_flags: <defaults>
</compile_context>

<pallas_src>
import math
from functools import partial

import jax
import jax.numpy as jnp
from jax.experimental import pallas as pl
from jax.experimental.pallas import tpu as pltpu

# ---- config (small, deterministic, consistent with the module defaults) ----
NPI_CORE_DIM = 256      # npi_core_dim
NPI_CORE_LAYERS = 2     # npi_core_layers
STATE_DIM = 32          # core.state_dim
PRO_DIM = 16            # core.pro_dim
ENV_DIM = 16
ARG_NUM = 2             # config['ARG_NUM']
ARG_DEPTH = 8           # config['ARG_DEPTH']
PRO_NUM = 8             # config['PRO_NUM']
PRO_KEY_DIM = 8         # config['PRO_KEY_DIM']

IN_PAD = 128            # lane-padded LSTM layer-0 input width (state_dim + pro_dim = 48 -> 128)
SLAB_DIM = 128          # packed head-output slab width (pro 8 | args 16 | ter 2 | pad)


# ----------------------------------------------------------------------------
# Kernel: one grid step == one NPI.forward() timestep
# ----------------------------------------------------------------------------
def _npi_kernel(x_ref, h0_ref, c0_ref,
                wih0_ref, whh0_ref, bl0_ref,
                wih1_ref, whh1_ref, bl1_ref,
                wh1_ref, bh1_ref, wh2_ref, bh2_ref,
                slab_ref, hn_ref, cn_ref,
                h_sc, c_sc):
    H = NPI_CORE_DIM
    t = pl.program_id(0)

    # Load initial state into the VMEM carry on the first step only.
    @pl.when(t == 0)
    def _():
        h_sc[...] = h0_ref[...]
        c_sc[...] = c0_ref[...]

    def lstm_cell(inp_bf16, layer, wih_ref, whh_ref, b_ref):
        h_prev = h_sc[layer]                                    # (b, H) f32
        c_prev = c_sc[layer]
        # Two MXU dots (no lane-axis concat), f32 accumulation; bias pre-summed on host.
        gates = (jnp.dot(inp_bf16, wih_ref[...], preferred_element_type=jnp.float32)
                 + jnp.dot(h_prev.astype(jnp.bfloat16), whh_ref[...],
                           preferred_element_type=jnp.float32)
                 + b_ref[...])                                  # (b, 4H) f32
        # PyTorch LSTM gate order: i, f, g, o (slices at 256-lane boundaries).
        i = jax.nn.sigmoid(gates[:, 0 * H:1 * H])
        f = jax.nn.sigmoid(gates[:, 1 * H:2 * H])
        g = jnp.tanh(gates[:, 2 * H:3 * H])
        o = jax.nn.sigmoid(gates[:, 3 * H:4 * H])
        c = f * c_prev + i * g
        h = o * jnp.tanh(c)
        h_sc[layer] = h
        c_sc[layer] = c
        return h

    h_l0 = lstm_cell(x_ref[...], 0, wih0_ref, whh0_ref, bl0_ref)        # x already bf16
    h_l1 = lstm_cell(h_l0.astype(jnp.bfloat16), 1, wih1_ref, whh1_ref, bl1_ref)

    # Heads fused: one (b,256)@(256,256) matmul + ReLU, then one block-diagonal
    # (b,256)@(256,128) matmul producing the packed lane-dense output slab.
    lstm_out = h_l1.astype(jnp.bfloat16)                        # lstm_out[-1] (seq_len == 1)
    hidden = jnp.maximum(
        jnp.dot(lstm_out, wh1_ref[...], preferred_element_type=jnp.float32) + bh1_ref[...],
        0.0)
    slab_ref[...] = (jnp.dot(hidden.astype(jnp.bfloat16), wh2_ref[...],
                             preferred_element_type=jnp.float32) + bh2_ref[...])

    # Write final state to HBM only once, on the last step.
    @pl.when(t == pl.num_programs(0) - 1)
    def _():
        hn_ref[...] = h_sc[...]
        cn_ref[...] = c_sc[...]


# ----------------------------------------------------------------------------
# Wrapper: runs T recurrent steps in one pallas_call.
#   x_seq  : (T, b_pad, IN_PAD) bf16   (zero-padded merged LSTM input per step)
#   h0/c0  : (L, b_pad, H) f32 padded state (kept padded across calls; donated)
# Returns padded (slab_seq, hn_pad, cn_pad); the caller slices the valid rows.
# ----------------------------------------------------------------------------
@partial(jax.jit, donate_argnums=(1, 2))
def npi_forward_seq(x_seq, h0_pad, c0_pad, kernel_params):
    T, b_pad, _ = x_seq.shape
    L, H = NPI_CORE_LAYERS, NPI_CORE_DIM

    state_spec = pl.BlockSpec((L, b_pad, H), lambda t: (0, 0, 0))
    param_specs = [pl.BlockSpec(p.shape, lambda t: (0, 0)) for p in kernel_params]

    in_specs = [pl.BlockSpec((None, b_pad, IN_PAD), lambda t: (t, 0, 0)),   # x_seq (per step)
                state_spec,                                                 # h0 (read @ t==0)
                state_spec] + param_specs                                   # c0 + weights

    out_specs = (pl.BlockSpec((None, b_pad, SLAB_DIM), lambda t: (t, 0, 0)),  # packed heads
                 state_spec,                                                  # hn (write @ last)
                 state_spec)                                                  # cn

    out_shapes = (jax.ShapeDtypeStruct((T, b_pad, SLAB_DIM), jnp.float32),
                  jax.ShapeDtypeStruct((L, b_pad, H), jnp.float32),
                  jax.ShapeDtypeStruct((L, b_pad, H), jnp.float32))

    slab_seq, hn, cn = pl.pallas_call(
        _npi_kernel,
        grid=(T,),
        in_specs=in_specs,
        out_specs=out_specs,
        out_shape=out_shapes,
        scratch_shapes=[pltpu.VMEM((L, b_pad, H), jnp.float32),   # h carry
                        pltpu.VMEM((L, b_pad, H), jnp.float32)],  # c carry
        input_output_aliases={1: 1, 2: 2},                        # h0 -> hn, c0 -> cn in place
        compiler_params=pltpu.CompilerParams(dimension_semantics=("arbitrary",)),
    )(x_seq, h0_pad, c0_pad, *kernel_params)
    return slab_seq, hn, cn


# ----------------------------------------------------------------------------
# Parameter init (PyTorch-equivalent raw params) + host-side packing/fusion
# ----------------------------------------------------------------------------
def _uniform(key, shape, bound):
    return jax.random.uniform(key, shape, jnp.float32, -bound, bound)


def init_params(key):
    H = NPI_CORE_DIM
    in_dim = STATE_DIM + PRO_DIM
    keys = jax.random.split(key, 32)
    it = iter(keys)

    k_lstm = 1.0 / math.sqrt(H)
    wih0T = _uniform(next(it), (in_dim, 4 * H), k_lstm)
    whh0T = _uniform(next(it), (H, 4 * H), k_lstm)
    bih0 = _uniform(next(it), (1, 4 * H), k_lstm)
    bhh0 = _uniform(next(it), (1, 4 * H), k_lstm)
    wih1T = _uniform(next(it), (H, 4 * H), k_lstm)
    whh1T = _uniform(next(it), (H, 4 * H), k_lstm)
    bih1 = _uniform(next(it), (1, 4 * H), k_lstm)
    bhh1 = _uniform(next(it), (1, 4 * H), k_lstm)

    terw1T = _uniform(next(it), (H, H // 2), 1.0 / math.sqrt(H))
    terb1 = _uniform(next(it), (1, H // 2), 1.0 / math.sqrt(H))
    terw2T = _uniform(next(it), (H // 2, 2), 1.0 / math.sqrt(H // 2))
    terb2 = _uniform(next(it), (1, 2), 1.0 / math.sqrt(H // 2))

    prow1T = _uniform(next(it), (H, PRO_KEY_DIM), 1.0 / math.sqrt(H))
    prob1 = _uniform(next(it), (1, PRO_KEY_DIM), 1.0 / math.sqrt(H))
    prow2T = _uniform(next(it), (PRO_KEY_DIM, PRO_KEY_DIM), 1.0 / math.sqrt(PRO_KEY_DIM))
    prob2 = _uniform(next(it), (1, PRO_KEY_DIM), 1.0 / math.sqrt(PRO_KEY_DIM))

    argw1T = _uniform(next(it), (ARG_NUM, H, ARG_DEPTH), 1.0 / math.sqrt(H))
    argb1 = _uniform(next(it), (ARG_NUM, 1, ARG_DEPTH), 1.0 / math.sqrt(H))
    argw2T = _uniform(next(it), (ARG_NUM, ARG_DEPTH, ARG_DEPTH), 1.0 / math.sqrt(ARG_DEPTH))
    argb2 = _uniform(next(it), (ARG_NUM, 1, ARG_DEPTH), 1.0 / math.sqrt(ARG_DEPTH))

    # core.pro_key (num_progs, key_dim)
    pro_key = jax.random.normal(next(it), (PRO_NUM, PRO_KEY_DIM), jnp.float32)

    raw = (wih0T, whh0T, bih0, bhh0, wih1T, whh1T, bih1, bhh1,
           terw1T, terb1, terw2T, terb2,
           prow1T, prob1, prow2T, prob2,
           argw1T, argb1, argw2T, argb2)

    # synthetic core (external dependency of NPI): plain-JAX glue
    # TODO(synk): real MazeCore is not available; synthesized deterministically.
    core_w = _uniform(next(it), (ENV_DIM + ARG_NUM * ARG_DEPTH, STATE_DIM), 0.1)
    core_b = _uniform(next(it), (STATE_DIM,), 0.1)
    pro_embed = jax.random.normal(next(it), (PRO_NUM, PRO_DIM), jnp.float32)
    core_params = (core_w, core_b, pro_embed)
    return raw, pro_key, core_params


def pack_params(raw, pro_key):
    """Host-side fusion/padding/bf16-cast of the raw PyTorch-style parameters."""
    (wih0T, whh0T, bih0, bhh0, wih1T, whh1T, bih1, bhh1,
     terw1T, terb1, terw2T, terb2,
     prow1T, prob1, prow2T, prob2,
     argw1T, argb1, argw2T, argb2) = raw

    H = NPI_CORE_DIM
    HH = H // 2
    KD = PRO_KEY_DIM
    AD = ARG_DEPTH
    in_dim = wih0T.shape[0]
    assert in_dim <= IN_PAD
    assert HH + KD + ARG_NUM * AD <= H
    assert PRO_NUM + ARG_NUM * AD + 2 <= SLAB_DIM

    # ---- LSTM: separate Wih / Whh operands (no in-kernel concat), biases pre-summed,
    #      layer-0 input rows zero-padded to 128 lanes ----
    wih0_pad = jnp.zeros((IN_PAD, 4 * H), jnp.float32).at[:in_dim].set(wih0T)   # (128, 1024)
    b_l0 = bih0 + bhh0                                                          # (1, 1024)
    b_l1 = bih1 + bhh1

    # ---- Heads layer 1: concat ter|pro|arg0|arg1 weights, pad cols to 256 ----
    w_h1 = jnp.zeros((H, H), jnp.float32)
    b_h1 = jnp.zeros((1, H), jnp.float32)
    w_h1 = w_h1.at[:, 0:HH].set(terw1T)
    b_h1 = b_h1.at[:, 0:HH].set(terb1)
    w_h1 = w_h1.at[:, HH:HH + KD].set(prow1T)
    b_h1 = b_h1.at[:, HH:HH + KD].set(prob1)
    for i in range(ARG_NUM):
        c = HH + KD + i * AD
        w_h1 = w_h1.at[:, c:c + AD].set(argw1T[i])
        b_h1 = b_h1.at[:, c:c + AD].set(argb1[i])

    # ---- Heads layer 2: block-diagonal into one (256, 128) matrix; output cols:
    #      [0:8]=pro_dist, [8:24]=args, [24:26]=ter, rest zero-pad.
    #      pro branch pre-multiplied by pro_key^T (no nonlinearity in between). ----
    w_h2 = jnp.zeros((H, SLAB_DIM), jnp.float32)
    b_h2 = jnp.zeros((1, SLAB_DIM), jnp.float32)
    pro_w = prow2T @ pro_key.T                                  # (KD, PRO_NUM)
    pro_b = prob2 @ pro_key.T                                   # (1, PRO_NUM)
    w_h2 = w_h2.at[HH:HH + KD, 0:PRO_NUM].set(pro_w)
    b_h2 = b_h2.at[:, 0:PRO_NUM].set(pro_b)
    for i in range(ARG_NUM):
        r0 = HH + KD + i * AD
        c0 = PRO_NUM + i * AD
        w_h2 = w_h2.at[r0:r0 + AD, c0:c0 + AD].set(argw2T[i])
        b_h2 = b_h2.at[:, c0:c0 + AD].set(argb2[i])
    tc0 = PRO_NUM + ARG_NUM * AD
    w_h2 = w_h2.at[0:HH, tc0:tc0 + 2].set(terw2T)
    b_h2 = b_h2.at[:, tc0:tc0 + 2].set(terb2)

    bf16 = jnp.bfloat16
    return (wih0_pad.astype(bf16), whh0T.astype(bf16), b_l0,
            wih1T.astype(bf16), whh1T.astype(bf16), b_l1,
            w_h1.astype(bf16), b_h1, w_h2.astype(bf16), b_h2)


# ----------------------------------------------------------------------------
# Synthetic core + pure-JAX reference (validates the fusion/packing math)
# ----------------------------------------------------------------------------
def synthetic_core(env_in, arg_in, prg_in, core_params):
    core_w, core_b, pro_embed = core_params
    static_ft = jnp.tanh(jnp.concatenate([env_in, arg_in], axis=1) @ core_w + core_b)
    pro_id_embed = pro_embed[prg_in]
    return static_ft, pro_id_embed


def npi_reference_step(x, h0, c0, raw, pro_key):
    (wih0T, whh0T, bih0, bhh0, wih1T, whh1T, bih1, bhh1,
     terw1T, terb1, terw2T, terb2,
     prow1T, prob1, prow2T, prob2,
     argw1T, argb1, argw2T, argb2) = raw
    H = NPI_CORE_DIM

    def cell(inp, h, c, wih, whh, bih, bhh):
        g = inp @ wih + h @ whh + bih + bhh
        i = jax.nn.sigmoid(g[:, :H]); f = jax.nn.sigmoid(g[:, H:2 * H])
        gg = jnp.tanh(g[:, 2 * H:3 * H]); o = jax.nn.sigmoid(g[:, 3 * H:])
        c = f * c + i * gg
        h = o * jnp.tanh(c)
        return h, c

    h_l0, c_l0 = cell(x, h0[0], c0[0], wih0T, whh0T, bih0, bhh0)
    h_l1, c_l1 = cell(h_l0, h0[1], c0[1], wih1T, whh1T, bih1, bhh1)
    out = h_l1
    ter = jnp.maximum(out @ terw1T + terb1, 0.0) @ terw2T + terb2
    key = jnp.maximum(out @ prow1T + prob1, 0.0) @ prow2T + prob2
    pro_dist = key @ pro_key.T
    args = jnp.concatenate(
        [jnp.maximum(out @ argw1T[i] + argb1[i], 0.0) @ argw2T[i] + argb2[i]
         for i in range(ARG_NUM)], axis=1)
    return pro_dist, args, ter, jnp.stack([h_l0, h_l1]), jnp.stack([c_l0, c_l1])


if __name__ == "__main__":
    key = jax.random.PRNGKey(0)
    k_params, k_seq = jax.random.split(key)
    raw_params, pro_key, core_params = init_params(k_params)
    kernel_params = pack_params(raw_params, pro_key)

    b, T = 2, 6
    b_pad = ((b + 15) // 16) * 16                               # bf16 sublane tile (16)
    in_dim = STATE_DIM + PRO_DIM
    L, H = NPI_CORE_LAYERS, NPI_CORE_DIM

    # Per-step (env_in, arg_in, prg_in) -> merged LSTM input via the synthetic core.
    step_keys = jax.random.split(k_seq, 3 * T)
    xs = []
    for t in range(T):
        ke, ka, kp = step_keys[3 * t], step_keys[3 * t + 1], step_keys[3 * t + 2]
        env_in = jax.random.normal(ke, (b, ENV_DIM), jnp.float32)
        arg_in = jax.random.normal(ka, (b, ARG_NUM * ARG_DEPTH), jnp.float32)
        prg_in = jax.random.randint(kp, (b,), 0, PRO_NUM)
        static_ft, pro_id_embed = synthetic_core(env_in, arg_in, prg_in, core_params)
        xs.append(jnp.concatenate([static_ft, pro_id_embed], axis=1))   # (b, 48)
    x_steps = jnp.stack(xs)                                              # (T, b, 48)

    # Lane/sublane-padded, bf16-cast input sequence for the kernel.
    x_seq = (jnp.zeros((T, b_pad, IN_PAD), jnp.float32)
             .at[:, :b, :in_dim].set(x_steps).astype(jnp.bfloat16))

    # reset_state(batch_size) — state is kept padded across calls (pad rows are never read).
    h0_pad = jnp.zeros((L, b_pad, H), jnp.float32)
    c0_pad = jnp.zeros((L, b_pad, H), jnp.float32)

    slab_seq, hn_pad, cn_pad = npi_forward_seq(x_seq, h0_pad, c0_pad, kernel_params)
    jax.block_until_ready((slab_seq, hn_pad, cn_pad))

    a0 = PRO_NUM
    a1 = PRO_NUM + ARG_NUM * ARG_DEPTH
    pro_seq = slab_seq[:, :b, 0:a0]
    args_seq = slab_seq[:, :b, a0:a1]
    ter_seq = slab_seq[:, :b, a1:a1 + 2]

    assert pro_seq.shape == (T, b, PRO_NUM)
    assert args_seq.shape == (T, b, ARG_NUM * ARG_DEPTH)
    assert ter_seq.shape == (T, b, 2)
    assert hn_pad.shape == (L, b_pad, H)
    assert cn_pad.shape == (L, b_pad, H)

    # Correctness vs the unfused f32 per-step reference (bf16 weights -> loose tolerance;
    # accepted numeric drift grows slightly over T recurrent steps).
    h_ref = jnp.zeros((L, b, H), jnp.float32)
    c_ref = jnp.zeros((L, b, H), jnp.float32)
    for t in range(T):
        pro_r, args_r, ter_r, h_ref, c_ref = npi_reference_step(
            x_steps[t], h_ref, c_ref, raw_params, pro_key)
        for got, want in ((pro_seq[t], pro_r), (args_seq[t], args_r), (ter_seq[t], ter_r)):
            assert got.shape == want.shape
            err = float(jnp.max(jnp.abs(got - want)))
            assert jnp.allclose(got, want, atol=5e-2, rtol=5e-2), (t, err)
    for got, want in ((hn_pad[:, :b], h_ref), (cn_pad[:, :b], c_ref)):
        err = float(jnp.max(jnp.abs(got - want)))
        assert jnp.allclose(got, want, atol=5e-2, rtol=5e-2), err

    print("KERNEL_OK")
</pallas_src>

<mosaic_0001>
module attributes {stable_mosaic.version = 11 : i64} {
  func.func @_npi_kernel(%arg0: i32, %arg1: memref<1x16x128xbf16, #tpu.memory_space<vmem>>, %arg2: memref<2x16x256xf32, #tpu.memory_space<vmem>>, %arg3: memref<2x16x256xf32, #tpu.memory_space<vmem>>, %arg4: memref<128x1024xbf16, #tpu.memory_space<vmem>>, %arg5: memref<256x1024xbf16, #tpu.memory_space<vmem>>, %arg6: memref<1x1024xf32, #tpu.memory_space<vmem>>, %arg7: memref<256x1024xbf16, #tpu.memory_space<vmem>>, %arg8: memref<256x1024xbf16, #tpu.memory_space<vmem>>, %arg9: memref<1x1024xf32, #tpu.memory_space<vmem>>, %arg10: memref<256x256xbf16, #tpu.memory_space<vmem>>, %arg11: memref<1x256xf32, #tpu.memory_space<vmem>>, %arg12: memref<256x128xbf16, #tpu.memory_space<vmem>>, %arg13: memref<1x128xf32, #tpu.memory_space<vmem>>, %arg14: memref<1x16x128xf32, #tpu.memory_space<vmem>>, %arg15: memref<2x16x256xf32, #tpu.memory_space<vmem>>, %arg16: memref<2x16x256xf32, #tpu.memory_space<vmem>>, %arg17: memref<2x16x256xf32, #tpu.memory_space<vmem>>, %arg18: memref<2x16x256xf32, #tpu.memory_space<vmem>>) attributes {dimension_semantics = [#tpu.dimension_semantics<arbitrary>], iteration_bounds = array<i64: 6>, scalar_prefetch = 0 : i64, scratch_operands = 2 : i64, tpu.core_type = #tpu.core_type<tc>, window_params = [{transform_indices = @transform_0, window_bounds = array<i64: 1, 16, 128>}, {pipeline_mode = #tpu.pipeline_mode<synchronous>, transform_indices = @transform_1, window_bounds = array<i64: 2, 16, 256>}, {pipeline_mode = #tpu.pipeline_mode<synchronous>, transform_indices = @transform_2, window_bounds = array<i64: 2, 16, 256>}, {pipeline_mode = #tpu.pipeline_mode<synchronous>, transform_indices = @transform_3, window_bounds = array<i64: 128, 1024>}, {pipeline_mode = #tpu.pipeline_mode<synchronous>, transform_indices = @transform_4, window_bounds = array<i64: 256, 1024>}, {pipeline_mode = #tpu.pipeline_mode<synchronous>, transform_indices = @transform_5, window_bounds = array<i64: 1, 1024>}, {pipeline_mode = #tpu.pipeline_mode<synchronous>, transform_indices = @transform_6, window_bounds = array<i64: 256, 1024>}, {pipeline_mode = #tpu.pipeline_mode<synchronous>, transform_indices = @transform_7, window_bounds = array<i64: 256, 1024>}, {pipeline_mode = #tpu.pipeline_mode<synchronous>, transform_indices = @transform_8, window_bounds = array<i64: 1, 1024>}, {pipeline_mode = #tpu.pipeline_mode<synchronous>, transform_indices = @transform_9, window_bounds = array<i64: 256, 256>}, {pipeline_mode = #tpu.pipeline_mode<synchronous>, transform_indices = @transform_10, window_bounds = array<i64: 1, 256>}, {pipeline_mode = #tpu.pipeline_mode<synchronous>, transform_indices = @transform_11, window_bounds = array<i64: 256, 128>}, {pipeline_mode = #tpu.pipeline_mode<synchronous>, transform_indices = @transform_12, window_bounds = array<i64: 1, 128>}, {transform_indices = @transform_13, window_bounds = array<i64: 1, 16, 128>}, {pipeline_mode = #tpu.pipeline_mode<synchronous>, transform_indices = @transform_14, window_bounds = array<i64: 2, 16, 256>}, {pipeline_mode = #tpu.pipeline_mode<synchronous>, transform_indices = @transform_15, window_bounds = array<i64: 2, 16, 256>}]} {
    %c0_i32 = arith.constant 0 : i32
    %0 = arith.cmpi eq, %arg0, %c0_i32 : i32
    %1 = arith.extui %0 : i1 to i32
    %c0_i32_0 = arith.constant 0 : i32
    %2 = arith.cmpi ne, %1, %c0_i32_0 : i32
    scf.if %2 {
      %c0_62 = arith.constant 0 : index
      %c0_63 = arith.constant 0 : index
      %c0_64 = arith.constant 0 : index
      %114 = vector.load %arg2[%c0_62, %c0_63, %c0_64] : memref<2x16x256xf32, #tpu.memory_space<vmem>>, vector<2x16x256xf32>
      %c0_65 = arith.constant 0 : index
      %c0_66 = arith.constant 0 : index
      %c0_67 = arith.constant 0 : index
      %115 = vector.load %arg17[%c0_65, %c0_66, %c0_67] : memref<2x16x256xf32, #tpu.memory_space<vmem>>, vector<2x16x256xf32>
      tpu.vector_store %arg17[%c0_65, %c0_66, %c0_67], %114 {strides = array<i32>} : memref<2x16x256xf32, #tpu.memory_space<vmem>>, vector<2x16x256xf32>,
      %c0_68 = arith.constant 0 : index
      %c0_69 = arith.constant 0 : index
      %c0_70 = arith.constant 0 : index
      %116 = vector.load %arg3[%c0_68, %c0_69, %c0_70] : memref<2x16x256xf32, #tpu.memory_space<vmem>>, vector<2x16x256xf32>
      %c0_71 = arith.constant 0 : index
      %c0_72 = arith.constant 0 : index
      %c0_73 = arith.constant 0 : index
      %117 = vector.load %arg18[%c0_71, %c0_72, %c0_73] : memref<2x16x256xf32, #tpu.memory_space<vmem>>, vector<2x16x256xf32>
      tpu.vector_store %arg18[%c0_71, %c0_72, %c0_73], %116 {strides = array<i32>} : memref<2x16x256xf32, #tpu.memory_space<vmem>>, vector<2x16x256xf32>,
    } else {
    }
    %c0 = arith.constant 0 : index
    %c0_1 = arith.constant 0 : index
    %c0_2 = arith.constant 0 : index
    %3 = vector.load %arg1[%c0, %c0_1, %c0_2] : memref<1x16x128xbf16, #tpu.memory_space<vmem>>, vector<1x16x128xbf16>
    %4 = vector.shape_cast %3 : vector<1x16x128xbf16> to vector<16x128xbf16>
    %c0_3 = arith.constant 0 : index
    %c0_4 = arith.constant 0 : index
    %c0_5 = arith.constant 0 : index
    %5 = vector.load %arg17[%c0_3, %c0_4, %c0_5] : memref<2x16x256xf32, #tpu.memory_space<vmem>>, vector<1x16x256xf32>
    %6 = vector.shape_cast %5 : vector<1x16x256xf32> to vector<16x256xf32>
    %c0_6 = arith.constant 0 : index
    %c0_7 = arith.constant 0 : index
    %c0_8 = arith.constant 0 : index
    %7 = vector.load %arg18[%c0_6, %c0_7, %c0_8] : memref<2x16x256xf32, #tpu.memory_space<vmem>>, vector<1x16x256xf32>
    %8 = vector.shape_cast %7 : vector<1x16x256xf32> to vector<16x256xf32>
    %c0_9 = arith.constant 0 : index
    %c0_10 = arith.constant 0 : index
    %9 = vector.load %arg4[%c0_9, %c0_10] : memref<128x1024xbf16, #tpu.memory_space<vmem>>, vector<128x1024xbf16>
    %cst = arith.constant dense<0.000000e+00> : vector<16x1024xf32>
    %10 = tpu.matmul %4, %9, %cst {dimension_numbers = #tpu.dot_dimension_numbers<[1], [0], [0], [1], [0, 0, 1, 1], [], []>} : vector<16x128xbf16>, vector<128x1024xbf16>, vector<16x1024xf32> -> vector<16x1024xf32>
    %11 = arith.truncf %6 : vector<16x256xf32> to vector<16x256xbf16>
    %c0_11 = arith.constant 0 : index
    %c0_12 = arith.constant 0 : index
    %12 = vector.load %arg5[%c0_11, %c0_12] : memref<256x1024xbf16, #tpu.memory_space<vmem>>, vector<256x1024xbf16>
    %cst_13 = arith.constant dense<0.000000e+00> : vector<16x1024xf32>
    %13 = tpu.matmul %11, %12, %cst_13 {dimension_numbers = #tpu.dot_dimension_numbers<[1], [0], [0], [1], [0, 0, 1, 1], [], []>} : vector<16x256xbf16>, vector<256x1024xbf16>, vector<16x1024xf32> -> vector<16x1024xf32>
    %14 = arith.addf %10, %13 : vector<16x1024xf32>
    %c0_14 = arith.constant 0 : index
    %c0_15 = arith.constant 0 : index
    %15 = vector.load %arg6[%c0_14, %c0_15] : memref<1x1024xf32, #tpu.memory_space<vmem>>, vector<1x1024xf32>
    %16 = vector.broadcast %15 : vector<1x1024xf32> to vector<16x1024xf32>
    %17 = arith.addf %14, %16 : vector<16x1024xf32>
    %18 = vector.extract_strided_slice %17 {offsets = [0, 0], sizes = [16, 256], strides = [1, 1]} : vector<16x1024xf32> to vector<16x256xf32>
    %19 = arith.negf %18 : vector<16x256xf32>
    %20 = math.exp %19 : vector<16x256xf32>
    %cst_16 = arith.constant 1.000000e+00 : f32
    %21 = vector.broadcast %cst_16 : f32 to vector<16x256xf32>
    %22 = arith.addf %21, %20 : vector<16x256xf32>
    %23 = arith.divf %21, %22 : vector<16x256xf32>
    %24 = vector.extract_strided_slice %17 {offsets = [0, 256], sizes = [16, 256], strides = [1, 1]} : vector<16x1024xf32> to vector<16x256xf32>
    %25 = arith.negf %24 : vector<16x256xf32>
    %26 = math.exp %25 : vector<16x256xf32>
    %cst_17 = arith.constant 1.000000e+00 : f32
    %27 = vector.broadcast %cst_17 : f32 to vector<16x256xf32>
    %28 = arith.addf %27, %26 : vector<16x256xf32>
    %29 = arith.divf %27, %28 : vector<16x256xf32>
    %30 = vector.extract_strided_slice %17 {offsets = [0, 512], sizes = [16, 256], strides = [1, 1]} : vector<16x1024xf32> to vector<16x256xf32>
    %31 = math.tanh %30 : vector<16x256xf32>
    %32 = vector.extract_strided_slice %17 {offsets = [0, 768], sizes = [16, 256], strides = [1, 1]} : vector<16x1024xf32> to vector<16x256xf32>
    %33 = arith.negf %32 : vector<16x256xf32>
    %34 = math.exp %33 : vector<16x256xf32>
    %cst_18 = arith.constant 1.000000e+00 : f32
    %35 = vector.broadcast %cst_18 : f32 to vector<16x256xf32>
    %36 = arith.addf %35, %34 : vector<16x256xf32>
    %37 = arith.divf %35, %36 : vector<16x256xf32>
    %38 = arith.mulf %29, %8 : vector<16x256xf32>
    %39 = arith.mulf %23, %31 : vector<16x256xf32>
    %40 = arith.addf %38, %39 : vector<16x256xf32>
    %41 = math.tanh %40 : vector<16x256xf32>
    %42 = arith.mulf %37, %41 : vector<16x256xf32>
    %c0_19 = arith.constant 0 : index
    %c0_20 = arith.constant 0 : index
    %c0_21 = arith.constant 0 : index
    %43 = vector.load %arg17[%c0_19, %c0_20, %c0_21] : memref<2x16x256xf32, #tpu.memory_space<vmem>>, vector<1x16x256xf32>
    %44 = vector.shape_cast %43 : vector<1x16x256xf32> to vector<16x256xf32>
    %45 = vector.shape_cast %42 : vector<16x256xf32> to vector<1x16x256xf32>
    tpu.vector_store %arg17[%c0_19, %c0_20, %c0_21], %45 {strides = array<i32>} : memref<2x16x256xf32, #tpu.memory_space<vmem>>, vector<1x16x256xf32>,
    %c0_22 = arith.constant 0 : index
    %c0_23 = arith.constant 0 : index
    %c0_24 = arith.constant 0 : index
    %46 = vector.load %arg18[%c0_22, %c0_23, %c0_24] : memref<2x16x256xf32, #tpu.memory_space<vmem>>, vector<1x16x256xf32>
    %47 = vector.shape_cast %46 : vector<1x16x256xf32> to vector<16x256xf32>
    %48 = vector.shape_cast %40 : vector<16x256xf32> to vector<1x16x256xf32>
    tpu.vector_store %arg18[%c0_22, %c0_23, %c0_24], %48 {strides = array<i32>} : memref<2x16x256xf32, #tpu.memory_space<vmem>>, vector<1x16x256xf32>,
    %49 = arith.truncf %42 : vector<16x256xf32> to vector<16x256xbf16>
    %c1 = arith.constant 1 : index
    %c0_25 = arith.constant 0 : index
    %c0_26 = arith.constant 0 : index
    %50 = vector.load %arg17[%c1, %c0_25, %c0_26] : memref<2x16x256xf32, #tpu.memory_space<vmem>>, vector<1x16x256xf32>
    %51 = vector.shape_cast %50 : vector<1x16x256xf32> to vector<16x256xf32>
    %c1_27 = arith.constant 1 : index
    %c0_28 = arith.constant 0 : index
    %c0_29 = arith.constant 0 : index
    %52 = vector.load %arg18[%c1_27, %c0_28, %c0_29] : memref<2x16x256xf32, #tpu.memory_space<vmem>>, vector<1x16x256xf32>
    %53 = vector.shape_cast %52 : vector<1x16x256xf32> to vector<16x256xf32>
    %c0_30 = arith.constant 0 : index
    %c0_31 = arith.constant 0 : index
    %54 = vector.load %arg7[%c0_30, %c0_31] : memref<256x1024xbf16, #tpu.memory_space<vmem>>, vector<256x1024xbf16>
    %cst_32 = arith.constant dense<0.000000e+00> : vector<16x1024xf32>
    %55 = tpu.matmul %49, %54, %cst_32 {dimension_numbers = #tpu.dot_dimension_numbers<[1], [0], [0], [1], [0, 0, 1, 1], [], []>} : vector<16x256xbf16>, vector<256x1024xbf16>, vector<16x1024xf32> -> vector<16x1024xf32>
    %56 = arith.truncf %51 : vector<16x256xf32> to vector<16x256xbf16>
    %c0_33 = arith.constant 0 : index
    %c0_34 = arith.constant 0 : index
    %57 = vector.load %arg8[%c0_33, %c0_34] : memref<256x1024xbf16, #tpu.memory_space<vmem>>, vector<256x1024xbf16>
    %cst_35 = arith.constant dense<0.000000e+00> : vector<16x1024xf32>
    %58 = tpu.matmul %56, %57, %cst_35 {dimension_numbers = #tpu.dot_dimension_numbers<[1], [0], [0], [1], [0, 0, 1, 1], [], []>} : vector<16x256xbf16>, vector<256x1024xbf16>, vector<16x1024xf32> -> vector<16x1024xf32>
    %59 = arith.addf %55, %58 : vector<16x1024xf32>
    %c0_36 = arith.constant 0 : index
    %c0_37 = arith.constant 0 : index
    %60 = vector.load %arg9[%c0_36, %c0_37] : memref<1x1024xf32, #tpu.memory_space<vmem>>, vector<1x1024xf32>
    %61 = vector.broadcast %60 : vector<1x1024xf32> to vector<16x1024xf32>
    %62 = arith.addf %59, %61 : vector<16x1024xf32>
    %63 = vector.extract_strided_slice %62 {offsets = [0, 0], sizes = [16, 256], strides = [1, 1]} : vector<16x1024xf32> to vector<16x256xf32>
    %64 = arith.negf %63 : vector<16x256xf32>
    %65 = math.exp %64 : vector<16x256xf32>
    %cst_38 = arith.constant 1.000000e+00 : f32
    %66 = vector.broadcast %cst_38 : f32 to vector<16x256xf32>
    %67 = arith.addf %66, %65 : vector<16x256xf32>
    %68 = arith.divf %66, %67 : vector<16x256xf32>
    %69 = vector.extract_strided_slice %62 {offsets = [0, 256], sizes = [16, 256], strides = [1, 1]} : vector<16x1024xf32> to vector<16x256xf32>
    %70 = arith.negf %69 : vector<16x256xf32>
    %71 = math.exp %70 : vector<16x256xf32>
    %cst_39 = arith.constant 1.000000e+00 : f32
    %72 = vector.broadcast %cst_39 : f32 to vector<16x256xf32>
    %73 = arith.addf %72, %71 : vector<16x256xf32>
    %74 = arith.divf %72, %73 : vector<16x256xf32>
    %75 = vector.extract_strided_slice %62 {offsets = [0, 512], sizes = [16, 256], strides = [1, 1]} : vector<16x1024xf32> to vector<16x256xf32>
    %76 = math.tanh %75 : vector<16x256xf32>
    %77 = vector.extract_strided_slice %62 {offsets = [0, 768], sizes = [16, 256], strides = [1, 1]} : vector<16x1024xf32> to vector<16x256xf32>
    %78 = arith.negf %77 : vector<16x256xf32>
    %79 = math.exp %78 : vector<16x256xf32>
    %cst_40 = arith.constant 1.000000e+00 : f32
    %80 = vector.broadcast %cst_40 : f32 to vector<16x256xf32>
    %81 = arith.addf %80, %79 : vector<16x256xf32>
    %82 = arith.divf %80, %81 : vector<16x256xf32>
    %83 = arith.mulf %74, %53 : vector<16x256xf32>
    %84 = arith.mulf %68, %76 : vector<16x256xf32>
    %85 = arith.addf %83, %84 : vector<16x256xf32>
    %86 = math.tanh %85 : vector<16x256xf32>
    %87 = arith.mulf %82, %86 : vector<16x256xf32>
    %c1_41 = arith.constant 1 : index
    %c0_42 = arith.constant 0 : index
    %c0_43 = arith.constant 0 : index
    %88 = vector.load %arg17[%c1_41, %c0_42, %c0_43] : memref<2x16x256xf32, #tpu.memory_space<vmem>>, vector<1x16x256xf32>
    %89 = vector.shape_cast %88 : vector<1x16x256xf32> to vector<16x256xf32>
    %90 = vector.shape_cast %87 : vector<16x256xf32> to vector<1x16x256xf32>
    tpu.vector_store %arg17[%c1_41, %c0_42, %c0_43], %90 {strides = array<i32>} : memref<2x16x256xf32, #tpu.memory_space<vmem>>, vector<1x16x256xf32>,
    %c1_44 = arith.constant 1 : index
    %c0_45 = arith.constant 0 : index
    %c0_46 = arith.constant 0 : index
    %91 = vector.load %arg18[%c1_44, %c0_45, %c0_46] : memref<2x16x256xf32, #tpu.memory_space<vmem>>, vector<1x16x256xf32>
    %92 = vector.shape_cast %91 : vector<1x16x256xf32> to vector<16x256xf32>
    %93 = vector.shape_cast %85 : vector<16x256xf32> to vector<1x16x256xf32>
    tpu.vector_store %arg18[%c1_44, %c0_45, %c0_46], %93 {strides = array<i32>} : memref<2x16x256xf32, #tpu.memory_space<vmem>>, vector<1x16x256xf32>,
    %94 = arith.truncf %87 : vector<16x256xf32> to vector<16x256xbf16>
    %c0_47 = arith.constant 0 : index
    %c0_48 = arith.constant 0 : index
    %95 = vector.load %arg10[%c0_47, %c0_48] : memref<256x256xbf16, #tpu.memory_space<vmem>>, vector<256x256xbf16>
    %cst_49 = arith.constant dense<0.000000e+00> : vector<16x256xf32>
    %96 = tpu.matmul %94, %95, %cst_49 {dimension_numbers = #tpu.dot_dimension_numbers<[1], [0], [0], [1], [0, 0, 1, 1], [], []>} : vector<16x256xbf16>, vector<256x256xbf16>, vector<16x256xf32> -> vector<16x256xf32>
    %c0_50 = arith.constant 0 : index
    %c0_51 = arith.constant 0 : index
    %97 = vector.load %arg11[%c0_50, %c0_51] : memref<1x256xf32, #tpu.memory_space<vmem>>, vector<1x256xf32>
    %98 = vector.broadcast %97 : vector<1x256xf32> to vector<16x256xf32>
    %99 = arith.addf %96, %98 : vector<16x256xf32>
    %cst_52 = arith.constant 0.000000e+00 : f32
    %100 = vector.broadcast %cst_52 : f32 to vector<16x256xf32>
    %101 = arith.maximumf %99, %100 : vector<16x256xf32>
    %102 = arith.truncf %101 : vector<16x256xf32> to vector<16x256xbf16>
    %c0_53 = arith.constant 0 : index
    %c0_54 = arith.constant 0 : index
    %103 = vector.load %arg12[%c0_53, %c0_54] : memref<256x128xbf16, #tpu.memory_space<vmem>>, vector<256x128xbf16>
    %cst_55 = arith.constant dense<0.000000e+00> : vector<16x128xf32>
    %104 = tpu.matmul %102, %103, %cst_55 {dimension_numbers = #tpu.dot_dimension_numbers<[1], [0], [0], [1], [0, 0, 1, 1], [], []>} : vector<16x256xbf16>, vector<256x128xbf16>, vector<16x128xf32> -> vector<16x128xf32>
    %c0_56 = arith.constant 0 : index
    %c0_57 = arith.constant 0 : index
    %105 = vector.load %arg13[%c0_56, %c0_57] : memref<1x128xf32, #tpu.memory_space<vmem>>, vector<1x128xf32>
    %106 = vector.broadcast %105 : vector<1x128xf32> to vector<16x128xf32>
    %107 = arith.addf %104, %106 : vector<16x128xf32>
    %c0_58 = arith.constant 0 : index
    %c0_59 = arith.constant 0 : index
    %c0_60 = arith.constant 0 : index
    %108 = vector.load %arg14[%c0_58, %c0_59, %c0_60] : memref<1x16x128xf32, #tpu.memory_space<vmem>>, vector<1x16x128xf32>
    %109 = vector.shape_cast %108 : vector<1x16x128xf32> to vector<16x128xf32>
    %110 = vector.shape_cast %107 : vector<16x128xf32> to vector<1x16x128xf32>
    tpu.vector_store %arg14[%c0_58, %c0_59, %c0_60], %110 {strides = array<i32>} : memref<1x16x128xf32, #tpu.memory_space<vmem>>, vector<1x16x128xf32>,
    %c5_i32 = arith.constant 5 : i32
    %111 = arith.cmpi eq, %arg0, %c5_i32 : i32
    %112 = arith.extui %111 : i1 to i32
    %c0_i32_61 = arith.constant 0 : i32
    %113 = arith.cmpi ne, %112, %c0_i32_61 : i32
    scf.if %113 {
      %c0_62 = arith.constant 0 : index
      %c0_63 = arith.constant 0 : index
      %c0_64 = arith.constant 0 : index
      %114 = vector.load %arg17[%c0_62, %c0_63, %c0_64] : memref<2x16x256xf32, #tpu.memory_space<vmem>>, vector<2x16x256xf32>
      %c0_65 = arith.constant 0 : index
      %c0_66 = arith.constant 0 : index
      %c0_67 = arith.constant 0 : index
      %115 = vector.load %arg15[%c0_65, %c0_66, %c0_67] : memref<2x16x256xf32, #tpu.memory_space<vmem>>, vector<2x16x256xf32>
      tpu.vector_store %arg15[%c0_65, %c0_66, %c0_67], %114 {strides = array<i32>} : memref<2x16x256xf32, #tpu.memory_space<vmem>>, vector<2x16x256xf32>,
      %c0_68 = arith.constant 0 : index
      %c0_69 = arith.constant 0 : index
      %c0_70 = arith.constant 0 : index
      %116 = vector.load %arg18[%c0_68, %c0_69, %c0_70] : memref<2x16x256xf32, #tpu.memory_space<vmem>>, vector<2x16x256xf32>
      %c0_71 = arith.constant 0 : index
      %c0_72 = arith.constant 0 : index
      %c0_73 = arith.constant 0 : index
      %117 = vector.load %arg16[%c0_71, %c0_72, %c0_73] : memref<2x16x256xf32, #tpu.memory_space<vmem>>, vector<2x16x256xf32>
      tpu.vector_store %arg16[%c0_71, %c0_72, %c0_73], %116 {strides = array<i32>} : memref<2x16x256xf32, #tpu.memory_space<vmem>>, vector<2x16x256xf32>,
    } else {
    }
    return
  }
  func.func @transform_0(%arg0: i32) -> (i32, i32, i32) {
    %c0_i32 = arith.constant 0 : i32
    %c0_i32_0 = arith.constant 0 : i32
    %c0_i32_1 = arith.constant 0 : i32
    return %arg0, %c0_i32, %c0_i32_0 : i32, i32, i32
  }
  func.func @transform_1(%arg0: i32) -> (i32, i32, i32) {
    %c0_i32 = arith.constant 0 : i32
    %c0_i32_0 = arith.constant 0 : i32
    %c0_i32_1 = arith.constant 0 : i32
    %c0_i32_2 = arith.constant 0 : i32
    return %c0_i32, %c0_i32_0, %c0_i32_1 : i32, i32, i32
  }
  func.func @transform_2(%arg0: i32) -> (i32, i32, i32) {
    %c0_i32 = arith.constant 0 : i32
    %c0_i32_0 = arith.constant 0 : i32
    %c0_i32_1 = arith.constant 0 : i32
    %c0_i32_2 = arith.constant 0 : i32
    return %c0_i32, %c0_i32_0, %c0_i32_1 : i32, i32, i32
  }
  func.func @transform_3(%arg0: i32) -> (i32, i32) {
    %c0_i32 = arith.constant 0 : i32
    %c0_i32_0 = arith.constant 0 : i32
    %c0_i32_1 = arith.constant 0 : i32
    return %c0_i32, %c0_i32_0 : i32, i32
  }
  func.func @transform_4(%arg0: i32) -> (i32, i32) {
    %c0_i32 = arith.constant 0 : i32
    %c0_i32_0 = arith.constant 0 : i32
    %c0_i32_1 = arith.constant 0 : i32
    return %c0_i32, %c0_i32_0 : i32, i32
  }
  func.func @transform_5(%arg0: i32) -> (i32, i32) {
    %c0_i32 = arith.constant 0 : i32
    %c0_i32_0 = arith.constant 0 : i32
    %c0_i32_1 = arith.constant 0 : i32
    return %c0_i32, %c0_i32_0 : i32, i32
  }
  func.func @transform_6(%arg0: i32) -> (i32, i32) {
    %c0_i32 = arith.constant 0 : i32
    %c0_i32_0 = arith.constant 0 : i32
    %c0_i32_1 = arith.constant 0 : i32
    return %c0_i32, %c0_i32_0 : i32, i32
  }
  func.func @transform_7(%arg0: i32) -> (i32, i32) {
    %c0_i32 = arith.constant 0 : i32
    %c0_i32_0 = arith.constant 0 : i32
    %c0_i32_1 = arith.constant 0 : i32
    return %c0_i32, %c0_i32_0 : i32, i32
  }
  func.func @transform_8(%arg0: i32) -> (i32, i32) {
    %c0_i32 = arith.constant 0 : i32
    %c0_i32_0 = arith.constant 0 : i32
    %c0_i32_1 = arith.constant 0 : i32
    return %c0_i32, %c0_i32_0 : i32, i32
  }
  func.func @transform_9(%arg0: i32) -> (i32, i32) {
    %c0_i32 = arith.constant 0 : i32
    %c0_i32_0 = arith.constant 0 : i32
    %c0_i32_1 = arith.constant 0 : i32
    return %c0_i32, %c0_i32_0 : i32, i32
  }
  func.func @transform_10(%arg0: i32) -> (i32, i32) {
    %c0_i32 = arith.constant 0 : i32
    %c0_i32_0 = arith.constant 0 : i32
    %c0_i32_1 = arith.constant 0 : i32
    return %c0_i32, %c0_i32_0 : i32, i32
  }
  func.func @transform_11(%arg0: i32) -> (i32, i32) {
    %c0_i32 = arith.constant 0 : i32
    %c0_i32_0 = arith.constant 0 : i32
    %c0_i32_1 = arith.constant 0 : i32
    return %c0_i32, %c0_i32_0 : i32, i32
  }
  func.func @transform_12(%arg0: i32) -> (i32, i32) {
    %c0_i32 = arith.constant 0 : i32
    %c0_i32_0 = arith.constant 0 : i32
    %c0_i32_1 = arith.constant 0 : i32
    return %c0_i32, %c0_i32_0 : i32, i32
  }
  func.func @transform_13(%arg0: i32) -> (i32, i32, i32) {
    %c0_i32 = arith.constant 0 : i32
    %c0_i32_0 = arith.constant 0 : i32
    %c0_i32_1 = arith.constant 0 : i32
    return %arg0, %c0_i32, %c0_i32_0 : i32, i32, i32
  }
  func.func @transform_14(%arg0: i32) -> (i32, i32, i32) {
    %c0_i32 = arith.constant 0 : i32
    %c0_i32_0 = arith.constant 0 : i32
    %c0_i32_1 = arith.constant 0 : i32
    %c0_i32_2 = arith.constant 0 : i32
    return %c0_i32, %c0_i32_0, %c0_i32_1 : i32, i32, i32
  }
  func.func @transform_15(%arg0: i32) -> (i32, i32, i32) {
    %c0_i32 = arith.constant 0 : i32
    %c0_i32_0 = arith.constant 0 : i32
    %c0_i32_1 = arith.constant 0 : i32
    %c0_i32_2 = arith.constant 0 : i32
    return %c0_i32, %c0_i32_0, %c0_i32_1 : i32, i32, i32
  }
}

</mosaic_0001>

<llo_original>
// kernel: npi_forward_seq.1
$region0: #{npi_forward_seq.1}
  #allocation0 [shape = 'u32[]', space=smem, size = 0x4, offset = 0x4, fixed_abs, tag = 'smem constant byte address 0x4 - core index']
  #allocation1 [shape = 'u32[144,128]{1,0:T(1,128)}', space=vmem, size = 0x12000, scoped, tag = 'internal scratch']
  #allocation2 [shape = 'f32[2,16,256]{2,1,0:T(8,128)}', space=vmem, size = 0x8000, scoped, tag = 'scratch operand']
  #allocation3 [shape = 'f32[2,16,256]{2,1,0:T(8,128)}', space=vmem, size = 0x8000, scoped, tag = 'scratch operand']
  %s0 = inlined_call_operand.hbm [shape: bf16[6,16,128], index: 0, kind: input, shape index: {}]
  %s1 = inlined_call_operand.hbm [shape: f32[2,16,256], index: 1, kind: input, shape index: {}, may-alias: {1,14}]
  %s2 = inlined_call_operand.hbm [shape: f32[2,16,256], index: 2, kind: input, shape index: {}, may-alias: {2,15}]
  %s3 = inlined_call_operand.hbm [shape: bf16[128,1024], index: 3, kind: input, shape index: {}]
  %s4 = inlined_call_operand.hbm [shape: bf16[256,1024], index: 4, kind: input, shape index: {}]
  %s5 = inlined_call_operand.vmem [shape: f32[1,1024], index: 5, kind: input, shape index: {}]
  %s6 = inlined_call_operand.hbm [shape: bf16[256,1024], index: 6, kind: input, shape index: {}]
  %s7 = inlined_call_operand.hbm [shape: bf16[256,1024], index: 7, kind: input, shape index: {}]
  %s8 = inlined_call_operand.vmem [shape: f32[1,1024], index: 8, kind: input, shape index: {}]
  %s9 = inlined_call_operand.hbm [shape: bf16[256,256], index: 9, kind: input, shape index: {}]
  %s10 = inlined_call_operand.vmem [shape: f32[1,256], index: 10, kind: input, shape index: {}]
  %s11 = inlined_call_operand.hbm [shape: bf16[256,128], index: 11, kind: input, shape index: {}]
  %s12 = inlined_call_operand.vmem [shape: f32[1,128], index: 12, kind: input, shape index: {}]
  %s13 = inlined_call_operand.hbm [shape: f32[6,16,128], index: 13, kind: output, shape index: {0}]
  %s14 = inlined_call_operand.hbm [shape: f32[2,16,256], index: 14, kind: output, shape index: {1}, may-alias: {1,14}]
  %s15 = inlined_call_operand.hbm [shape: f32[2,16,256], index: 15, kind: output, shape index: {2}, may-alias: {2,15}]
  %16 = xla_tuple %s13, %s14, %s15
  %s17 = sld [smem:[#allocation0]]
  $region145: #{npi_forward_seq.1} parent=0
    _
  %s19 = ssub.s32 1, %s17
  %s20 = scalar_select 0, %s19, %s17
  $region1: #{npi_forward_seq.1} parent=0
    #allocation4 [shape = 'u8[8192]{0}', space=vmem, size = 0x2000, scoped, tag = 'input window, operand 0']
    #allocation5 [shape = 's32[2]{0}', space=sflag, size = 0x8, scoped, tag = 'scoped memory for npi_forward_seq.1']
    #allocation6 [shape = 's32[2]{0}', space=sflag, size = 0x8, scoped, tag = 'scoped memory for npi_forward_seq.1']
    #allocation7 [shape = 'u8[32768]{0}', space=vmem, size = 0x8000, scoped, tag = 'input window, operand 1, single buffered']
    #allocation8 [shape = 's32[1]{0}', space=sflag, size = 0x4, scoped, tag = 'scoped memory for npi_forward_seq.1']
    #allocation9 [shape = 'u8[32768]{0}', space=vmem, size = 0x8000, scoped, tag = 'input window, operand 2, single buffered']
    #allocation10 [shape = 'u8[262144]{0}', space=vmem, size = 0x40000, scoped, tag = 'input window, operand 3, single buffered']
    #allocation11 [shape = 's32[1]{0}', space=sflag, size = 0x4, scoped, tag = 'scoped memory for npi_forward_seq.1']
    #allocation12 [shape = 'u8[524288]{0}', space=vmem, size = 0x80000, scoped, tag = 'input window, operand 4, single buffered']
    #allocation13 [shape = 'u8[524288]{0}', space=vmem, size = 0x80000, scoped, tag = 'input window, operand 6, single buffered']
    #allocation14 [shape = 's32[1]{0}', space=sflag, size = 0x4, scoped, tag = 'scoped memory for npi_forward_seq.1']
    #allocation15 [shape = 'u8[524288]{0}', space=vmem, size = 0x80000, scoped, tag = 'input window, operand 7, single buffered']
    #allocation16 [shape = 'u8[131072]{0}', space=vmem, size = 0x20000, scoped, tag = 'input window, operand 9, single buffered']
    #allocation17 [shape = 's32[1]{0}', space=sflag, size = 0x4, scoped, tag = 'scoped memory for npi_forward_seq.1']
    #allocation18 [shape = 'u8[65536]{0}', space=vmem, size = 0x10000, scoped, tag = 'input window, operand 11, single buffered']
    #allocation19 [shape = 'u8[16384]{0}', space=vmem, size = 0x4000, scoped, tag = 'output window, operand 0']
    #allocation20 [shape = 'u8[32768]{0}', space=vmem, size = 0x8000, scoped, tag = 'output window, operand 1, single buffered']
    #allocation21 [shape = 's32[1]{0}', space=sflag, size = 0x4, scoped, tag = 'scoped memory for npi_forward_seq.1']
    #allocation22 [shape = 'u8[32768]{0}', space=vmem, size = 0x8000, scoped, tag = 'output window, operand 2, single buffered']
    %21 = vsyncpa [#allocation5], 0
    %s22 = scalar_lea.sflag [#allocation5], 1
    %23 = vsyncpa %s22, 0
    %24 = vsyncpa [#allocation8], 0
    %25 = vsyncpa [#allocation11], 0
    %26 = vsyncpa [#allocation14], 0
    %27 = vsyncpa [#allocation17], 0
    %28 = vsyncpa [#allocation6], 0
    %s29 = scalar_lea.sflag [#allocation6], 1
    %30 = vsyncpa %s29, 0
    %31 = vsyncpa [#allocation21], 0
    loop: start=0, step=1, limit=8
    $region2: #{npi_forward_seq.1} parent=1 // loop_pre_header
      _
    $region3: #{npi_forward_seq.1} parent=1 // loop_header
      %s33 = sphi 0, %s37
      %p34 = scmp.ge.s32.totalorder %s33, 8
      %s43 = sphi 0, %s45
      %s46 = sphi 0, %s43
      %s47 = sphi 0, %s46
      %s63 = sphi 0, %s47
      %s67 = sphi 0, %s67
      %s69 = sphi 0, %s67
      %s70 = sphi 0, %s69
      %s84 = sphi 0, %s70
      %s88 = sphi 0, %s88
      %s90 = sphi 0, %s88
      %s91 = sphi 0, %s90
      %s105 = sphi 0, %s91
      %s109 = sphi 0, %s109
      %s111 = sphi 0, %s109
      %s112 = sphi 0, %s111
      %s126 = sphi 0, %s112
      %s130 = sphi 0, %s130
      %s132 = sphi 0, %s130
      %s133 = sphi 0, %s132
      %s147 = sphi 0, %s133
      %s151 = sphi 0, %s151
      %s153 = sphi 0, %s151
      %s154 = sphi 0, %s153
      %s168 = sphi 0, %s154
      %s172 = sphi 0, %s172
      %s174 = sphi 0, %s172
      %s175 = sphi 0, %s174
      %s189 = sphi 0, %s175
      %s193 = sphi 0, %s193
      %s195 = sphi 0, %s193
      %s196 = sphi 0, %s195
      %s210 = sphi 0, %s196
      %s214 = sphi 0, %s214
      %s216 = sphi 0, %s214
      %s217 = sphi 0, %s216
      %s231 = sphi 0, %s217
      %s235 = sphi 0, %s235
      %s237 = sphi 0, %s235
      %s238 = sphi 0, %s237
      %s252 = sphi 0, %s238
      %s256 = sphi 0, %s256
      %s258 = sphi 0, %s256
      %s259 = sphi 0, %s258
      %s273 = sphi 0, %s259
      %s277 = sphi 0, %s277
      %s279 = sphi 0, %s277
      %s280 = sphi 0, %s279
      %s294 = sphi 0, %s280
      %s298 = sphi 0, %s298
      %s300 = sphi 0, %s298
      %s301 = sphi 0, %s300
      %s315 = sphi 0, %s301
      %s321 = sphi 0, %s323
      %s324 = sphi 0, %s321
      %s325 = sphi 0, %s324
      %s341 = sphi 0, %s325
      %s345 = sphi 0, %s345
      %s347 = sphi 0, %s345
      %s348 = sphi 0, %s347
      %s362 = sphi 0, %s348
      %s366 = sphi 0, %s366
      %s368 = sphi 0, %s366
      %s369 = sphi 0, %s368
      %s383 = sphi 0, %s369
    $region4: #{npi_forward_seq.1} parent=1 // loop_header_branch
      %36 = sbr.rel (%p34) target = $region8
    $region5: #{npi_forward_seq.1} parent=1 // loop_body
      %s38 = ssub.s32 %s33, 1
      %s39 = ssub.s32 %s33, 2
      %s40 = sadd.s32 %s33, 1
      %s41 = ssub.s32 %s33, %s40
      %p42 = scmp.eq.s32.totalorder %s41, 0
      %s44 = sadd.s32 %s43, 1
      %s45 = scalar_select %p42, %s43, %s44
      %p48 = pneg %p42
      %p49 = scmp.eq.s32.totalorder %s33, 5
      %p50 = por %p48, %p49
      %p51 = scmp.ne.s32.totalorder %s43, %s46
      %p52 = scmp.eq.s32.totalorder %s33, 0
      %p53 = por %p51, %p52
      %p54 = scmp.ne.s32.totalorder %s43, %s46
      %p55 = scmp.eq.s32.totalorder %s38, 5
      %p56 = por %p54, %p55
      %p57 = scmp.ne.s32.totalorder %s46, %s47
      %p58 = scmp.eq.s32.totalorder %s38, 0
      %p59 = por %p57, %p58
      %p60 = scmp.ne.s32.totalorder %s46, %s47
      %p61 = scmp.eq.s32.totalorder %s39, 5
      %p62 = por %p60, %p61
      %p64 = scmp.ne.s32.totalorder %s47, %s63
      %p65 = scmp.eq.s32.totalorder %s39, 0
      %p66 = por %p64, %p65
      %s68 = sadd.s32 %s67, 1
      %p71 = scmp.eq.s32.totalorder %s33, 5
      %p72 = scmp.ne.s32.totalorder %s67, %s69
      %p73 = scmp.eq.s32.totalorder %s33, 0
      %p74 = por %p72, %p73
      %p75 = scmp.ne.s32.totalorder %s67, %s69
      %p76 = scmp.eq.s32.totalorder %s38, 5
      %p77 = por %p75, %p76
      %p78 = scmp.ne.s32.totalorder %s69, %s70
      %p79 = scmp.eq.s32.totalorder %s38, 0
      %p80 = por %p78, %p79
      %p81 = scmp.ne.s32.totalorder %s69, %s70
      %p82 = scmp.eq.s32.totalorder %s39, 5
      %p83 = por %p81, %p82
      %p85 = scmp.ne.s32.totalorder %s70, %s84
      %p86 = scmp.eq.s32.totalorder %s39, 0
      %p87 = por %p85, %p86
      %s89 = sadd.s32 %s88, 1
      %p92 = scmp.eq.s32.totalorder %s33, 5
      %p93 = scmp.ne.s32.totalorder %s88, %s90
      %p94 = scmp.eq.s32.totalorder %s33, 0
      %p95 = por %p93, %p94
      %p96 = scmp.ne.s32.totalorder %s88, %s90
      %p97 = scmp.eq.s32.totalorder %s38, 5
      %p98 = por %p96, %p97
      %p99 = scmp.ne.s32.totalorder %s90, %s91
      %p100 = scmp.eq.s32.totalorder %s38, 0
      %p101 = por %p99, %p100
      %p102 = scmp.ne.s32.totalorder %s90, %s91
      %p103 = scmp.eq.s32.totalorder %s39, 5
      %p104 = por %p102, %p103
      %p106 = scmp.ne.s32.totalorder %s91, %s105
      %p107 = scmp.eq.s32.totalorder %s39, 0
      %p108 = por %p106, %p107
      %s110 = sadd.s32 %s109, 1
      %p113 = scmp.eq.s32.totalorder %s33, 5
      %p114 = scmp.ne.s32.totalorder %s109, %s111
      %p115 = scmp.eq.s32.totalorder %s33, 0
      %p116 = por %p114, %p115
      %p117 = scmp.ne.s32.totalorder %s109, %s111
      %p118 = scmp.eq.s32.totalorder %s38, 5
      %p119 = por %p117, %p118
      %p120 = scmp.ne.s32.totalorder %s111, %s112
      %p121 = scmp.eq.s32.totalorder %s38, 0
      %p122 = por %p120, %p121
      %p123 = scmp.ne.s32.totalorder %s111, %s112
      %p124 = scmp.eq.s32.totalorder %s39, 5
      %p125 = por %p123, %p124
      %p127 = scmp.ne.s32.totalorder %s112, %s126
      %p128 = scmp.eq.s32.totalorder %s39, 0
      %p129 = por %p127, %p128
      %s131 = sadd.s32 %s130, 1
      %p134 = scmp.eq.s32.totalorder %s33, 5
      %p135 = scmp.ne.s32.totalorder %s130, %s132
      %p136 = scmp.eq.s32.totalorder %s33, 0
      %p137 = por %p135, %p136
      %p138 = scmp.ne.s32.totalorder %s130, %s132
      %p139 = scmp.eq.s32.totalorder %s38, 5
      %p140 = por %p138, %p139
      %p141 = scmp.ne.s32.totalorder %s132, %s133
      %p142 = scmp.eq.s32.totalorder %s38, 0
      %p143 = por %p141, %p142
      %p144 = scmp.ne.s32.totalorder %s132, %s133
      %p145 = scmp.eq.s32.totalorder %s39, 5
      %p146 = por %p144, %p145
      %p148 = scmp.ne.s32.totalorder %s133, %s147
      %p149 = scmp.eq.s32.totalorder %s39, 0
      %p150 = por %p148, %p149
      %s152 = sadd.s32 %s151, 1
      %p155 = scmp.eq.s32.totalorder %s33, 5
      %p156 = scmp.ne.s32.totalorder %s151, %s153
      %p157 = scmp.eq.s32.totalorder %s33, 0
      %p158 = por %p156, %p157
      %p159 = scmp.ne.s32.totalorder %s151, %s153
      %p160 = scmp.eq.s32.totalorder %s38, 5
      %p161 = por %p159, %p160
      %p162 = scmp.ne.s32.totalorder %s153, %s154
      %p163 = scmp.eq.s32.totalorder %s38, 0
      %p164 = por %p162, %p163
      %p165 = scmp.ne.s32.totalorder %s153, %s154
      %p166 = scmp.eq.s32.totalorder %s39, 5
      %p167 = por %p165, %p166
      %p169 = scmp.ne.s32.totalorder %s154, %s168
      %p170 = scmp.eq.s32.totalorder %s39, 0
      %p171 = por %p169, %p170
      %s173 = sadd.s32 %s172, 1
      %p176 = scmp.eq.s32.totalorder %s33, 5
      %p177 = scmp.ne.s32.totalorder %s172, %s174
      %p178 = scmp.eq.s32.totalorder %s33, 0
      %p179 = por %p177, %p178
      %p180 = scmp.ne.s32.totalorder %s172, %s174
      %p181 = scmp.eq.s32.totalorder %s38, 5
      %p182 = por %p180, %p181
      %p183 = scmp.ne.s32.totalorder %s174, %s175
      %p184 = scmp.eq.s32.totalorder %s38, 0
      %p185 = por %p183, %p184
      %p186 = scmp.ne.s32.totalorder %s174, %s175
      %p187 = scmp.eq.s32.totalorder %s39, 5
      %p188 = por %p186, %p187
      %p190 = scmp.ne.s32.totalorder %s175, %s189
      %p191 = scmp.eq.s32.totalorder %s39, 0
      %p192 = por %p190, %p191
      %s194 = sadd.s32 %s193, 1
      %p197 = scmp.eq.s32.totalorder %s33, 5
      %p198 = scmp.ne.s32.totalorder %s193, %s195
      %p199 = scmp.eq.s32.totalorder %s33, 0
      %p200 = por %p198, %p199
      %p201 = scmp.ne.s32.totalorder %s193, %s195
      %p202 = scmp.eq.s32.totalorder %s38, 5
      %p203 = por %p201, %p202
      %p204 = scmp.ne.s32.totalorder %s195, %s196
      %p205 = scmp.eq.s32.totalorder %s38, 0
      %p206 = por %p204, %p205
      %p207 = scmp.ne.s32.totalorder %s195, %s196
      %p208 = scmp.eq.s32.totalorder %s39, 5
      %p209 = por %p207, %p208
      %p211 = scmp.ne.s32.totalorder %s196, %s210
      %p212 = scmp.eq.s32.totalorder %s39, 0
      %p213 = por %p211, %p212
      %s215 = sadd.s32 %s214, 1
      %p218 = scmp.eq.s32.totalorder %s33, 5
      %p219 = scmp.ne.s32.totalorder %s214, %s216
      %p220 = scmp.eq.s32.totalorder %s33, 0
      %p221 = por %p219, %p220
      %p222 = scmp.ne.s32.totalorder %s214, %s216
      %p223 = scmp.eq.s32.totalorder %s38, 5
      %p224 = por %p222, %p223
      %p225 = scmp.ne.s32.totalorder %s216, %s217
      %p226 = scmp.eq.s32.totalorder %s38, 0
      %p227 = por %p225, %p226
      %p228 = scmp.ne.s32.totalorder %s216, %s217
      %p229 = scmp.eq.s32.totalorder %s39, 5
      %p230 = por %p228, %p229
      %p232 = scmp.ne.s32.totalorder %s217, %s231
      %p233 = scmp.eq.s32.totalorder %s39, 0
      %p234 = por %p232, %p233
      %s236 = sadd.s32 %s235, 1
      %p239 = scmp.eq.s32.totalorder %s33, 5
      %p240 = scmp.ne.s32.totalorder %s235, %s237
      %p241 = scmp.eq.s32.totalorder %s33, 0
      %p242 = por %p240, %p241
      %p243 = scmp.ne.s32.totalorder %s235, %s237
      %p244 = scmp.eq.s32.totalorder %s38, 5
      %p245 = por %p243, %p244
      %p246 = scmp.ne.s32.totalorder %s237, %s238
      %p247 = scmp.eq.s32.totalorder %s38, 0
      %p248 = por %p246, %p247
      %p249 = scmp.ne.s32.totalorder %s237, %s238
      %p250 = scmp.eq.s32.totalorder %s39, 5
      %p251 = por %p249, %p250
      %p253 = scmp.ne.s32.totalorder %s238, %s252
      %p254 = scmp.eq.s32.totalorder %s39, 0
      %p255 = por %p253, %p254
      %s257 = sadd.s32 %s256, 1
      %p260 = scmp.eq.s32.totalorder %s33, 5
      %p261 = scmp.ne.s32.totalorder %s256, %s258
      %p262 = scmp.eq.s32.totalorder %s33, 0
      %p263 = por %p261, %p262
      %p264 = scmp.ne.s32.totalorder %s256, %s258
      %p265 = scmp.eq.s32.totalorder %s38, 5
      %p266 = por %p264, %p265
      %p267 = scmp.ne.s32.totalorder %s258, %s259
      %p268 = scmp.eq.s32.totalorder %s38, 0
      %p269 = por %p267, %p268
      %p270 = scmp.ne.s32.totalorder %s258, %s259
      %p271 = scmp.eq.s32.totalorder %s39, 5
      %p272 = por %p270, %p271
      %p274 = scmp.ne.s32.totalorder %s259, %s273
      %p275 = scmp.eq.s32.totalorder %s39, 0
      %p276 = por %p274, %p275
      %s278 = sadd.s32 %s277, 1
      %p281 = scmp.eq.s32.totalorder %s33, 5
      %p282 = scmp.ne.s32.totalorder %s277, %s279
      %p283 = scmp.eq.s32.totalorder %s33, 0
      %p284 = por %p282, %p283
      %p285 = scmp.ne.s32.totalorder %s277, %s279
      %p286 = scmp.eq.s32.totalorder %s38, 5
      %p287 = por %p285, %p286
      %p288 = scmp.ne.s32.totalorder %s279, %s280
      %p289 = scmp.eq.s32.totalorder %s38, 0
      %p290 = por %p288, %p289
      %p291 = scmp.ne.s32.totalorder %s279, %s280
      %p292 = scmp.eq.s32.totalorder %s39, 5
      %p293 = por %p291, %p292
      %p295 = scmp.ne.s32.totalorder %s280, %s294
      %p296 = scmp.eq.s32.totalorder %s39, 0
      %p297 = por %p295, %p296
      %s299 = sadd.s32 %s298, 1
      %p302 = scmp.eq.s32.totalorder %s33, 5
      %p303 = scmp.ne.s32.totalorder %s298, %s300
      %p304 = scmp.eq.s32.totalorder %s33, 0
      %p305 = por %p303, %p304
      %p306 = scmp.ne.s32.totalorder %s298, %s300
      %p307 = scmp.eq.s32.totalorder %s38, 5
      %p308 = por %p306, %p307
      %p309 = scmp.ne.s32.totalorder %s300, %s301
      %p310 = scmp.eq.s32.totalorder %s38, 0
      %p311 = por %p309, %p310
      %p312 = scmp.ne.s32.totalorder %s300, %s301
      %p313 = scmp.eq.s32.totalorder %s39, 5
      %p314 = por %p312, %p313
      %p316 = scmp.ne.s32.totalorder %s301, %s315
      %p317 = scmp.eq.s32.totalorder %s39, 0
      %p318 = por %p316, %p317
      %s319 = ssub.s32 %s33, %s40
      %p320 = scmp.eq.s32.totalorder %s319, 0
      %s322 = sadd.s32 %s321, 1
      %s323 = scalar_select %p320, %s321, %s322
      %p326 = pneg %p320
      %p327 = scmp.eq.s32.totalorder %s33, 5
      %p328 = por %p326, %p327
      %p329 = scmp.ne.s32.totalorder %s321, %s324
      %p330 = scmp.eq.s32.totalorder %s33, 0
      %p331 = por %p329, %p330
      %p332 = scmp.ne.s32.totalorder %s321, %s324
      %p333 = scmp.eq.s32.totalorder %s38, 5
      %p334 = por %p332, %p333
      %p335 = scmp.ne.s32.totalorder %s324, %s325
      %p336 = scmp.eq.s32.totalorder %s38, 0
      %p337 = por %p335, %p336
      %p338 = scmp.ne.s32.totalorder %s324, %s325
      %p339 = scmp.eq.s32.totalorder %s39, 5
      %p340 = por %p338, %p339
      %p342 = scmp.ne.s32.totalorder %s325, %s341
      %p343 = scmp.eq.s32.totalorder %s39, 0
      %p344 = por %p342, %p343
      %s346 = sadd.s32 %s345, 1
      %p349 = scmp.eq.s32.totalorder %s33, 5
      %p350 = scmp.ne.s32.totalorder %s345, %s347
      %p351 = scmp.eq.s32.totalorder %s33, 0
      %p352 = por %p350, %p351
      %p353 = scmp.ne.s32.totalorder %s345, %s347
      %p354 = scmp.eq.s32.totalorder %s38, 5
      %p355 = por %p353, %p354
      %p356 = scmp.ne.s32.totalorder %s347, %s348
      %p357 = scmp.eq.s32.totalorder %s38, 0
      %p358 = por %p356, %p357
      %p359 = scmp.ne.s32.totalorder %s347, %s348
      %p360 = scmp.eq.s32.totalorder %s39, 5
      %p361 = por %p359, %p360
      %p363 = scmp.ne.s32.totalorder %s348, %s362
      %p364 = scmp.eq.s32.totalorder %s39, 0
      %p365 = por %p363, %p364
      %s367 = sadd.s32 %s366, 1
      %p370 = scmp.eq.s32.totalorder %s33, 5
      %p371 = scmp.ne.s32.totalorder %s366, %s368
      %p372 = scmp.eq.s32.totalorder %s33, 0
      %p373 = por %p371, %p372
      %p374 = scmp.ne.s32.totalorder %s366, %s368
      %p375 = scmp.eq.s32.totalorder %s38, 5
      %p376 = por %p374, %p375
      %p377 = scmp.ne.s32.totalorder %s368, %s369
      %p378 = scmp.eq.s32.totalorder %s38, 0
      %p379 = por %p377, %p378
      %p380 = scmp.ne.s32.totalorder %s368, %s369
      %p381 = scmp.eq.s32.totalorder %s39, 5
      %p382 = por %p380, %p381
      %p384 = scmp.ne.s32.totalorder %s369, %s383
      %p385 = scmp.eq.s32.totalorder %s39, 0
      %p386 = por %p384, %p385
      %p387 = scmp.le.s32.totalorder 1, %s33
      %p388 = scmp.lt.s32.totalorder %s33, 7
      %p389 = pnand %p387, %p388
      %p390 = pneg %p389
      // Predicated region
      $region9: #{npi_forward_seq.1} parent=5 // pred_check
        _
      $region10: #{npi_forward_seq.1} parent=5 // pred_check_branch
        %392 = sbr.rel (%p389) target = $region12
      $region11: #{npi_forward_seq.1} parent=5 // pred_region
        %s393 = ssub.s32 %s33, 1
        // Predicated region
        $region13: #{npi_forward_seq.1} parent=11 // pred_check
          %p394 = pneg %p80
        $region14: #{npi_forward_seq.1} parent=11 // pred_check_branch
          %396 = sbr.rel (%p394) target = $region16
        $region15: #{npi_forward_seq.1} parent=11 // pred_region
          %s398 = ssub.s32 1024, 1024
          %399 = vsyncadd [#allocation8], %s398
          %s400 = sshll.u32 [#allocation7], 4
          %s401 = int_to_ptr.vmem [resolvable:$true] %s400
          %406 = dma.hbm_to_vmem [thread:$0]  %s1, 1024, %s401, [#allocation8], 256, 256, 16
        $region16: #{npi_forward_seq.1} parent=11 // pred_fallthru
          _
        // Predicated region
        $region17: #{npi_forward_seq.1} parent=11 // pred_check
          %p407 = pneg %p101
        $region18: #{npi_forward_seq.1} parent=11 // pred_check_branch
          %409 = sbr.rel (%p407) target = $region20
        $region19: #{npi_forward_seq.1} parent=11 // pred_region
          %s411 = ssub.s32 1024, 1024
          %412 = vsyncadd [#allocation8], %s411
          %s413 = sshll.u32 [#allocation9], 4
          %s414 = int_to_ptr.vmem [resolvable:$true] %s413
          %419 = dma.hbm_to_vmem [thread:$0]  %s2, 1024, %s414, [#allocation8], 256, 256, 16
        $region20: #{npi_forward_seq.1} parent=11 // pred_fallthru
          _
        // Predicated region
        $region21: #{npi_forward_seq.1} parent=11 // pred_check
          %p420 = pneg %p122
        $region22: #{npi_forward_seq.1} parent=11 // pred_check_branch
          %422 = sbr.rel (%p420) target = $region24
        $region23: #{npi_forward_seq.1} parent=11 // pred_region
          %s424 = ssub.s32 8192, 8192
          %425 = vsyncadd [#allocation11], %s424
          %s426 = sshll.u32 [#allocation10], 4
          %s427 = int_to_ptr.vmem [resolvable:$true] %s426
          %432 = dma.hbm_to_vmem [thread:$0]  %s3, 8192, %s427, [#allocation11], 512, 512, 32
        $region24: #{npi_forward_seq.1} parent=11 // pred_fallthru
          _
        // Predicated region
        $region25: #{npi_forward_seq.1} parent=11 // pred_check
          %p433 = pneg %p143
        $region26: #{npi_forward_seq.1} parent=11 // pred_check_branch
          %435 = sbr.rel (%p433) target = $region28
        $region27: #{npi_forward_seq.1} parent=11 // pred_region
          %s437 = ssub.s32 16384, 16384
          %438 = vsyncadd [#allocation11], %s437
          %s439 = sshll.u32 [#allocation12], 4
          %s440 = int_to_ptr.vmem [resolvable:$true] %s439
          %445 = dma.hbm_to_vmem [thread:$0]  %s4, 16384, %s440, [#allocation11], 512, 512, 32
        $region28: #{npi_forward_seq.1} parent=11 // pred_fallthru
          _
        // Predicated region
        $region29: #{npi_forward_seq.1} parent=11 // pred_check
          %p446 = pneg %p164
        $region30: #{npi_forward_seq.1} parent=11 // pred_check_branch
          %448 = sbr.rel (%p446) target = $region32
        $region31: #{npi_forward_seq.1} parent=11 // pred_region
          _
        $region32: #{npi_forward_seq.1} parent=11 // pred_fallthru
          _
        // Predicated region
        $region33: #{npi_forward_seq.1} parent=11 // pred_check
          %p449 = pneg %p185
        $region34: #{npi_forward_seq.1} parent=11 // pred_check_branch
          %451 = sbr.rel (%p449) target = $region36
        $region35: #{npi_forward_seq.1} parent=11 // pred_region
          %s453 = ssub.s32 16384, 16384
          %454 = vsyncadd [#allocation14], %s453
          %s455 = sshll.u32 [#allocation13], 4
          %s456 = int_to_ptr.vmem [resolvable:$true] %s455
          %461 = dma.hbm_to_vmem [thread:$0]  %s6, 16384, %s456, [#allocation14], 512, 512, 32
        $region36: #{npi_forward_seq.1} parent=11 // pred_fallthru
          _
        // Predicated region
        $region37: #{npi_forward_seq.1} parent=11 // pred_check
          %p462 = pneg %p206
        $region38: #{npi_forward_seq.1} parent=11 // pred_check_branch
          %464 = sbr.rel (%p462) target = $region40
        $region39: #{npi_forward_seq.1} parent=11 // pred_region
          %s466 = ssub.s32 16384, 16384
          %467 = vsyncadd [#allocation14], %s466
          %s468 = sshll.u32 [#allocation15], 4
          %s469 = int_to_ptr.vmem [resolvable:$true] %s468
          %474 = dma.hbm_to_vmem [thread:$0]  %s7, 16384, %s469, [#allocation14], 512, 512, 32
        $region40: #{npi_forward_seq.1} parent=11 // pred_fallthru
          _
        // Predicated region
        $region41: #{npi_forward_seq.1} parent=11 // pred_check
          %p475 = pneg %p227
        $region42: #{npi_forward_seq.1} parent=11 // pred_check_branch
          %477 = sbr.rel (%p475) target = $region44
        $region43: #{npi_forward_seq.1} parent=11 // pred_region
          _
        $region44: #{npi_forward_seq.1} parent=11 // pred_fallthru
          _
        // Predicated region
        $region45: #{npi_forward_seq.1} parent=11 // pred_check
          %p478 = pneg %p248
        $region46: #{npi_forward_seq.1} parent=11 // pred_check_branch
          %480 = sbr.rel (%p478) target = $region48
        $region47: #{npi_forward_seq.1} parent=11 // pred_region
          %s482 = ssub.s32 4096, 4096
          %483 = vsyncadd [#allocation17], %s482
          %s484 = sshll.u32 [#allocation16], 4
          %s485 = int_to_ptr.vmem [resolvable:$true] %s484
          %490 = dma.hbm_to_vmem [thread:$0]  %s9, 4096, %s485, [#allocation17], 128, 128, 8
        $region48: #{npi_forward_seq.1} parent=11 // pred_fallthru
          _
        // Predicated region
        $region49: #{npi_forward_seq.1} parent=11 // pred_check
          %p491 = pneg %p269
        $region50: #{npi_forward_seq.1} parent=11 // pred_check_branch
          %493 = sbr.rel (%p491) target = $region52
        $region51: #{npi_forward_seq.1} parent=11 // pred_region
          _
        $region52: #{npi_forward_seq.1} parent=11 // pred_fallthru
          _
        // Predicated region
        $region53: #{npi_forward_seq.1} parent=11 // pred_check
          %p494 = pneg %p290
        $region54: #{npi_forward_seq.1} parent=11 // pred_check_branch
          %496 = sbr.rel (%p494) target = $region56
        $region55: #{npi_forward_seq.1} parent=11 // pred_region
          %s498 = ssub.s32 2048, 2048
          %499 = vsyncadd [#allocation17], %s498
          %s500 = sshll.u32 [#allocation18], 4
          %s501 = int_to_ptr.vmem [resolvable:$true] %s500
          %506 = dma.hbm_to_vmem [thread:$0]  %s11, 2048, %s501, [#allocation17], 64, 64, 4
        $region56: #{npi_forward_seq.1} parent=11 // pred_fallthru
          _
        // Predicated region
        $region57: #{npi_forward_seq.1} parent=11 // pred_check
          %p507 = pneg %p311
        $region58: #{npi_forward_seq.1} parent=11 // pred_check_branch
          %509 = sbr.rel (%p507) target = $region60
        $region59: #{npi_forward_seq.1} parent=11 // pred_region
          _
        $region60: #{npi_forward_seq.1} parent=11 // pred_fallthru
          _
      $region12: #{npi_forward_seq.1} parent=5 // pred_fallthru
        _
      %p510 = scmp.lt.s32.totalorder %s33, 6
      // Predicated region
      $region61: #{npi_forward_seq.1} parent=5 // pred_check
        %p511 = pneg %p510
      $region62: #{npi_forward_seq.1} parent=5 // pred_check_branch
        %513 = sbr.rel (%p511) target = $region64
      $region63: #{npi_forward_seq.1} parent=5 // pred_region
        // Predicated region
        $region65: #{npi_forward_seq.1} parent=63 // pred_check
          %p514 = pneg %p53
        $region66: #{npi_forward_seq.1} parent=63 // pred_check_branch
          %516 = sbr.rel (%p514) target = $region68
        $region67: #{npi_forward_seq.1} parent=63 // pred_region
          %s517 = sand.u32 %s43, 1
          %s518 = scalar_lea.sflag [#allocation5], %s517
          %s519 = sand.u32 %s43, 1
          %s520 = smul.addr %s519, 8
          %s521 = scalar_lea.vmem [#allocation4], %s520
          %s523 = ssub.s32 128, 128
          %524 = vsyncadd %s518, %s523
          %s525 = smul.addr %s33, 2
          %s526 = smul.addr %s525, 64
          %s527 = scalar_lea.hbm %s0, %s526
          %s528 = sshll.u32 %s521, 4
          %s529 = int_to_ptr.vmem [resolvable:$true] %s528
          %534 = dma.hbm_to_vmem [thread:$0]  %s527, 128, %s529, %s518, 64, 64, 4
        $region68: #{npi_forward_seq.1} parent=63 // pred_fallthru
          _
      $region64: #{npi_forward_seq.1} parent=5 // pred_fallthru
        _
      %p535 = scmp.le.s32.totalorder 1, %s33
      %p536 = scmp.lt.s32.totalorder %s33, 7
      %p537 = pnand %p535, %p536
      %p538 = pneg %p537
      // Predicated region
      $region69: #{npi_forward_seq.1} parent=5 // pred_check
        _
      $region70: #{npi_forward_seq.1} parent=5 // pred_check_branch
        %540 = sbr.rel (%p537) target = $region72
      $region71: #{npi_forward_seq.1} parent=5 // pred_region
        %s541 = ssub.s32 %s33, 1
        %s542 = sand.u32 %s46, 1
        %s543 = scalar_lea.sflag [#allocation5], %s542
        %s544 = sand.u32 %s46, 1
        %s545 = smul.addr %s544, 8
        %s546 = scalar_lea.vmem [#allocation4], %s545
        // Predicated region
        $region73: #{npi_forward_seq.1} parent=71 // pred_check
          %p547 = pneg %p59
        $region74: #{npi_forward_seq.1} parent=71 // pred_check_branch
          %549 = sbr.rel (%p547) target = $region76
        $region75: #{npi_forward_seq.1} parent=71 // pred_region
          %550 = dma.done %s543, 128
        $region76: #{npi_forward_seq.1} parent=71 // pred_fallthru
          _
        // Predicated region
        $region77: #{npi_forward_seq.1} parent=71 // pred_check
          %p551 = pneg %p80
        $region78: #{npi_forward_seq.1} parent=71 // pred_check_branch
          %553 = sbr.rel (%p551) target = $region80
        $region79: #{npi_forward_seq.1} parent=71 // pred_region
          %554 = dma.done [#allocation8], 1024
        $region80: #{npi_forward_seq.1} parent=71 // pred_fallthru
          _
        // Predicated region
        $region81: #{npi_forward_seq.1} parent=71 // pred_check
          %p555 = pneg %p101
        $region82: #{npi_forward_seq.1} parent=71 // pred_check_branch
          %557 = sbr.rel (%p555) target = $region84
        $region83: #{npi_forward_seq.1} parent=71 // pred_region
          %558 = dma.done [#allocation8], 1024
        $region84: #{npi_forward_seq.1} parent=71 // pred_fallthru
          _
        // Predicated region
        $region85: #{npi_forward_seq.1} parent=71 // pred_check
          %p559 = pneg %p122
        $region86: #{npi_forward_seq.1} parent=71 // pred_check_branch
          %561 = sbr.rel (%p559) target = $region88
        $region87: #{npi_forward_seq.1} parent=71 // pred_region
          %562 = dma.done [#allocation11], 8192
        $region88: #{npi_forward_seq.1} parent=71 // pred_fallthru
          _
        // Predicated region
        $region89: #{npi_forward_seq.1} parent=71 // pred_check
          %p563 = pneg %p143
        $region90: #{npi_forward_seq.1} parent=71 // pred_check_branch
          %565 = sbr.rel (%p563) target = $region92
        $region91: #{npi_forward_seq.1} parent=71 // pred_region
          %566 = dma.done [#allocation11], 16384
        $region92: #{npi_forward_seq.1} parent=71 // pred_fallthru
          _
        // Predicated region
        $region93: #{npi_forward_seq.1} parent=71 // pred_check
          %p567 = pneg %p185
        $region94: #{npi_forward_seq.1} parent=71 // pred_check_branch
          %569 = sbr.rel (%p567) target = $region96
        $region95: #{npi_forward_seq.1} parent=71 // pred_region
          %570 = dma.done [#allocation14], 16384
        $region96: #{npi_forward_seq.1} parent=71 // pred_fallthru
          _
        // Predicated region
        $region97: #{npi_forward_seq.1} parent=71 // pred_check
          %p571 = pneg %p206
        $region98: #{npi_forward_seq.1} parent=71 // pred_check_branch
          %573 = sbr.rel (%p571) target = $region100
        $region99: #{npi_forward_seq.1} parent=71 // pred_region
          %574 = dma.done [#allocation14], 16384
        $region100: #{npi_forward_seq.1} parent=71 // pred_fallthru
          _
        // Predicated region
        $region101: #{npi_forward_seq.1} parent=71 // pred_check
          %p575 = pneg %p248
        $region102: #{npi_forward_seq.1} parent=71 // pred_check_branch
          %577 = sbr.rel (%p575) target = $region104
        $region103: #{npi_forward_seq.1} parent=71 // pred_region
          %578 = dma.done [#allocation17], 4096
        $region104: #{npi_forward_seq.1} parent=71 // pred_fallthru
          _
        // Predicated region
        $region105: #{npi_forward_seq.1} parent=71 // pred_check
          %p579 = pneg %p290
        $region106: #{npi_forward_seq.1} parent=71 // pred_check_branch
          %581 = sbr.rel (%p579) target = $region108
        $region107: #{npi_forward_seq.1} parent=71 // pred_region
          %582 = dma.done [#allocation17], 2048
        $region108: #{npi_forward_seq.1} parent=71 // pred_fallthru
          _
        %s583 = sand.u32 %s46, 1
        %s584 = scalar_lea.sflag [#allocation5], %s583
        %s585 = sand.u32 %s46, 1
        %s586 = smul.addr %s585, 8
        %s587 = scalar_lea.vmem [#allocation4], %s586
        %p588 = pneg %p59
        %p589 = pneg %p56
        %p590 = pneg %p80
        %p591 = pneg %p77
        %p592 = pneg %p101
        %p593 = pneg %p98
        %p594 = pneg %p122
        %p595 = pneg %p119
        %p596 = pneg %p143
        %p597 = pneg %p140
        %p598 = pneg %p164
        %p599 = pneg %p161
        %p600 = pneg %p185
        %p601 = pneg %p182
        %p602 = pneg %p206
        %p603 = pneg %p203
        %p604 = pneg %p227
        %p605 = pneg %p224
        %p606 = pneg %p248
        %p607 = pneg %p245
        %p608 = pneg %p269
        %p609 = pneg %p266
        %p610 = pneg %p290
        %p611 = pneg %p287
        %p612 = pneg %p311
        %p613 = pneg %p308
        %p614 = pneg %p337
        %p615 = pneg %p334
        %s616 = sand.u32 %s324, 1
        %s617 = scalar_lea.sflag [#allocation6], %s616
        %s618 = sand.u32 %s324, 1
        %s619 = smul.addr %s618, 16
        %s620 = scalar_lea.vmem [#allocation19], %s619
        %p621 = pneg %p358
        %p622 = pneg %p355
        %p623 = pneg %p379
        %p624 = pneg %p376
        %p626 = scmp.eq.s32.totalorder %s38, 0
        // Predicated region
        $region109: #{npi_forward_seq.1} parent=71 // pred_check
          %p627 = pneg %p626
        $region110: #{npi_forward_seq.1} parent=71 // pred_check_branch
          %629 = sbr.rel (%p627) target = $region112
        $region111: #{npi_forward_seq.1} parent=71 // pred_region
          %v630 = vld [vmem:[#allocation7] sm:$0xff]
          %v631 = vld [vmem:[#allocation7 + $0x8] sm:$0xff]
          %v632 = vld [vmem:[#allocation7 + $0x10] sm:$0xff]
          %v633 = vld [vmem:[#allocation7 + $0x18] sm:$0xff]
          %v634 = vld [vmem:[#allocation7 + $0x20] sm:$0xff]
          %v635 = vld [vmem:[#allocation7 + $0x28] sm:$0xff]
          %v636 = vld [vmem:[#allocation7 + $0x30] sm:$0xff]
          %v637 = vld [vmem:[#allocation7 + $0x38] sm:$0xff]
          %638 = vst [vmem:[#allocation2] sm:$0xff] %v630
          %639 = vst [vmem:[#allocation2 + $0x8] sm:$0xff] %v631
          %640 = vst [vmem:[#allocation2 + $0x10] sm:$0xff] %v632
          %641 = vst [vmem:[#allocation2 + $0x18] sm:$0xff] %v633
          %642 = vst [vmem:[#allocation2 + $0x20] sm:$0xff] %v634
          %643 = vst [vmem:[#allocation2 + $0x28] sm:$0xff] %v635
          %644 = vst [vmem:[#allocation2 + $0x30] sm:$0xff] %v636
          %645 = vst [vmem:[#allocation2 + $0x38] sm:$0xff] %v637
          %v646 = vld [vmem:[#allocation9] sm:$0xff]
          %v647 = vld [vmem:[#allocation9 + $0x8] sm:$0xff]
          %v648 = vld [vmem:[#allocation9 + $0x10] sm:$0xff]
          %v649 = vld [vmem:[#allocation9 + $0x18] sm:$0xff]
          %v650 = vld [vmem:[#allocation9 + $0x20] sm:$0xff]
          %v651 = vld [vmem:[#allocation9 + $0x28] sm:$0xff]
          %v652 = vld [vmem:[#allocation9 + $0x30] sm:$0xff]
          %v653 = vld [vmem:[#allocation9 + $0x38] sm:$0xff]
          %654 = vst [vmem:[#allocation3] sm:$0xff] %v646
          %655 = vst [vmem:[#allocation3 + $0x8] sm:$0xff] %v647
          %656 = vst [vmem:[#allocation3 + $0x10] sm:$0xff] %v648
          %657 = vst [vmem:[#allocation3 + $0x18] sm:$0xff] %v649
          %658 = vst [vmem:[#allocation3 + $0x20] sm:$0xff] %v650
          %659 = vst [vmem:[#allocation3 + $0x28] sm:$0xff] %v651
          %660 = vst [vmem:[#allocation3 + $0x30] sm:$0xff] %v652
          %661 = vst [vmem:[#allocation3 + $0x38] sm:$0xff] %v653
        $region112: #{npi_forward_seq.1} parent=71 // pred_fallthru
          _
        %v662 = vld [vmem:[%s546] sm:$0xf]
        %v663 = vld [vmem:[%s546 + $0x4] sm:$0xf]
        %v664 = vld [vmem:[#allocation2] sm:$0xff]
        %v665 = vld [vmem:[#allocation2 + $0x8] sm:$0xff]
        %v666 = vld [vmem:[#allocation2 + $0x10] sm:$0xff]
        %v667 = vld [vmem:[#allocation2 + $0x18] sm:$0xff]
        %v668 = vld [vmem:[#allocation3] sm:$0xff]
        %v669 = vld [vmem:[#allocation3 + $0x8] sm:$0xff]
        %v670 = vld [vmem:[#allocation3 + $0x10] sm:$0xff]
        %v671 = vld [vmem:[#allocation3 + $0x18] sm:$0xff]
        %v672 = vld [vmem:[#allocation10] sm:$0xff]
        %v673 = vld [vmem:[#allocation10 + $0x8] sm:$0xff]
        %v674 = vld [vmem:[#allocation10 + $0x10] sm:$0xff]
        %v675 = vld [vmem:[#allocation10 + $0x18] sm:$0xff]
        %v676 = vld [vmem:[#allocation10 + $0x20] sm:$0xff]
        %v677 = vld [vmem:[#allocation10 + $0x28] sm:$0xff]
        %v678 = vld [vmem:[#allocation10 + $0x30] sm:$0xff]
        %v679 = vld [vmem:[#allocation10 + $0x38] sm:$0xff]
        %v680 = vld [vmem:[#allocation10 + $0x40] sm:$0xff]
        %v681 = vld [vmem:[#allocation10 + $0x48] sm:$0xff]
        %v682 = vld [vmem:[#allocation10 + $0x50] sm:$0xff]
        %v683 = vld [vmem:[#allocation10 + $0x58] sm:$0xff]
        %v684 = vld [vmem:[#allocation10 + $0x60] sm:$0xff]
        %v685 = vld [vmem:[#allocation10 + $0x68] sm:$0xff]
        %v686 = vld [vmem:[#allocation10 + $0x70] sm:$0xff]
        %v687 = vld [vmem:[#allocation10 + $0x78] sm:$0xff]
        %v688 = vld [vmem:[#allocation10 + $0x80] sm:$0xff]
        %v689 = vld [vmem:[#allocation10 + $0x88] sm:$0xff]
        %v690 = vld [vmem:[#allocation10 + $0x90] sm:$0xff]
        %v691 = vld [vmem:[#allocation10 + $0x98] sm:$0xff]
        %v692 = vld [vmem:[#allocation10 + $0xa0] sm:$0xff]
        %v693 = vld [vmem:[#allocation10 + $0xa8] sm:$0xff]
        %v694 = vld [vmem:[#allocation10 + $0xb0] sm:$0xff]
        %v695 = vld [vmem:[#allocation10 + $0xb8] sm:$0xff]
        %v696 = vld [vmem:[#allocation10 + $0xc0] sm:$0xff]
        %v697 = vld [vmem:[#allocation10 + $0xc8] sm:$0xff]
        %v698 = vld [vmem:[#allocation10 + $0xd0] sm:$0xff]
        %v699 = vld [vmem:[#allocation10 + $0xd8] sm:$0xff]
        %v700 = vld [vmem:[#allocation10 + $0xe0] sm:$0xff]
        %v701 = vld [vmem:[#allocation10 + $0xe8] sm:$0xff]
        %v702 = vld [vmem:[#allocation10 + $0xf0] sm:$0xff]
        %v703 = vld [vmem:[#allocation10 + $0xf8] sm:$0xff]
        %v704 = vld [vmem:[#allocation10 + $0x100] sm:$0xff]
        %v705 = vld [vmem:[#allocation10 + $0x108] sm:$0xff]
        %v706 = vld [vmem:[#allocation10 + $0x110] sm:$0xff]
        %v707 = vld [vmem:[#allocation10 + $0x118] sm:$0xff]
        %v708 = vld [vmem:[#allocation10 + $0x120] sm:$0xff]
        %v709 = vld [vmem:[#allocation10 + $0x128] sm:$0xff]
        %v710 = vld [vmem:[#allocation10 + $0x130] sm:$0xff]
        %v711 = vld [vmem:[#allocation10 + $0x138] sm:$0xff]
        %v712 = vld [vmem:[#allocation10 + $0x140] sm:$0xff]
        %v713 = vld [vmem:[#allocation10 + $0x148] sm:$0xff]
        %v714 = vld [vmem:[#allocation10 + $0x150] sm:$0xff]
        %v715 = vld [vmem:[#allocation10 + $0x158] sm:$0xff]
        %v716 = vld [vmem:[#allocation10 + $0x160] sm:$0xff]
        %v717 = vld [vmem:[#allocation10 + $0x168] sm:$0xff]
        %v718 = vld [vmem:[#allocation10 + $0x170] sm:$0xff]
        %v719 = vld [vmem:[#allocation10 + $0x178] sm:$0xff]
        %v720 = vld [vmem:[#allocation10 + $0x180] sm:$0xff]
        %v721 = vld [vmem:[#allocation10 + $0x188] sm:$0xff]
        %v722 = vld [vmem:[#allocation10 + $0x190] sm:$0xff]
        %v723 = vld [vmem:[#allocation10 + $0x198] sm:$0xff]
        %v724 = vld [vmem:[#allocation10 + $0x1a0] sm:$0xff]
        %v725 = vld [vmem:[#allocation10 + $0x1a8] sm:$0xff]
        %v726 = vld [vmem:[#allocation10 + $0x1b0] sm:$0xff]
        %v727 = vld [vmem:[#allocation10 + $0x1b8] sm:$0xff]
        %v728 = vld [vmem:[#allocation10 + $0x1c0] sm:$0xff]
        %v729 = vld [vmem:[#allocation10 + $0x1c8] sm:$0xff]
        %v730 = vld [vmem:[#allocation10 + $0x1d0] sm:$0xff]
        %v731 = vld [vmem:[#allocation10 + $0x1d8] sm:$0xff]
        %v732 = vld [vmem:[#allocation10 + $0x1e0] sm:$0xff]
        %v733 = vld [vmem:[#allocation10 + $0x1e8] sm:$0xff]
        %v734 = vld [vmem:[#allocation10 + $0x1f0] sm:$0xff]
        %v735 = vld [vmem:[#allocation10 + $0x1f8] sm:$0xff]
        %v736 = vpack.c.bf16 %v666, %v664
        %v737 = vpack.c.bf16 %v667, %v665
        %v738 = vld [vmem:[#allocation12] sm:$0xff]
        %v739 = vld [vmem:[#allocation12 + $0x8] sm:$0xff]
        %v740 = vld [vmem:[#allocation12 + $0x10] sm:$0xff]
        %v741 = vld [vmem:[#allocation12 + $0x18] sm:$0xff]
        %v742 = vld [vmem:[#allocation12 + $0x20] sm:$0xff]
        %v743 = vld [vmem:[#allocation12 + $0x28] sm:$0xff]
        %v744 = vld [vmem:[#allocation12 + $0x30] sm:$0xff]
        %v745 = vld [vmem:[#allocation12 + $0x38] sm:$0xff]
        %v746 = vld [vmem:[#allocation12 + $0x40] sm:$0xff]
        %v747 = vld [vmem:[#allocation12 + $0x48] sm:$0xff]
        %v748 = vld [vmem:[#allocation12 + $0x50] sm:$0xff]
        %v749 = vld [vmem:[#allocation12 + $0x58] sm:$0xff]
        %v750 = vld [vmem:[#allocation12 + $0x60] sm:$0xff]
        %v751 = vld [vmem:[#allocation12 + $0x68] sm:$0xff]
        %v752 = vld [vmem:[#allocation12 + $0x70] sm:$0xff]
        %v753 = vld [vmem:[#allocation12 + $0x78] sm:$0xff]
        %v754 = vld [vmem:[#allocation12 + $0x80] sm:$0xff]
        %v755 = vld [vmem:[#allocation12 + $0x88] sm:$0xff]
        %v756 = vld [vmem:[#allocation12 + $0x90] sm:$0xff]
        %v757 = vld [vmem:[#allocation12 + $0x98] sm:$0xff]
        %v758 = vld [vmem:[#allocation12 + $0xa0] sm:$0xff]
        %v759 = vld [vmem:[#allocation12 + $0xa8] sm:$0xff]
        %v760 = vld [vmem:[#allocation12 + $0xb0] sm:$0xff]
        %v761 = vld [vmem:[#allocation12 + $0xb8] sm:$0xff]
        %v762 = vld [vmem:[#allocation12 + $0xc0] sm:$0xff]
        %v763 = vld [vmem:[#allocation12 + $0xc8] sm:$0xff]
        %v764 = vld [vmem:[#allocation12 + $0xd0] sm:$0xff]
        %v765 = vld [vmem:[#allocation12 + $0xd8] sm:$0xff]
        %v766 = vld [vmem:[#allocation12 + $0xe0] sm:$0xff]
        %v767 = vld [vmem:[#allocation12 + $0xe8] sm:$0xff]
        %v768 = vld [vmem:[#allocation12 + $0xf0] sm:$0xff]
        %v769 = vld [vmem:[#allocation12 + $0xf8] sm:$0xff]
        %v770 = vld [vmem:[#allocation12 + $0x100] sm:$0xff]
        %v771 = vld [vmem:[#allocation12 + $0x108] sm:$0xff]
        %v772 = vld [vmem:[#allocation12 + $0x110] sm:$0xff]
        %v773 = vld [vmem:[#allocation12 + $0x118] sm:$0xff]
        %v774 = vld [vmem:[#allocation12 + $0x120] sm:$0xff]
        %v775 = vld [vmem:[#allocation12 + $0x128] sm:$0xff]
        %v776 = vld [vmem:[#allocation12 + $0x130] sm:$0xff]
        %v777 = vld [vmem:[#allocation12 + $0x138] sm:$0xff]
        %v778 = vld [vmem:[#allocation12 + $0x140] sm:$0xff]
        %v779 = vld [vmem:[#allocation12 + $0x148] sm:$0xff]
        %v780 = vld [vmem:[#allocation12 + $0x150] sm:$0xff]
        %v781 = vld [vmem:[#allocation12 + $0x158] sm:$0xff]
        %v782 = vld [vmem:[#allocation12 + $0x160] sm:$0xff]
        %v783 = vld [vmem:[#allocation12 + $0x168] sm:$0xff]
        %v784 = vld [vmem:[#allocation12 + $0x170] sm:$0xff]
        %v785 = vld [vmem:[#allocation12 + $0x178] sm:$0xff]
        %v786 = vld [vmem:[#allocation12 + $0x180] sm:$0xff]
        %v787 = vld [vmem:[#allocation12 + $0x188] sm:$0xff]
        %v788 = vld [vmem:[#allocation12 + $0x190] sm:$0xff]
        %v789 = vld [vmem:[#allocation12 + $0x198] sm:$0xff]
        %v790 = vld [vmem:[#allocation12 + $0x1a0] sm:$0xff]
        %v791 = vld [vmem:[#allocation12 + $0x1a8] sm:$0xff]
        %v792 = vld [vmem:[#allocation12 + $0x1b0] sm:$0xff]
        %v793 = vld [vmem:[#allocation12 + $0x1b8] sm:$0xff]
        %v794 = vld [vmem:[#allocation12 + $0x1c0] sm:$0xff]
        %v795 = vld [vmem:[#allocation12 + $0x1c8] sm:$0xff]
        %v796 = vld [vmem:[#allocation12 + $0x1d0] sm:$0xff]
        %v797 = vld [vmem:[#allocation12 + $0x1d8] sm:$0xff]
        %v798 = vld [vmem:[#allocation12 + $0x1e0] sm:$0xff]
        %v799 = vld [vmem:[#allocation12 + $0x1e8] sm:$0xff]
        %v800 = vld [vmem:[#allocation12 + $0x1f0] sm:$0xff]
        %v801 = vld [vmem:[#allocation12 + $0x1f8] sm:$0xff]
        %v802 = vld [vmem:[#allocation12 + $0x200] sm:$0xff]
        %v803 = vld [vmem:[#allocation12 + $0x208] sm:$0xff]
        %v804 = vld [vmem:[#allocation12 + $0x210] sm:$0xff]
        %v805 = vld [vmem:[#allocation12 + $0x218] sm:$0xff]
        %v806 = vld [vmem:[#allocation12 + $0x220] sm:$0xff]
        %v807 = vld [vmem:[#allocation12 + $0x228] sm:$0xff]
        %v808 = vld [vmem:[#allocation12 + $0x230] sm:$0xff]
        %v809 = vld [vmem:[#allocation12 + $0x238] sm:$0xff]
        %v810 = vld [vmem:[#allocation12 + $0x240] sm:$0xff]
        %v811 = vld [vmem:[#allocation12 + $0x248] sm:$0xff]
        %v812 = vld [vmem:[#allocation12 + $0x250] sm:$0xff]
        %v813 = vld [vmem:[#allocation12 + $0x258] sm:$0xff]
        %v814 = vld [vmem:[#allocation12 + $0x260] sm:$0xff]
        %v815 = vld [vmem:[#allocation12 + $0x268] sm:$0xff]
        %v816 = vld [vmem:[#allocation12 + $0x270] sm:$0xff]
        %v817 = vld [vmem:[#allocation12 + $0x278] sm:$0xff]
        %v818 = vld [vmem:[#allocation12 + $0x280] sm:$0xff]
        %v819 = vld [vmem:[#allocation12 + $0x288] sm:$0xff]
        %v820 = vld [vmem:[#allocation12 + $0x290] sm:$0xff]
        %v821 = vld [vmem:[#allocation12 + $0x298] sm:$0xff]
        %v822 = vld [vmem:[#allocation12 + $0x2a0] sm:$0xff]
        %v823 = vld [vmem:[#allocation12 + $0x2a8] sm:$0xff]
        %v824 = vld [vmem:[#allocation12 + $0x2b0] sm:$0xff]
        %v825 = vld [vmem:[#allocation12 + $0x2b8] sm:$0xff]
        %v826 = vld [vmem:[#allocation12 + $0x2c0] sm:$0xff]
        %v827 = vld [vmem:[#allocation12 + $0x2c8] sm:$0xff]
        %v828 = vld [vmem:[#allocation12 + $0x2d0] sm:$0xff]
        %v829 = vld [vmem:[#allocation12 + $0x2d8] sm:$0xff]
        %v830 = vld [vmem:[#allocation12 + $0x2e0] sm:$0xff]
        %v831 = vld [vmem:[#allocation12 + $0x2e8] sm:$0xff]
        %v832 = vld [vmem:[#allocation12 + $0x2f0] sm:$0xff]
        %v833 = vld [vmem:[#allocation12 + $0x2f8] sm:$0xff]
        %v834 = vld [vmem:[#allocation12 + $0x300] sm:$0xff]
        %v835 = vld [vmem:[#allocation12 + $0x308] sm:$0xff]
        %v836 = vld [vmem:[#allocation12 + $0x310] sm:$0xff]
        %v837 = vld [vmem:[#allocation12 + $0x318] sm:$0xff]
        %v838 = vld [vmem:[#allocation12 + $0x320] sm:$0xff]
        %v839 = vld [vmem:[#allocation12 + $0x328] sm:$0xff]
        %v840 = vld [vmem:[#allocation12 + $0x330] sm:$0xff]
        %v841 = vld [vmem:[#allocation12 + $0x338] sm:$0xff]
        %v842 = vld [vmem:[#allocation12 + $0x340] sm:$0xff]
        %v843 = vld [vmem:[#allocation12 + $0x348] sm:$0xff]
        %v844 = vld [vmem:[#allocation12 + $0x350] sm:$0xff]
        %v845 = vld [vmem:[#allocation12 + $0x358] sm:$0xff]
        %v846 = vld [vmem:[#allocation12 + $0x360] sm:$0xff]
        %v847 = vld [vmem:[#allocation12 + $0x368] sm:$0xff]
        %v848 = vld [vmem:[#allocation12 + $0x370] sm:$0xff]
        %v849 = vld [vmem:[#allocation12 + $0x378] sm:$0xff]
        %v850 = vld [vmem:[#allocation12 + $0x380] sm:$0xff]
        %v851 = vld [vmem:[#allocation12 + $0x388] sm:$0xff]
        %v852 = vld [vmem:[#allocation12 + $0x390] sm:$0xff]
        %v853 = vld [vmem:[#allocation12 + $0x398] sm:$0xff]
        %v854 = vld [vmem:[#allocation12 + $0x3a0] sm:$0xff]
        %v855 = vld [vmem:[#allocation12 + $0x3a8] sm:$0xff]
        %v856 = vld [vmem:[#allocation12 + $0x3b0] sm:$0xff]
        %v857 = vld [vmem:[#allocation12 + $0x3b8] sm:$0xff]
        %v858 = vld [vmem:[#allocation12 + $0x3c0] sm:$0xff]
        %v859 = vld [vmem:[#allocation12 + $0x3c8] sm:$0xff]
        %v860 = vld [vmem:[#allocation12 + $0x3d0] sm:$0xff]
        %v861 = vld [vmem:[#allocation12 + $0x3d8] sm:$0xff]
        %v862 = vld [vmem:[#allocation12 + $0x3e0] sm:$0xff]
        %v863 = vld [vmem:[#allocation12 + $0x3e8] sm:$0xff]
        %v864 = vld [vmem:[#allocation12 + $0x3f0] sm:$0xff]
        %v865 = vld [vmem:[#allocation12 + $0x3f8] sm:$0xff]
        %v994 = vunpack.c.l.b16 %v738
        %v995 = vunpack.c.h.b16 %v738
        %v996 = vunpack.c.l.b16 %v739
        %v997 = vunpack.c.h.b16 %v739
        %v998 = vunpack.c.l.b16 %v740
        %v999 = vunpack.c.h.b16 %v740
        %v1000 = vunpack.c.l.b16 %v741
        %v1001 = vunpack.c.h.b16 %v741
        %v1002 = vunpack.c.l.b16 %v742
        %v1003 = vunpack.c.h.b16 %v742
        %v1004 = vunpack.c.l.b16 %v743
        %v1005 = vunpack.c.h.b16 %v743
        %v1006 = vunpack.c.l.b16 %v744
        %v1007 = vunpack.c.h.b16 %v744
        %v1008 = vunpack.c.l.b16 %v745
        %v1009 = vunpack.c.h.b16 %v745
        %v1010 = vunpack.c.l.b16 %v746
        %v1011 = vunpack.c.h.b16 %v746
        %v1012 = vunpack.c.l.b16 %v747
        %v1013 = vunpack.c.h.b16 %v747
        %v1014 = vunpack.c.l.b16 %v748
        %v1015 = vunpack.c.h.b16 %v748
        %v1016 = vunpack.c.l.b16 %v749
        %v1017 = vunpack.c.h.b16 %v749
        %v1018 = vunpack.c.l.b16 %v750
        %v1019 = vunpack.c.h.b16 %v750
        %v1020 = vunpack.c.l.b16 %v751
        %v1021 = vunpack.c.h.b16 %v751
        %v1022 = vunpack.c.l.b16 %v752
        %v1023 = vunpack.c.h.b16 %v752
        %v1024 = vunpack.c.l.b16 %v753
        %v1025 = vunpack.c.h.b16 %v753
        %v1026 = vunpack.c.l.b16 %v754
        %v1027 = vunpack.c.h.b16 %v754
        %v1028 = vunpack.c.l.b16 %v755
        %v1029 = vunpack.c.h.b16 %v755
        %v1030 = vunpack.c.l.b16 %v756
        %v1031 = vunpack.c.h.b16 %v756
        %v1032 = vunpack.c.l.b16 %v757
        %v1033 = vunpack.c.h.b16 %v757
        %v1034 = vunpack.c.l.b16 %v758
        %v1035 = vunpack.c.h.b16 %v758
        %v1036 = vunpack.c.l.b16 %v759
        %v1037 = vunpack.c.h.b16 %v759
        %v1038 = vunpack.c.l.b16 %v760
        %v1039 = vunpack.c.h.b16 %v760
        %v1040 = vunpack.c.l.b16 %v761
        %v1041 = vunpack.c.h.b16 %v761
        %v1042 = vunpack.c.l.b16 %v762
        %v1043 = vunpack.c.h.b16 %v762
        %v1044 = vunpack.c.l.b16 %v763
        %v1045 = vunpack.c.h.b16 %v763
        %v1046 = vunpack.c.l.b16 %v764
        %v1047 = vunpack.c.h.b16 %v764
        %v1048 = vunpack.c.l.b16 %v765
        %v1049 = vunpack.c.h.b16 %v765
        %v1050 = vunpack.c.l.b16 %v766
        %v1051 = vunpack.c.h.b16 %v766
        %v1052 = vunpack.c.l.b16 %v767
        %v1053 = vunpack.c.h.b16 %v767
        %v1054 = vunpack.c.l.b16 %v768
        %v1055 = vunpack.c.h.b16 %v768
        %v1056 = vunpack.c.l.b16 %v769
        %v1057 = vunpack.c.h.b16 %v769
        %v1058 = vunpack.c.l.b16 %v770
        %v1059 = vunpack.c.h.b16 %v770
        %v1060 = vunpack.c.l.b16 %v771
        %v1061 = vunpack.c.h.b16 %v771
        %v1062 = vunpack.c.l.b16 %v772
        %v1063 = vunpack.c.h.b16 %v772
        %v1064 = vunpack.c.l.b16 %v773
        %v1065 = vunpack.c.h.b16 %v773
        %v1066 = vunpack.c.l.b16 %v774
        %v1067 = vunpack.c.h.b16 %v774
        %v1068 = vunpack.c.l.b16 %v775
        %v1069 = vunpack.c.h.b16 %v775
        %v1070 = vunpack.c.l.b16 %v776
        %v1071 = vunpack.c.h.b16 %v776
        %v1072 = vunpack.c.l.b16 %v777
        %v1073 = vunpack.c.h.b16 %v777
        %v1074 = vunpack.c.l.b16 %v778
        %v1075 = vunpack.c.h.b16 %v778
        %v1076 = vunpack.c.l.b16 %v779
        %v1077 = vunpack.c.h.b16 %v779
        %v1078 = vunpack.c.l.b16 %v780
        %v1079 = vunpack.c.h.b16 %v780
        %v1080 = vunpack.c.l.b16 %v781
        %v1081 = vunpack.c.h.b16 %v781
        %v1082 = vunpack.c.l.b16 %v782
        %v1083 = vunpack.c.h.b16 %v782
        %v1084 = vunpack.c.l.b16 %v783
        %v1085 = vunpack.c.h.b16 %v783
        %v1086 = vunpack.c.l.b16 %v784
        %v1087 = vunpack.c.h.b16 %v784
        %v1088 = vunpack.c.l.b16 %v785
        %v1089 = vunpack.c.h.b16 %v785
        %v1090 = vunpack.c.l.b16 %v786
        %v1091 = vunpack.c.h.b16 %v786
        %v1092 = vunpack.c.l.b16 %v787
        %v1093 = vunpack.c.h.b16 %v787
        %v1094 = vunpack.c.l.b16 %v788
        %v1095 = vunpack.c.h.b16 %v788
        %v1096 = vunpack.c.l.b16 %v789
        %v1097 = vunpack.c.h.b16 %v789
        %v1098 = vunpack.c.l.b16 %v790
        %v1099 = vunpack.c.h.b16 %v790
        %v1100 = vunpack.c.l.b16 %v791
        %v1101 = vunpack.c.h.b16 %v791
        %v1102 = vunpack.c.l.b16 %v792
        %v1103 = vunpack.c.h.b16 %v792
        %v1104 = vunpack.c.l.b16 %v793
        %v1105 = vunpack.c.h.b16 %v793
        %v1106 = vunpack.c.l.b16 %v794
        %v1107 = vunpack.c.h.b16 %v794
        %v1108 = vunpack.c.l.b16 %v795
        %v1109 = vunpack.c.h.b16 %v795
        %v1110 = vunpack.c.l.b16 %v796
        %v1111 = vunpack.c.h.b16 %v796
        %v1112 = vunpack.c.l.b16 %v797
        %v1113 = vunpack.c.h.b16 %v797
        %v1114 = vunpack.c.l.b16 %v798
        %v1115 = vunpack.c.h.b16 %v798
        %v1116 = vunpack.c.l.b16 %v799
        %v1117 = vunpack.c.h.b16 %v799
        %v1118 = vunpack.c.l.b16 %v800
        %v1119 = vunpack.c.h.b16 %v800
        %v1120 = vunpack.c.l.b16 %v801
        %v1121 = vunpack.c.h.b16 %v801
        %v1122 = vunpack.c.l.b16 %v802
        %v1123 = vunpack.c.h.b16 %v802
        %v1124 = vunpack.c.l.b16 %v803
        %v1125 = vunpack.c.h.b16 %v803
        %v1126 = vunpack.c.l.b16 %v804
        %v1127 = vunpack.c.h.b16 %v804
        %v1128 = vunpack.c.l.b16 %v805
        %v1129 = vunpack.c.h.b16 %v805
        %v1130 = vunpack.c.l.b16 %v806
        %v1131 = vunpack.c.h.b16 %v806
        %v1132 = vunpack.c.l.b16 %v807
        %v1133 = vunpack.c.h.b16 %v807
        %v1134 = vunpack.c.l.b16 %v808
        %v1135 = vunpack.c.h.b16 %v808
        %v1136 = vunpack.c.l.b16 %v809
        %v1137 = vunpack.c.h.b16 %v809
        %v1138 = vunpack.c.l.b16 %v810
        %v1139 = vunpack.c.h.b16 %v810
        %v1140 = vunpack.c.l.b16 %v811
        %v1141 = vunpack.c.h.b16 %v811
        %v1142 = vunpack.c.l.b16 %v812
        %v1143 = vunpack.c.h.b16 %v812
        %v1144 = vunpack.c.l.b16 %v813
        %v1145 = vunpack.c.h.b16 %v813
        %v1146 = vunpack.c.l.b16 %v814
        %v1147 = vunpack.c.h.b16 %v814
        %v1148 = vunpack.c.l.b16 %v815
        %v1149 = vunpack.c.h.b16 %v815
        %v1150 = vunpack.c.l.b16 %v816
        %v1151 = vunpack.c.h.b16 %v816
        %v1152 = vunpack.c.l.b16 %v817
        %v1153 = vunpack.c.h.b16 %v817
        %v1154 = vunpack.c.l.b16 %v818
        %v1155 = vunpack.c.h.b16 %v818
        %v1156 = vunpack.c.l.b16 %v819
        %v1157 = vunpack.c.h.b16 %v819
        %v1158 = vunpack.c.l.b16 %v820
        %v1159 = vunpack.c.h.b16 %v820
        %v1160 = vunpack.c.l.b16 %v821
        %v1161 = vunpack.c.h.b16 %v821
        %v1162 = vunpack.c.l.b16 %v822
        %v1163 = vunpack.c.h.b16 %v822
        %v1164 = vunpack.c.l.b16 %v823
        %v1165 = vunpack.c.h.b16 %v823
        %v1166 = vunpack.c.l.b16 %v824
        %v1167 = vunpack.c.h.b16 %v824
        %v1168 = vunpack.c.l.b16 %v825
        %v1169 = vunpack.c.h.b16 %v825
        %v1170 = vunpack.c.l.b16 %v826
        %v1171 = vunpack.c.h.b16 %v826
        %v1172 = vunpack.c.l.b16 %v827
        %v1173 = vunpack.c.h.b16 %v827
        %v1174 = vunpack.c.l.b16 %v828
        %v1175 = vunpack.c.h.b16 %v828
        %v1176 = vunpack.c.l.b16 %v829
        %v1177 = vunpack.c.h.b16 %v829
        %v1178 = vunpack.c.l.b16 %v830
        %v1179 = vunpack.c.h.b16 %v830
        %v1180 = vunpack.c.l.b16 %v831
        %v1181 = vunpack.c.h.b16 %v831
        %v1182 = vunpack.c.l.b16 %v832
        %v1183 = vunpack.c.h.b16 %v832
        %v1184 = vunpack.c.l.b16 %v833
        %v1185 = vunpack.c.h.b16 %v833
        %v1186 = vunpack.c.l.b16 %v834
        %v1187 = vunpack.c.h.b16 %v834
        %v1188 = vunpack.c.l.b16 %v835
        %v1189 = vunpack.c.h.b16 %v835
        %v1190 = vunpack.c.l.b16 %v836
        %v1191 = vunpack.c.h.b16 %v836
        %v1192 = vunpack.c.l.b16 %v837
        %v1193 = vunpack.c.h.b16 %v837
        %v1194 = vunpack.c.l.b16 %v838
        %v1195 = vunpack.c.h.b16 %v838
        %v1196 = vunpack.c.l.b16 %v839
        %v1197 = vunpack.c.h.b16 %v839
        %v1198 = vunpack.c.l.b16 %v840
        %v1199 = vunpack.c.h.b16 %v840
        %v1200 = vunpack.c.l.b16 %v841
        %v1201 = vunpack.c.h.b16 %v841
        %v1202 = vunpack.c.l.b16 %v842
        %v1203 = vunpack.c.h.b16 %v842
        %v1204 = vunpack.c.l.b16 %v843
        %v1205 = vunpack.c.h.b16 %v843
        %v1206 = vunpack.c.l.b16 %v844
        %v1207 = vunpack.c.h.b16 %v844
        %v1208 = vunpack.c.l.b16 %v845
        %v1209 = vunpack.c.h.b16 %v845
        %v1210 = vunpack.c.l.b16 %v846
        %v1211 = vunpack.c.h.b16 %v846
        %v1212 = vunpack.c.l.b16 %v847
        %v1213 = vunpack.c.h.b16 %v847
        %v1214 = vunpack.c.l.b16 %v848
        %v1215 = vunpack.c.h.b16 %v848
        %v1216 = vunpack.c.l.b16 %v849
        %v1217 = vunpack.c.h.b16 %v849
        %v1218 = vunpack.c.l.b16 %v850
        %v1219 = vunpack.c.h.b16 %v850
        %v1220 = vunpack.c.l.b16 %v851
        %v1221 = vunpack.c.h.b16 %v851
        %v1222 = vunpack.c.l.b16 %v852
        %v1223 = vunpack.c.h.b16 %v852
        %v1224 = vunpack.c.l.b16 %v853
        %v1225 = vunpack.c.h.b16 %v853
        %v1226 = vunpack.c.l.b16 %v854
        %v1227 = vunpack.c.h.b16 %v854
        %v1228 = vunpack.c.l.b16 %v855
        %v1229 = vunpack.c.h.b16 %v855
        %v1230 = vunpack.c.l.b16 %v856
        %v1231 = vunpack.c.h.b16 %v856
        %v1232 = vunpack.c.l.b16 %v857
        %v1233 = vunpack.c.h.b16 %v857
        %v1234 = vunpack.c.l.b16 %v858
        %v1235 = vunpack.c.h.b16 %v858
        %v1236 = vunpack.c.l.b16 %v859
        %v1237 = vunpack.c.h.b16 %v859
        %v1238 = vunpack.c.l.b16 %v860
        %v1239 = vunpack.c.h.b16 %v860
        %v1240 = vunpack.c.l.b16 %v861
        %v1241 = vunpack.c.h.b16 %v861
        %v1242 = vunpack.c.l.b16 %v862
        %v1243 = vunpack.c.h.b16 %v862
        %v1244 = vunpack.c.l.b16 %v863
        %v1245 = vunpack.c.h.b16 %v863
        %v1246 = vunpack.c.l.b16 %v864
        %v1247 = vunpack.c.h.b16 %v864
        %v1248 = vunpack.c.l.b16 %v865
        %v1249 = vunpack.c.h.b16 %v865
        %v1250 = vpack.c.b16 %v1002, %v994
        %v1251 = vpack.c.b16 %v1003, %v995
        %v1252 = vpack.c.b16 %v1004, %v996
        %v1253 = vpack.c.b16 %v1005, %v997
        %v1254 = vpack.c.b16 %v1006, %v998
        %v1255 = vpack.c.b16 %v1007, %v999
        %v1256 = vpack.c.b16 %v1008, %v1000
        %v1257 = vpack.c.b16 %v1009, %v1001
        %v1258 = vpack.c.b16 %v1018, %v1010
        %v1259 = vpack.c.b16 %v1019, %v1011
        %v1260 = vpack.c.b16 %v1020, %v1012
        %v1261 = vpack.c.b16 %v1021, %v1013
        %v1262 = vpack.c.b16 %v1022, %v1014
        %v1263 = vpack.c.b16 %v1023, %v1015
        %v1264 = vpack.c.b16 %v1024, %v1016
        %v1265 = vpack.c.b16 %v1025, %v1017
        %v1266 = vpack.c.b16 %v1034, %v1026
        %v1267 = vpack.c.b16 %v1035, %v1027
        %v1268 = vpack.c.b16 %v1036, %v1028
        %v1269 = vpack.c.b16 %v1037, %v1029
        %v1270 = vpack.c.b16 %v1038, %v1030
        %v1271 = vpack.c.b16 %v1039, %v1031
        %v1272 = vpack.c.b16 %v1040, %v1032
        %v1273 = vpack.c.b16 %v1041, %v1033
        %v1274 = vpack.c.b16 %v1050, %v1042
        %v1275 = vpack.c.b16 %v1051, %v1043
        %v1276 = vpack.c.b16 %v1052, %v1044
        %v1277 = vpack.c.b16 %v1053, %v1045
        %v1278 = vpack.c.b16 %v1054, %v1046
        %v1279 = vpack.c.b16 %v1055, %v1047
        %v1280 = vpack.c.b16 %v1056, %v1048
        %v1281 = vpack.c.b16 %v1057, %v1049
        %v1282 = vpack.c.b16 %v1066, %v1058
        %v1283 = vpack.c.b16 %v1067, %v1059
        %v1284 = vpack.c.b16 %v1068, %v1060
        %v1285 = vpack.c.b16 %v1069, %v1061
        %v1286 = vpack.c.b16 %v1070, %v1062
        %v1287 = vpack.c.b16 %v1071, %v1063
        %v1288 = vpack.c.b16 %v1072, %v1064
        %v1289 = vpack.c.b16 %v1073, %v1065
        %v1290 = vpack.c.b16 %v1082, %v1074
        %v1291 = vpack.c.b16 %v1083, %v1075
        %v1292 = vpack.c.b16 %v1084, %v1076
        %v1293 = vpack.c.b16 %v1085, %v1077
        %v1294 = vpack.c.b16 %v1086, %v1078
        %v1295 = vpack.c.b16 %v1087, %v1079
        %v1296 = vpack.c.b16 %v1088, %v1080
        %v1297 = vpack.c.b16 %v1089, %v1081
        %v1298 = vpack.c.b16 %v1098, %v1090
        %v1299 = vpack.c.b16 %v1099, %v1091
        %v1300 = vpack.c.b16 %v1100, %v1092
        %v1301 = vpack.c.b16 %v1101, %v1093
        %v1302 = vpack.c.b16 %v1102, %v1094
        %v1303 = vpack.c.b16 %v1103, %v1095
        %v1304 = vpack.c.b16 %v1104, %v1096
        %v1305 = vpack.c.b16 %v1105, %v1097
        %v1306 = vpack.c.b16 %v1114, %v1106
        %v1307 = vpack.c.b16 %v1115, %v1107
        %v1308 = vpack.c.b16 %v1116, %v1108
        %v1309 = vpack.c.b16 %v1117, %v1109
        %v1310 = vpack.c.b16 %v1118, %v1110
        %v1311 = vpack.c.b16 %v1119, %v1111
        %v1312 = vpack.c.b16 %v1120, %v1112
        %v1313 = vpack.c.b16 %v1121, %v1113
        %v1314 = vpack.c.b16 %v1130, %v1122
        %v1315 = vpack.c.b16 %v1131, %v1123
        %v1316 = vpack.c.b16 %v1132, %v1124
        %v1317 = vpack.c.b16 %v1133, %v1125
        %v1318 = vpack.c.b16 %v1134, %v1126
        %v1319 = vpack.c.b16 %v1135, %v1127
        %v1320 = vpack.c.b16 %v1136, %v1128
        %v1321 = vpack.c.b16 %v1137, %v1129
        %v1322 = vpack.c.b16 %v1146, %v1138
        %v1323 = vpack.c.b16 %v1147, %v1139
        %v1324 = vpack.c.b16 %v1148, %v1140
        %v1325 = vpack.c.b16 %v1149, %v1141
        %v1326 = vpack.c.b16 %v1150, %v1142
        %v1327 = vpack.c.b16 %v1151, %v1143
        %v1328 = vpack.c.b16 %v1152, %v1144
        %v1329 = vpack.c.b16 %v1153, %v1145
        %v1330 = vpack.c.b16 %v1162, %v1154
        %v1331 = vpack.c.b16 %v1163, %v1155
        %v1332 = vpack.c.b16 %v1164, %v1156
        %v1333 = vpack.c.b16 %v1165, %v1157
        %v1334 = vpack.c.b16 %v1166, %v1158
        %v1335 = vpack.c.b16 %v1167, %v1159
        %v1336 = vpack.c.b16 %v1168, %v1160
        %v1337 = vpack.c.b16 %v1169, %v1161
        %v1338 = vpack.c.b16 %v1178, %v1170
        %v1339 = vpack.c.b16 %v1179, %v1171
        %v1340 = vpack.c.b16 %v1180, %v1172
        %v1341 = vpack.c.b16 %v1181, %v1173
        %v1342 = vpack.c.b16 %v1182, %v1174
        %v1343 = vpack.c.b16 %v1183, %v1175
        %v1344 = vpack.c.b16 %v1184, %v1176
        %v1345 = vpack.c.b16 %v1185, %v1177
        %v1346 = vpack.c.b16 %v1194, %v1186
        %v1347 = vpack.c.b16 %v1195, %v1187
        %v1348 = vpack.c.b16 %v1196, %v1188
        %v1349 = vpack.c.b16 %v1197, %v1189
        %v1350 = vpack.c.b16 %v1198, %v1190
        %v1351 = vpack.c.b16 %v1199, %v1191
        %v1352 = vpack.c.b16 %v1200, %v1192
        %v1353 = vpack.c.b16 %v1201, %v1193
        %v1354 = vpack.c.b16 %v1210, %v1202
        %v1355 = vpack.c.b16 %v1211, %v1203
        %v1356 = vpack.c.b16 %v1212, %v1204
        %v1357 = vpack.c.b16 %v1213, %v1205
        %v1358 = vpack.c.b16 %v1214, %v1206
        %v1359 = vpack.c.b16 %v1215, %v1207
        %v1360 = vpack.c.b16 %v1216, %v1208
        %v1361 = vpack.c.b16 %v1217, %v1209
        %v1362 = vpack.c.b16 %v1226, %v1218
        %v1363 = vpack.c.b16 %v1227, %v1219
        %v1364 = vpack.c.b16 %v1228, %v1220
        %v1365 = vpack.c.b16 %v1229, %v1221
        %v1366 = vpack.c.b16 %v1230, %v1222
        %v1367 = vpack.c.b16 %v1231, %v1223
        %v1368 = vpack.c.b16 %v1232, %v1224
        %v1369 = vpack.c.b16 %v1233, %v1225
        %v1370 = vpack.c.b16 %v1242, %v1234
        %v1371 = vpack.c.b16 %v1243, %v1235
        %v1372 = vpack.c.b16 %v1244, %v1236
        %v1373 = vpack.c.b16 %v1245, %v1237
        %v1374 = vpack.c.b16 %v1246, %v1238
        %v1375 = vpack.c.b16 %v1247, %v1239
        %v1376 = vpack.c.b16 %v1248, %v1240
        %v1377 = vpack.c.b16 %v1249, %v1241
        %1506 = vmatprep.subr.bf16.mxu0 %v1251
        %1507 = vmatpush1.bf16.msra.mxu0 %v1250
        %1508 = vmatprep.subr.bf16.mxu0 %v1259
        %1509 = vmatpush1.bf16.msra.mxu0 %v1258
        %1510 = vmatprep.subr.bf16.mxu0 %v1267
        %1511 = vmatpush1.bf16.msra.mxu0 %v1266
        %1512 = vmatprep.subr.bf16.mxu0 %v1275
        %1513 = vmatpush1.bf16.msra.mxu0 %v1274
        %1514 = vmatprep.subr.bf16.mxu0 %v1283
        %1515 = vmatpush1.bf16.msra.mxu0 %v1282
        %1516 = vmatprep.subr.bf16.mxu0 %v1291
        %1517 = vmatpush1.bf16.msra.mxu0 %v1290
        %1518 = vmatprep.subr.bf16.mxu0 %v1299
        %1519 = vmatpush1.bf16.msra.mxu0 %v1298
        %1520 = vmatprep.subr.bf16.mxu0 %v1307
        %1521 = vmatpush1.bf16.msra.mxu0 %v1306
        %1522 = vmatprep.subr.bf16.mxu0 %v1315
        %1523 = vmatpush1.bf16.msra.mxu0 %v1314
        %1524 = vmatprep.subr.bf16.mxu0 %v1323
        %1525 = vmatpush1.bf16.msra.mxu0 %v1322
        %1526 = vmatprep.subr.bf16.mxu0 %v1331
        %1527 = vmatpush1.bf16.msra.mxu0 %v1330
        %1528 = vmatprep.subr.bf16.mxu0 %v1339
        %1529 = vmatpush1.bf16.msra.mxu0 %v1338
        %1530 = vmatprep.subr.bf16.mxu0 %v1347
        %1531 = vmatpush1.bf16.msra.mxu0 %v1346
        %1532 = vmatprep.subr.bf16.mxu0 %v1355
        %1533 = vmatpush1.bf16.msra.mxu0 %v1354
        %1534 = vmatprep.subr.bf16.mxu0 %v1363
        %1535 = vmatpush1.bf16.msra.mxu0 %v1362
        %1536 = vmatprep.subr.bf16.mxu0 %v1371
        %1537 = vmatpush1.bf16.msra.mxu0 %v1370
        %1538 = vmatprep.mubr.bf16.mxu0 %v737
        %1539 = vmatmul.mubr.bf16.gmra.mrb[0].mxu0 %v736
        %v1540 = vpop.f32.mrb[0].mxu0
        %v1541 = vadd.f32 0.0, %v1540
        %v1542 = vpop.f32.mrb[0].mxu0
        %v1543 = vadd.f32 0.0, %v1542
        %v1544 = vpop.f32.mrb[0].mxu0
        %v1545 = vadd.f32 0.0, %v1544
        %v1546 = vpop.f32.mrb[0].mxu0
        %v1547 = vadd.f32 0.0, %v1546
        %1548 = vdwg.mxu0
        %1549 = vmatprep.subr.bf16.mxu0 %v1253
        %1550 = vmatpush1.bf16.msra.mxu0 %v1252
        %1551 = vmatprep.subr.bf16.mxu0 %v1261
        %1552 = vmatpush1.bf16.msra.mxu0 %v1260
        %1553 = vmatprep.subr.bf16.mxu0 %v1269
        %1554 = vmatpush1.bf16.msra.mxu0 %v1268
        %1555 = vmatprep.subr.bf16.mxu0 %v1277
        %1556 = vmatpush1.bf16.msra.mxu0 %v1276
        %1557 = vmatprep.subr.bf16.mxu0 %v1285
        %1558 = vmatpush1.bf16.msra.mxu0 %v1284
        %1559 = vmatprep.subr.bf16.mxu0 %v1293
        %1560 = vmatpush1.bf16.msra.mxu0 %v1292
        %1561 = vmatprep.subr.bf16.mxu0 %v1301
        %1562 = vmatpush1.bf16.msra.mxu0 %v1300
        %1563 = vmatprep.subr.bf16.mxu0 %v1309
        %1564 = vmatpush1.bf16.msra.mxu0 %v1308
        %1565 = vmatprep.subr.bf16.mxu0 %v1317
        %1566 = vmatpush1.bf16.msra.mxu0 %v1316
        %1567 = vmatprep.subr.bf16.mxu0 %v1325
        %1568 = vmatpush1.bf16.msra.mxu0 %v1324
        %1569 = vmatprep.subr.bf16.mxu0 %v1333
        %1570 = vmatpush1.bf16.msra.mxu0 %v1332
        %1571 = vmatprep.subr.bf16.mxu0 %v1341
        %1572 = vmatpush1.bf16.msra.mxu0 %v1340
        %1573 = vmatprep.subr.bf16.mxu0 %v1349
        %1574 = vmatpush1.bf16.msra.mxu0 %v1348
        %1575 = vmatprep.subr.bf16.mxu0 %v1357
        %1576 = vmatpush1.bf16.msra.mxu0 %v1356
        %1577 = vmatprep.subr.bf16.mxu0 %v1365
        %1578 = vmatpush1.bf16.msra.mxu0 %v1364
        %1579 = vmatprep.subr.bf16.mxu0 %v1373
        %1580 = vmatpush1.bf16.msra.mxu0 %v1372
        %1581 = vmatprep.mubr.bf16.mxu0 %v737
        %1582 = vmatmul.mubr.bf16.gmra.mrb[0].mxu0 %v736
        %v1583 = vpop.f32.mrb[0].mxu0
        %v1584 = vadd.f32 0.0, %v1583
        %v1585 = vpop.f32.mrb[0].mxu0
        %v1586 = vadd.f32 0.0, %v1585
        %v1587 = vpop.f32.mrb[0].mxu0
        %v1588 = vadd.f32 0.0, %v1587
        %v1589 = vpop.f32.mrb[0].mxu0
        %v1590 = vadd.f32 0.0, %v1589
        %1591 = vdwg.mxu0
        %1592 = vmatprep.subr.bf16.mxu0 %v1255
        %1593 = vmatpush1.bf16.msra.mxu0 %v1254
        %1594 = vmatprep.subr.bf16.mxu0 %v1263
        %1595 = vmatpush1.bf16.msra.mxu0 %v1262
        %1596 = vmatprep.subr.bf16.mxu0 %v1271
        %1597 = vmatpush1.bf16.msra.mxu0 %v1270
        %1598 = vmatprep.subr.bf16.mxu0 %v1279
        %1599 = vmatpush1.bf16.msra.mxu0 %v1278
        %1600 = vmatprep.subr.bf16.mxu0 %v1287
        %1601 = vmatpush1.bf16.msra.mxu0 %v1286
        %1602 = vmatprep.subr.bf16.mxu0 %v1295
        %1603 = vmatpush1.bf16.msra.mxu0 %v1294
        %1604 = vmatprep.subr.bf16.mxu0 %v1303
        %1605 = vmatpush1.bf16.msra.mxu0 %v1302
        %1606 = vmatprep.subr.bf16.mxu0 %v1311
        %1607 = vmatpush1.bf16.msra.mxu0 %v1310
        %1608 = vmatprep.subr.bf16.mxu0 %v1319
        %1609 = vmatpush1.bf16.msra.mxu0 %v1318
        %1610 = vmatprep.subr.bf16.mxu0 %v1327
        %1611 = vmatpush1.bf16.msra.mxu0 %v1326
        %1612 = vmatprep.subr.bf16.mxu0 %v1335
        %1613 = vmatpush1.bf16.msra.mxu0 %v1334
        %1614 = vmatprep.subr.bf16.mxu0 %v1343
        %1615 = vmatpush1.bf16.msra.mxu0 %v1342
        %1616 = vmatprep.subr.bf16.mxu0 %v1351
        %1617 = vmatpush1.bf16.msra.mxu0 %v1350
        %1618 = vmatprep.subr.bf16.mxu0 %v1359
        %1619 = vmatpush1.bf16.msra.mxu0 %v1358
        %1620 = vmatprep.subr.bf16.mxu0 %v1367
        %1621 = vmatpush1.bf16.msra.mxu0 %v1366
        %1622 = vmatprep.subr.bf16.mxu0 %v1375
        %1623 = vmatpush1.bf16.msra.mxu0 %v1374
        %1624 = vmatprep.mubr.bf16.mxu0 %v737
        %1625 = vmatmul.mubr.bf16.gmra.mrb[0].mxu0 %v736
        %v1626 = vpop.f32.mrb[0].mxu0
        %v1627 = vadd.f32 0.0, %v1626
        %v1628 = vpop.f32.mrb[0].mxu0
        %v1629 = vadd.f32 0.0, %v1628
        %v1630 = vpop.f32.mrb[0].mxu0
        %v1631 = vadd.f32 0.0, %v1630
        %v1632 = vpop.f32.mrb[0].mxu0
        %v1633 = vadd.f32 0.0, %v1632
        %1634 = vdwg.mxu0
        %1635 = vmatprep.subr.bf16.mxu0 %v1257
        %1636 = vmatpush1.bf16.msra.mxu0 %v1256
        %1637 = vmatprep.subr.bf16.mxu0 %v1265
        %1638 = vmatpush1.bf16.msra.mxu0 %v1264
        %1639 = vmatprep.subr.bf16.mxu0 %v1273
        %1640 = vmatpush1.bf16.msra.mxu0 %v1272
        %1641 = vmatprep.subr.bf16.mxu0 %v1281
        %1642 = vmatpush1.bf16.msra.mxu0 %v1280
        %1643 = vmatprep.subr.bf16.mxu0 %v1289
        %1644 = vmatpush1.bf16.msra.mxu0 %v1288
        %1645 = vmatprep.subr.bf16.mxu0 %v1297
        %1646 = vmatpush1.bf16.msra.mxu0 %v1296
        %1647 = vmatprep.subr.bf16.mxu0 %v1305
        %1648 = vmatpush1.bf16.msra.mxu0 %v1304
        %1649 = vmatprep.subr.bf16.mxu0 %v1313
        %1650 = vmatpush1.bf16.msra.mxu0 %v1312
        %1651 = vmatprep.subr.bf16.mxu0 %v1321
        %1652 = vmatpush1.bf16.msra.mxu0 %v1320
        %1653 = vmatprep.subr.bf16.mxu0 %v1329
        %1654 = vmatpush1.bf16.msra.mxu0 %v1328
        %1655 = vmatprep.subr.bf16.mxu0 %v1337
        %1656 = vmatpush1.bf16.msra.mxu0 %v1336
        %1657 = vmatprep.subr.bf16.mxu0 %v1345
        %1658 = vmatpush1.bf16.msra.mxu0 %v1344
        %1659 = vmatprep.subr.bf16.mxu0 %v1353
        %1660 = vmatpush1.bf16.msra.mxu0 %v1352
        %1661 = vmatprep.subr.bf16.mxu0 %v1361
        %1662 = vmatpush1.bf16.msra.mxu0 %v1360
        %1663 = vmatprep.subr.bf16.mxu0 %v1369
        %1664 = vmatpush1.bf16.msra.mxu0 %v1368
        %1665 = vmatprep.subr.bf16.mxu0 %v1377
        %1666 = vmatpush1.bf16.msra.mxu0 %v1376
        %1667 = vmatprep.mubr.bf16.mxu0 %v737
        %1668 = vmatmul.mubr.bf16.gmra.mrb[0].mxu0 %v736
        %v1669 = vpop.f32.mrb[0].mxu0
        %v1670 = vadd.f32 0.0, %v1669
        %v1671 = vpop.f32.mrb[0].mxu0
        %v1672 = vadd.f32 0.0, %v1671
        %v1673 = vpop.f32.mrb[0].mxu0
        %v1674 = vadd.f32 0.0, %v1673
        %v1675 = vpop.f32.mrb[0].mxu0
        %v1676 = vadd.f32 0.0, %v1675
        %1677 = vdwg.mxu0
        %v1680 = vunpack.c.l.b16 %v662
        %v1681 = vunpack.c.l.b16 %v663
        %v1682 = vpack.c.b16 %v1681, %v1680
        %v1748 = vunpack.c.l.b16 %v672
        %v1749 = vunpack.c.h.b16 %v672
        %v1750 = vunpack.c.l.b16 %v673
        %v1751 = vunpack.c.h.b16 %v673
        %v1752 = vunpack.c.l.b16 %v674
        %v1753 = vunpack.c.h.b16 %v674
        %v1754 = vunpack.c.l.b16 %v675
        %v1755 = vunpack.c.h.b16 %v675
        %v1756 = vunpack.c.l.b16 %v676
        %v1757 = vunpack.c.h.b16 %v676
        %v1758 = vunpack.c.l.b16 %v677
        %v1759 = vunpack.c.h.b16 %v677
        %v1760 = vunpack.c.l.b16 %v678
        %v1761 = vunpack.c.h.b16 %v678
        %v1762 = vunpack.c.l.b16 %v679
        %v1763 = vunpack.c.h.b16 %v679
        %v1764 = vunpack.c.l.b16 %v680
        %v1765 = vunpack.c.h.b16 %v680
        %v1766 = vunpack.c.l.b16 %v681
        %v1767 = vunpack.c.h.b16 %v681
        %v1768 = vunpack.c.l.b16 %v682
        %v1769 = vunpack.c.h.b16 %v682
        %v1770 = vunpack.c.l.b16 %v683
        %v1771 = vunpack.c.h.b16 %v683
        %v1772 = vunpack.c.l.b16 %v684
        %v1773 = vunpack.c.h.b16 %v684
        %v1774 = vunpack.c.l.b16 %v685
        %v1775 = vunpack.c.h.b16 %v685
        %v1776 = vunpack.c.l.b16 %v686
        %v1777 = vunpack.c.h.b16 %v686
        %v1778 = vunpack.c.l.b16 %v687
        %v1779 = vunpack.c.h.b16 %v687
        %v1780 = vunpack.c.l.b16 %v688
        %v1781 = vunpack.c.h.b16 %v688
        %v1782 = vunpack.c.l.b16 %v689
        %v1783 = vunpack.c.h.b16 %v689
        %v1784 = vunpack.c.l.b16 %v690
        %v1785 = vunpack.c.h.b16 %v690
        %v1786 = vunpack.c.l.b16 %v691
        %v1787 = vunpack.c.h.b16 %v691
        %v1788 = vunpack.c.l.b16 %v692
        %v1789 = vunpack.c.h.b16 %v692
        %v1790 = vunpack.c.l.b16 %v693
        %v1791 = vunpack.c.h.b16 %v693
        %v1792 = vunpack.c.l.b16 %v694
        %v1793 = vunpack.c.h.b16 %v694
        %v1794 = vunpack.c.l.b16 %v695
        %v1795 = vunpack.c.h.b16 %v695
        %v1796 = vunpack.c.l.b16 %v696
        %v1797 = vunpack.c.h.b16 %v696
        %v1798 = vunpack.c.l.b16 %v697
        %v1799 = vunpack.c.h.b16 %v697
        %v1800 = vunpack.c.l.b16 %v698
        %v1801 = vunpack.c.h.b16 %v698
        %v1802 = vunpack.c.l.b16 %v699
        %v1803 = vunpack.c.h.b16 %v699
        %v1804 = vunpack.c.l.b16 %v700
        %v1805 = vunpack.c.h.b16 %v700
        %v1806 = vunpack.c.l.b16 %v701
        %v1807 = vunpack.c.h.b16 %v701
        %v1808 = vunpack.c.l.b16 %v702
        %v1809 = vunpack.c.h.b16 %v702
        %v1810 = vunpack.c.l.b16 %v703
        %v1811 = vunpack.c.h.b16 %v703
        %v1812 = vunpack.c.l.b16 %v704
        %v1813 = vunpack.c.h.b16 %v704
        %v1814 = vunpack.c.l.b16 %v705
        %v1815 = vunpack.c.h.b16 %v705
        %v1816 = vunpack.c.l.b16 %v706
        %v1817 = vunpack.c.h.b16 %v706
        %v1818 = vunpack.c.l.b16 %v707
        %v1819 = vunpack.c.h.b16 %v707
        %v1820 = vunpack.c.l.b16 %v708
        %v1821 = vunpack.c.h.b16 %v708
        %v1822 = vunpack.c.l.b16 %v709
        %v1823 = vunpack.c.h.b16 %v709
        %v1824 = vunpack.c.l.b16 %v710
        %v1825 = vunpack.c.h.b16 %v710
        %v1826 = vunpack.c.l.b16 %v711
        %v1827 = vunpack.c.h.b16 %v711
        %v1828 = vunpack.c.l.b16 %v712
        %v1829 = vunpack.c.h.b16 %v712
        %v1830 = vunpack.c.l.b16 %v713
        %v1831 = vunpack.c.h.b16 %v713
        %v1832 = vunpack.c.l.b16 %v714
        %v1833 = vunpack.c.h.b16 %v714
        %v1834 = vunpack.c.l.b16 %v715
        %v1835 = vunpack.c.h.b16 %v715
        %v1836 = vunpack.c.l.b16 %v716
        %v1837 = vunpack.c.h.b16 %v716
        %v1838 = vunpack.c.l.b16 %v717
        %v1839 = vunpack.c.h.b16 %v717
        %v1840 = vunpack.c.l.b16 %v718
        %v1841 = vunpack.c.h.b16 %v718
        %v1842 = vunpack.c.l.b16 %v719
        %v1843 = vunpack.c.h.b16 %v719
        %v1844 = vunpack.c.l.b16 %v720
        %v1845 = vunpack.c.h.b16 %v720
        %v1846 = vunpack.c.l.b16 %v721
        %v1847 = vunpack.c.h.b16 %v721
        %v1848 = vunpack.c.l.b16 %v722
        %v1849 = vunpack.c.h.b16 %v722
        %v1850 = vunpack.c.l.b16 %v723
        %v1851 = vunpack.c.h.b16 %v723
        %v1852 = vunpack.c.l.b16 %v724
        %v1853 = vunpack.c.h.b16 %v724
        %v1854 = vunpack.c.l.b16 %v725
        %v1855 = vunpack.c.h.b16 %v725
        %v1856 = vunpack.c.l.b16 %v726
        %v1857 = vunpack.c.h.b16 %v726
        %v1858 = vunpack.c.l.b16 %v727
        %v1859 = vunpack.c.h.b16 %v727
        %v1860 = vunpack.c.l.b16 %v728
        %v1861 = vunpack.c.h.b16 %v728
        %v1862 = vunpack.c.l.b16 %v729
        %v1863 = vunpack.c.h.b16 %v729
        %v1864 = vunpack.c.l.b16 %v730
        %v1865 = vunpack.c.h.b16 %v730
        %v1866 = vunpack.c.l.b16 %v731
        %v1867 = vunpack.c.h.b16 %v731
        %v1868 = vunpack.c.l.b16 %v732
        %v1869 = vunpack.c.h.b16 %v732
        %v1870 = vunpack.c.l.b16 %v733
        %v1871 = vunpack.c.h.b16 %v733
        %v1872 = vunpack.c.l.b16 %v734
        %v1873 = vunpack.c.h.b16 %v734
        %v1874 = vunpack.c.l.b16 %v735
        %v1875 = vunpack.c.h.b16 %v735
        %v1876 = vpack.c.b16 %v1756, %v1748
        %v1877 = vpack.c.b16 %v1757, %v1749
        %v1878 = vpack.c.b16 %v1758, %v1750
        %v1879 = vpack.c.b16 %v1759, %v1751
        %v1880 = vpack.c.b16 %v1760, %v1752
        %v1881 = vpack.c.b16 %v1761, %v1753
        %v1882 = vpack.c.b16 %v1762, %v1754
        %v1883 = vpack.c.b16 %v1763, %v1755
        %v1884 = vpack.c.b16 %v1772, %v1764
        %v1885 = vpack.c.b16 %v1773, %v1765
        %v1886 = vpack.c.b16 %v1774, %v1766
        %v1887 = vpack.c.b16 %v1775, %v1767
        %v1888 = vpack.c.b16 %v1776, %v1768
        %v1889 = vpack.c.b16 %v1777, %v1769
        %v1890 = vpack.c.b16 %v1778, %v1770
        %v1891 = vpack.c.b16 %v1779, %v1771
        %v1892 = vpack.c.b16 %v1788, %v1780
        %v1893 = vpack.c.b16 %v1789, %v1781
        %v1894 = vpack.c.b16 %v1790, %v1782
        %v1895 = vpack.c.b16 %v1791, %v1783
        %v1896 = vpack.c.b16 %v1792, %v1784
        %v1897 = vpack.c.b16 %v1793, %v1785
        %v1898 = vpack.c.b16 %v1794, %v1786
        %v1899 = vpack.c.b16 %v1795, %v1787
        %v1900 = vpack.c.b16 %v1804, %v1796
        %v1901 = vpack.c.b16 %v1805, %v1797
        %v1902 = vpack.c.b16 %v1806, %v1798
        %v1903 = vpack.c.b16 %v1807, %v1799
        %v1904 = vpack.c.b16 %v1808, %v1800
        %v1905 = vpack.c.b16 %v1809, %v1801
        %v1906 = vpack.c.b16 %v1810, %v1802
        %v1907 = vpack.c.b16 %v1811, %v1803
        %v1908 = vpack.c.b16 %v1820, %v1812
        %v1909 = vpack.c.b16 %v1821, %v1813
        %v1910 = vpack.c.b16 %v1822, %v1814
        %v1911 = vpack.c.b16 %v1823, %v1815
        %v1912 = vpack.c.b16 %v1824, %v1816
        %v1913 = vpack.c.b16 %v1825, %v1817
        %v1914 = vpack.c.b16 %v1826, %v1818
        %v1915 = vpack.c.b16 %v1827, %v1819
        %v1916 = vpack.c.b16 %v1836, %v1828
        %v1917 = vpack.c.b16 %v1837, %v1829
        %v1918 = vpack.c.b16 %v1838, %v1830
        %v1919 = vpack.c.b16 %v1839, %v1831
        %v1920 = vpack.c.b16 %v1840, %v1832
        %v1921 = vpack.c.b16 %v1841, %v1833
        %v1922 = vpack.c.b16 %v1842, %v1834
        %v1923 = vpack.c.b16 %v1843, %v1835
        %v1924 = vpack.c.b16 %v1852, %v1844
        %v1925 = vpack.c.b16 %v1853, %v1845
        %v1926 = vpack.c.b16 %v1854, %v1846
        %v1927 = vpack.c.b16 %v1855, %v1847
        %v1928 = vpack.c.b16 %v1856, %v1848
        %v1929 = vpack.c.b16 %v1857, %v1849
        %v1930 = vpack.c.b16 %v1858, %v1850
        %v1931 = vpack.c.b16 %v1859, %v1851
        %v1932 = vpack.c.b16 %v1868, %v1860
        %v1933 = vpack.c.b16 %v1869, %v1861
        %v1934 = vpack.c.b16 %v1870, %v1862
        %v1935 = vpack.c.b16 %v1871, %v1863
        %v1936 = vpack.c.b16 %v1872, %v1864
        %v1937 = vpack.c.b16 %v1873, %v1865
        %v1938 = vpack.c.b16 %v1874, %v1866
        %v1939 = vpack.c.b16 %v1875, %v1867
        %2004 = vmatprep.subr.bf16.mxu0 %v1877
        %2005 = vmatpush1.bf16.msra.mxu0 %v1876
        %2006 = vmatprep.subr.bf16.mxu0 %v1885
        %2007 = vmatpush1.bf16.msra.mxu0 %v1884
        %2008 = vmatprep.subr.bf16.mxu0 %v1893
        %2009 = vmatpush1.bf16.msra.mxu0 %v1892
        %2010 = vmatprep.subr.bf16.mxu0 %v1901
        %2011 = vmatpush1.bf16.msra.mxu0 %v1900
        %2012 = vmatprep.subr.bf16.mxu0 %v1909
        %2013 = vmatpush1.bf16.msra.mxu0 %v1908
        %2014 = vmatprep.subr.bf16.mxu0 %v1917
        %2015 = vmatpush1.bf16.msra.mxu0 %v1916
        %2016 = vmatprep.subr.bf16.mxu0 %v1925
        %2017 = vmatpush1.bf16.msra.mxu0 %v1924
        %2018 = vmatprep.subr.bf16.mxu0 %v1933
        %2019 = vmatpush1.bf16.msra.mxu0 %v1932
        %2020 = vmatprep.subr.bf16.mxu0 0
        %2021 = vmatpush1.bf16.msra.mxu0 0
        %2022 = vmatprep.subr.bf16.mxu0 0
        %2023 = vmatpush1.bf16.msra.mxu0 0
        %2024 = vmatprep.subr.bf16.mxu0 0
        %2025 = vmatpush1.bf16.msra.mxu0 0
        %2026 = vmatprep.subr.bf16.mxu0 0
        %2027 = vmatpush1.bf16.msra.mxu0 0
        %2028 = vmatprep.subr.bf16.mxu0 0
        %2029 = vmatpush1.bf16.msra.mxu0 0
        %2030 = vmatprep.subr.bf16.mxu0 0
        %2031 = vmatpush1.bf16.msra.mxu0 0
        %2032 = vmatprep.subr.bf16.mxu0 0
        %2033 = vmatpush1.bf16.msra.mxu0 0
        %2034 = vmatprep.subr.bf16.mxu0 0
        %2035 = vmatpush1.bf16.msra.mxu0 0
        %2036 = vmatprep.mubr.bf16.mxu0 0
        %2037 = vmatmul.mubr.bf16.gmra.mrb[0].mxu0 %v1682
        %v2038 = vpop.f32.mrb[0].mxu0
        %v2039 = vadd.f32 %v1541, %v2038
        %v2040 = vpop.f32.mrb[0].mxu0
        %v2041 = vadd.f32 %v1543, %v2040
        %v2042 = vpop.f32.mrb[0].mxu0
        %v2043 = vadd.f32 %v1545, %v2042
        %v2044 = vpop.f32.mrb[0].mxu0
        %v2045 = vadd.f32 %v1547, %v2044
        %2046 = vdwg.mxu0
        %2047 = vmatprep.subr.bf16.mxu0 %v1879
        %2048 = vmatpush1.bf16.msra.mxu0 %v1878
        %2049 = vmatprep.subr.bf16.mxu0 %v1887
        %2050 = vmatpush1.bf16.msra.mxu0 %v1886
        %2051 = vmatprep.subr.bf16.mxu0 %v1895
        %2052 = vmatpush1.bf16.msra.mxu0 %v1894
        %2053 = vmatprep.subr.bf16.mxu0 %v1903
        %2054 = vmatpush1.bf16.msra.mxu0 %v1902
        %2055 = vmatprep.subr.bf16.mxu0 %v1911
        %2056 = vmatpush1.bf16.msra.mxu0 %v1910
        %2057 = vmatprep.subr.bf16.mxu0 %v1919
        %2058 = vmatpush1.bf16.msra.mxu0 %v1918
        %2059 = vmatprep.subr.bf16.mxu0 %v1927
        %2060 = vmatpush1.bf16.msra.mxu0 %v1926
        %2061 = vmatprep.subr.bf16.mxu0 %v1935
        %2062 = vmatpush1.bf16.msra.mxu0 %v1934
        %2063 = vmatprep.subr.bf16.mxu0 0
        %2064 = vmatpush1.bf16.msra.mxu0 0
        %2065 = vmatprep.subr.bf16.mxu0 0
        %2066 = vmatpush1.bf16.msra.mxu0 0
        %2067 = vmatprep.subr.bf16.mxu0 0
        %2068 = vmatpush1.bf16.msra.mxu0 0
        %2069 = vmatprep.subr.bf16.mxu0 0
        %2070 = vmatpush1.bf16.msra.mxu0 0
        %2071 = vmatprep.subr.bf16.mxu0 0
        %2072 = vmatpush1.bf16.msra.mxu0 0
        %2073 = vmatprep.subr.bf16.mxu0 0
        %2074 = vmatpush1.bf16.msra.mxu0 0
        %2075 = vmatprep.subr.bf16.mxu0 0
        %2076 = vmatpush1.bf16.msra.mxu0 0
        %2077 = vmatprep.subr.bf16.mxu0 0
        %2078 = vmatpush1.bf16.msra.mxu0 0
        %2079 = vmatprep.mubr.bf16.mxu0 0
        %2080 = vmatmul.mubr.bf16.gmra.mrb[0].mxu0 %v1682
        %v2081 = vpop.f32.mrb[0].mxu0
        %v2082 = vadd.f32 %v1584, %v2081
        %v2083 = vpop.f32.mrb[0].mxu0
        %v2084 = vadd.f32 %v1586, %v2083
        %v2085 = vpop.f32.mrb[0].mxu0
        %v2086 = vadd.f32 %v1588, %v2085
        %v2087 = vpop.f32.mrb[0].mxu0
        %v2088 = vadd.f32 %v1590, %v2087
        %2089 = vdwg.mxu0
        %2090 = vmatprep.subr.bf16.mxu0 %v1881
        %2091 = vmatpush1.bf16.msra.mxu0 %v1880
        %2092 = vmatprep.subr.bf16.mxu0 %v1889
        %2093 = vmatpush1.bf16.msra.mxu0 %v1888
        %2094 = vmatprep.subr.bf16.mxu0 %v1897
        %2095 = vmatpush1.bf16.msra.mxu0 %v1896
        %2096 = vmatprep.subr.bf16.mxu0 %v1905
        %2097 = vmatpush1.bf16.msra.mxu0 %v1904
        %2098 = vmatprep.subr.bf16.mxu0 %v1913
        %2099 = vmatpush1.bf16.msra.mxu0 %v1912
        %2100 = vmatprep.subr.bf16.mxu0 %v1921
        %2101 = vmatpush1.bf16.msra.mxu0 %v1920
        %2102 = vmatprep.subr.bf16.mxu0 %v1929
        %2103 = vmatpush1.bf16.msra.mxu0 %v1928
        %2104 = vmatprep.subr.bf16.mxu0 %v1937
        %2105 = vmatpush1.bf16.msra.mxu0 %v1936
        %2106 = vmatprep.subr.bf16.mxu0 0
        %2107 = vmatpush1.bf16.msra.mxu0 0
        %2108 = vmatprep.subr.bf16.mxu0 0
        %2109 = vmatpush1.bf16.msra.mxu0 0
        %2110 = vmatprep.subr.bf16.mxu0 0
        %2111 = vmatpush1.bf16.msra.mxu0 0
        %2112 = vmatprep.subr.bf16.mxu0 0
        %2113 = vmatpush1.bf16.msra.mxu0 0
        %2114 = vmatprep.subr.bf16.mxu0 0
        %2115 = vmatpush1.bf16.msra.mxu0 0
        %2116 = vmatprep.subr.bf16.mxu0 0
        %2117 = vmatpush1.bf16.msra.mxu0 0
        %2118 = vmatprep.subr.bf16.mxu0 0
        %2119 = vmatpush1.bf16.msra.mxu0 0
        %2120 = vmatprep.subr.bf16.mxu0 0
        %2121 = vmatpush1.bf16.msra.mxu0 0
        %2122 = vmatprep.mubr.bf16.mxu0 0
        %2123 = vmatmul.mubr.bf16.gmra.mrb[0].mxu0 %v1682
        %v2124 = vpop.f32.mrb[0].mxu0
        %v2125 = vadd.f32 %v1627, %v2124
        %v2126 = vpop.f32.mrb[0].mxu0
        %v2127 = vadd.f32 %v1629, %v2126
        %v2128 = vpop.f32.mrb[0].mxu0
        %v2129 = vadd.f32 %v1631, %v2128
        %v2130 = vpop.f32.mrb[0].mxu0
        %v2131 = vadd.f32 %v1633, %v2130
        %2132 = vdwg.mxu0
        %2133 = vmatprep.subr.bf16.mxu0 %v1883
        %2134 = vmatpush1.bf16.msra.mxu0 %v1882
        %2135 = vmatprep.subr.bf16.mxu0 %v1891
        %2136 = vmatpush1.bf16.msra.mxu0 %v1890
        %2137 = vmatprep.subr.bf16.mxu0 %v1899
        %2138 = vmatpush1.bf16.msra.mxu0 %v1898
        %2139 = vmatprep.subr.bf16.mxu0 %v1907
        %2140 = vmatpush1.bf16.msra.mxu0 %v1906
        %2141 = vmatprep.subr.bf16.mxu0 %v1915
        %2142 = vmatpush1.bf16.msra.mxu0 %v1914
        %2143 = vmatprep.subr.bf16.mxu0 %v1923
        %2144 = vmatpush1.bf16.msra.mxu0 %v1922
        %2145 = vmatprep.subr.bf16.mxu0 %v1931
        %2146 = vmatpush1.bf16.msra.mxu0 %v1930
        %2147 = vmatprep.subr.bf16.mxu0 %v1939
        %2148 = vmatpush1.bf16.msra.mxu0 %v1938
        %2149 = vmatprep.subr.bf16.mxu0 0
        %2150 = vmatpush1.bf16.msra.mxu0 0
        %2151 = vmatprep.subr.bf16.mxu0 0
        %2152 = vmatpush1.bf16.msra.mxu0 0
        %2153 = vmatprep.subr.bf16.mxu0 0
        %2154 = vmatpush1.bf16.msra.mxu0 0
        %2155 = vmatprep.subr.bf16.mxu0 0
        %2156 = vmatpush1.bf16.msra.mxu0 0
        %2157 = vmatprep.subr.bf16.mxu0 0
        %2158 = vmatpush1.bf16.msra.mxu0 0
        %2159 = vmatprep.subr.bf16.mxu0 0
        %2160 = vmatpush1.bf16.msra.mxu0 0
        %2161 = vmatprep.subr.bf16.mxu0 0
        %2162 = vmatpush1.bf16.msra.mxu0 0
        %2163 = vmatprep.subr.bf16.mxu0 0
        %2164 = vmatpush1.bf16.msra.mxu0 0
        %2165 = vmatprep.mubr.bf16.mxu0 0
        %2166 = vmatmul.mubr.bf16.gmra.mrb[0].mxu0 %v1682
        %v2167 = vpop.f32.mrb[0].mxu0
        %v2168 = vadd.f32 %v1670, %v2167
        %v2169 = vpop.f32.mrb[0].mxu0
        %v2170 = vadd.f32 %v1672, %v2169
        %v2171 = vpop.f32.mrb[0].mxu0
        %v2172 = vadd.f32 %v1674, %v2171
        %v2173 = vpop.f32.mrb[0].mxu0
        %v2174 = vadd.f32 %v1676, %v2173
        %2175 = vdwg.mxu0
        %v2176 = vld [vmem:[%s5] sm:$0xff]
        %v2178 = vlaneseq
        %v2179 = vshrl.u32 %v2178, 7
        %v2180 = vsub.s32 0, %v2179
        %v2181 = vrot.slane %v2176, %v2180
        %v2182 = vlaneseq
        %v2183 = vshrl.u32 %v2182, 7
        %v2184 = vsub.s32 1, %v2183
        %v2185 = vrot.slane %v2176, %v2184
        %v2186 = vlaneseq
        %v2187 = vshrl.u32 %v2186, 7
        %v2188 = vsub.s32 2, %v2187
        %v2189 = vrot.slane %v2176, %v2188
        %v2190 = vlaneseq
        %v2191 = vshrl.u32 %v2190, 7
        %v2192 = vsub.s32 3, %v2191
        %v2193 = vrot.slane %v2176, %v2192
        %v2194 = vlaneseq
        %v2195 = vshrl.u32 %v2194, 7
        %v2196 = vsub.s32 4, %v2195
        %v2197 = vrot.slane %v2176, %v2196
        %v2198 = vlaneseq
        %v2199 = vshrl.u32 %v2198, 7
        %v2200 = vsub.s32 5, %v2199
        %v2201 = vrot.slane %v2176, %v2200
        %v2202 = vlaneseq
        %v2203 = vshrl.u32 %v2202, 7
        %v2204 = vsub.s32 6, %v2203
        %v2205 = vrot.slane %v2176, %v2204
        %v2206 = vlaneseq
        %v2207 = vshrl.u32 %v2206, 7
        %v2208 = vsub.s32 7, %v2207
        %v2209 = vrot.slane %v2176, %v2208
        %v2218 = vadd.f32 %v2039, %v2181
        %v2219 = vadd.f32 %v2041, %v2185
        %v2220 = vadd.f32 %v2082, %v2189
        %v2221 = vadd.f32 %v2084, %v2193
        %v2222 = vadd.f32 %v2125, %v2197
        %v2223 = vadd.f32 %v2127, %v2201
        %v2224 = vadd.f32 %v2168, %v2205
        %v2225 = vadd.f32 %v2170, %v2209
        %v2226 = vadd.f32 %v2043, %v2181
        %v2227 = vadd.f32 %v2045, %v2185
        %v2228 = vadd.f32 %v2086, %v2189
        %v2229 = vadd.f32 %v2088, %v2193
        %v2230 = vadd.f32 %v2129, %v2197
        %v2231 = vadd.f32 %v2131, %v2201
        %v2232 = vadd.f32 %v2172, %v2205
        %v2233 = vadd.f32 %v2174, %v2209
        %v2234 = vxor.u32 %v2218, 2147483648
        %v2235 = vxor.u32 %v2219, 2147483648
        %v2236 = vxor.u32 %v2226, 2147483648
        %v2237 = vxor.u32 %v2227, 2147483648
        %v2238 = vmul.f32 %v2234, 1.442695
        %v2239 = vpow.pop %v2238
        %v2240 = vmul.f32 %v2235, 1.442695
        %v2241 = vpow.pop %v2240
        %v2242 = vmul.f32 %v2236, 1.442695
        %v2243 = vpow.pop %v2242
        %v2244 = vmul.f32 %v2237, 1.442695
        %v2245 = vpow.pop %v2244
        %v2246 = vadd.f32 %v2239, 1.0
        %v2247 = vadd.f32 %v2241, 1.0
        %v2248 = vadd.f32 %v2243, 1.0
        %v2249 = vadd.f32 %v2245, 1.0
        %v2250 = vrcp.pop %v2246
        %v2251 = vmul.f32 1.0, %v2250
        %v2252 = vrcp.pop %v2247
        %v2253 = vmul.f32 1.0, %v2252
        %v2254 = vrcp.pop %v2248
        %v2255 = vmul.f32 1.0, %v2254
        %v2256 = vrcp.pop %v2249
        %v2257 = vmul.f32 1.0, %v2256
        %v2258 = vxor.u32 %v2220, 2147483648
        %v2259 = vxor.u32 %v2221, 2147483648
        %v2260 = vxor.u32 %v2228, 2147483648
        %v2261 = vxor.u32 %v2229, 2147483648
        %v2262 = vmul.f32 %v2258, 1.442695
        %v2263 = vpow.pop %v2262
        %v2264 = vmul.f32 %v2259, 1.442695
        %v2265 = vpow.pop %v2264
        %v2266 = vmul.f32 %v2260, 1.442695
        %v2267 = vpow.pop %v2266
        %v2268 = vmul.f32 %v2261, 1.442695
        %v2269 = vpow.pop %v2268
        %v2270 = vadd.f32 %v2263, 1.0
        %v2271 = vadd.f32 %v2265, 1.0
        %v2272 = vadd.f32 %v2267, 1.0
        %v2273 = vadd.f32 %v2269, 1.0
        %v2274 = vrcp.pop %v2270
        %v2275 = vmul.f32 1.0, %v2274
        %v2276 = vrcp.pop %v2271
        %v2277 = vmul.f32 1.0, %v2276
        %v2278 = vrcp.pop %v2272
        %v2279 = vmul.f32 1.0, %v2278
        %v2280 = vrcp.pop %v2273
        %v2281 = vmul.f32 1.0, %v2280
        %v2282 = vtanh.pop %v2222
        %v2283 = vtanh.pop %v2223
        %v2284 = vtanh.pop %v2230
        %v2285 = vtanh.pop %v2231
        %v2286 = vxor.u32 %v2224, 2147483648
        %v2287 = vxor.u32 %v2225, 2147483648
        %v2288 = vxor.u32 %v2232, 2147483648
        %v2289 = vxor.u32 %v2233, 2147483648
        %v2290 = vmul.f32 %v2286, 1.442695
        %v2291 = vpow.pop %v2290
        %v2292 = vmul.f32 %v2287, 1.442695
        %v2293 = vpow.pop %v2292
        %v2294 = vmul.f32 %v2288, 1.442695
        %v2295 = vpow.pop %v2294
        %v2296 = vmul.f32 %v2289, 1.442695
        %v2297 = vpow.pop %v2296
        %v2298 = vadd.f32 %v2291, 1.0
        %v2299 = vadd.f32 %v2293, 1.0
        %v2300 = vadd.f32 %v2295, 1.0
        %v2301 = vadd.f32 %v2297, 1.0
        %v2302 = vrcp.pop %v2298
        %v2303 = vmul.f32 1.0, %v2302
        %v2304 = vrcp.pop %v2299
        %v2305 = vmul.f32 1.0, %v2304
        %v2306 = vrcp.pop %v2300
        %v2307 = vmul.f32 1.0, %v2306
        %v2308 = vrcp.pop %v2301
        %v2309 = vmul.f32 1.0, %v2308
        %v2310 = vmul.f32 %v2275, %v668
        %v2311 = vmul.f32 %v2277, %v669
        %v2312 = vmul.f32 %v2279, %v670
        %v2313 = vmul.f32 %v2281, %v671
        %v2314 = vmul.f32 %v2251, %v2282
        %v2315 = vmul.f32 %v2253, %v2283
        %v2316 = vmul.f32 %v2255, %v2284
        %v2317 = vmul.f32 %v2257, %v2285
        %v2318 = vadd.f32 %v2310, %v2314
        %v2319 = vadd.f32 %v2311, %v2315
        %v2320 = vadd.f32 %v2312, %v2316
        %v2321 = vadd.f32 %v2313, %v2317
        %v2322 = vtanh.pop %v2318
        %v2323 = vtanh.pop %v2319
        %v2324 = vtanh.pop %v2320
        %v2325 = vtanh.pop %v2321
        %v2326 = vmul.f32 %v2303, %v2322
        %v2327 = vmul.f32 %v2305, %v2323
        %v2328 = vmul.f32 %v2307, %v2324
        %v2329 = vmul.f32 %v2309, %v2325
        %2330 = vst [vmem:[#allocation2] sm:$0xff] %v2326
        %2331 = vst [vmem:[#allocation2 + $0x8] sm:$0xff] %v2327
        %2332 = vst [vmem:[#allocation2 + $0x10] sm:$0xff] %v2328
        %2333 = vst [vmem:[#allocation2 + $0x18] sm:$0xff] %v2329
        %2334 = vst [vmem:[#allocation3] sm:$0xff] %v2318
        %2335 = vst [vmem:[#allocation3 + $0x8] sm:$0xff] %v2319
        %2336 = vst [vmem:[#allocation3 + $0x10] sm:$0xff] %v2320
        %2337 = vst [vmem:[#allocation3 + $0x18] sm:$0xff] %v2321
        %v2338 = vpack.c.bf16 %v2328, %v2326
        %v2339 = vpack.c.bf16 %v2329, %v2327
        %s2340 = scalar_lea.vmem [#allocation2], 32
        %v2341 = vld [vmem:[%s2340] sm:$0xff]
        %v2342 = vld [vmem:[%s2340 + $0x8] sm:$0xff]
        %v2343 = vld [vmem:[%s2340 + $0x10] sm:$0xff]
        %v2344 = vld [vmem:[%s2340 + $0x18] sm:$0xff]
        %s2345 = scalar_lea.vmem [#allocation3], 32
        %v2346 = vld [vmem:[%s2345] sm:$0xff]
        %v2347 = vld [vmem:[%s2345 + $0x8] sm:$0xff]
        %v2348 = vld [vmem:[%s2345 + $0x10] sm:$0xff]
        %v2349 = vld [vmem:[%s2345 + $0x18] sm:$0xff]
        %v2350 = vld [vmem:[#allocation13] sm:$0xff]
        %v2351 = vld [vmem:[#allocation13 + $0x8] sm:$0xff]
        %v2352 = vld [vmem:[#allocation13 + $0x10] sm:$0xff]
        %v2353 = vld [vmem:[#allocation13 + $0x18] sm:$0xff]
        %v2354 = vld [vmem:[#allocation13 + $0x20] sm:$0xff]
        %v2355 = vld [vmem:[#allocation13 + $0x28] sm:$0xff]
        %v2356 = vld [vmem:[#allocation13 + $0x30] sm:$0xff]
        %v2357 = vld [vmem:[#allocation13 + $0x38] sm:$0xff]
        %v2358 = vld [vmem:[#allocation13 + $0x40] sm:$0xff]
        %v2359 = vld [vmem:[#allocation13 + $0x48] sm:$0xff]
        %v2360 = vld [vmem:[#allocation13 + $0x50] sm:$0xff]
        %v2361 = vld [vmem:[#allocation13 + $0x58] sm:$0xff]
        %v2362 = vld [vmem:[#allocation13 + $0x60] sm:$0xff]
        %v2363 = vld [vmem:[#allocation13 + $0x68] sm:$0xff]
        %v2364 = vld [vmem:[#allocation13 + $0x70] sm:$0xff]
        %v2365 = vld [vmem:[#allocation13 + $0x78] sm:$0xff]
        %v2366 = vld [vmem:[#allocation13 + $0x80] sm:$0xff]
        %v2367 = vld [vmem:[#allocation13 + $0x88] sm:$0xff]
        %v2368 = vld [vmem:[#allocation13 + $0x90] sm:$0xff]
        %v2369 = vld [vmem:[#allocation13 + $0x98] sm:$0xff]
        %v2370 = vld [vmem:[#allocation13 + $0xa0] sm:$0xff]
        %v2371 = vld [vmem:[#allocation13 + $0xa8] sm:$0xff]
        %v2372 = vld [vmem:[#allocation13 + $0xb0] sm:$0xff]
        %v2373 = vld [vmem:[#allocation13 + $0xb8] sm:$0xff]
        %v2374 = vld [vmem:[#allocation13 + $0xc0] sm:$0xff]
        %v2375 = vld [vmem:[#allocation13 + $0xc8] sm:$0xff]
        %v2376 = vld [vmem:[#allocation13 + $0xd0] sm:$0xff]
        %v2377 = vld [vmem:[#allocation13 + $0xd8] sm:$0xff]
        %v2378 = vld [vmem:[#allocation13 + $0xe0] sm:$0xff]
        %v2379 = vld [vmem:[#allocation13 + $0xe8] sm:$0xff]
        %v2380 = vld [vmem:[#allocation13 + $0xf0] sm:$0xff]
        %v2381 = vld [vmem:[#allocation13 + $0xf8] sm:$0xff]
        %v2382 = vld [vmem:[#allocation13 + $0x100] sm:$0xff]
        %v2383 = vld [vmem:[#allocation13 + $0x108] sm:$0xff]
        %v2384 = vld [vmem:[#allocation13 + $0x110] sm:$0xff]
        %v2385 = vld [vmem:[#allocation13 + $0x118] sm:$0xff]
        %v2386 = vld [vmem:[#allocation13 + $0x120] sm:$0xff]
        %v2387 = vld [vmem:[#allocation13 + $0x128] sm:$0xff]
        %v2388 = vld [vmem:[#allocation13 + $0x130] sm:$0xff]
        %v2389 = vld [vmem:[#allocation13 + $0x138] sm:$0xff]
        %v2390 = vld [vmem:[#allocation13 + $0x140] sm:$0xff]
        %v2391 = vld [vmem:[#allocation13 + $0x148] sm:$0xff]
        %v2392 = vld [vmem:[#allocation13 + $0x150] sm:$0xff]
        %v2393 = vld [vmem:[#allocation13 + $0x158] sm:$0xff]
        %v2394 = vld [vmem:[#allocation13 + $0x160] sm:$0xff]
        %v2395 = vld [vmem:[#allocation13 + $0x168] sm:$0xff]
        %v2396 = vld [vmem:[#allocation13 + $0x170] sm:$0xff]
        %v2397 = vld [vmem:[#allocation13 + $0x178] sm:$0xff]
        %v2398 = vld [vmem:[#allocation13 + $0x180] sm:$0xff]
        %v2399 = vld [vmem:[#allocation13 + $0x188] sm:$0xff]
        %v2400 = vld [vmem:[#allocation13 + $0x190] sm:$0xff]
        %v2401 = vld [vmem:[#allocation13 + $0x198] sm:$0xff]
        %v2402 = vld [vmem:[#allocation13 + $0x1a0] sm:$0xff]
        %v2403 = vld [vmem:[#allocation13 + $0x1a8] sm:$0xff]
        %v2404 = vld [vmem:[#allocation13 + $0x1b0] sm:$0xff]
        %v2405 = vld [vmem:[#allocation13 + $0x1b8] sm:$0xff]
        %v2406 = vld [vmem:[#allocation13 + $0x1c0] sm:$0xff]
        %v2407 = vld [vmem:[#allocation13 + $0x1c8] sm:$0xff]
        %v2408 = vld [vmem:[#allocation13 + $0x1d0] sm:$0xff]
        %v2409 = vld [vmem:[#allocation13 + $0x1d8] sm:$0xff]
        %v2410 = vld [vmem:[#allocation13 + $0x1e0] sm:$0xff]
        %v2411 = vld [vmem:[#allocation13 + $0x1e8] sm:$0xff]
        %v2412 = vld [vmem:[#allocation13 + $0x1f0] sm:$0xff]
        %v2413 = vld [vmem:[#allocation13 + $0x1f8] sm:$0xff]
        %v2414 = vld [vmem:[#allocation13 + $0x200] sm:$0xff]
        %v2415 = vld [vmem:[#allocation13 + $0x208] sm:$0xff]
        %v2416 = vld [vmem:[#allocation13 + $0x210] sm:$0xff]
        %v2417 = vld [vmem:[#allocation13 + $0x218] sm:$0xff]
        %v2418 = vld [vmem:[#allocation13 + $0x220] sm:$0xff]
        %v2419 = vld [vmem:[#allocation13 + $0x228] sm:$0xff]
        %v2420 = vld [vmem:[#allocation13 + $0x230] sm:$0xff]
        %v2421 = vld [vmem:[#allocation13 + $0x238] sm:$0xff]
        %v2422 = vld [vmem:[#allocation13 + $0x240] sm:$0xff]
        %v2423 = vld [vmem:[#allocation13 + $0x248] sm:$0xff]
        %v2424 = vld [vmem:[#allocation13 + $0x250] sm:$0xff]
        %v2425 = vld [vmem:[#allocation13 + $0x258] sm:$0xff]
        %v2426 = vld [vmem:[#allocation13 + $0x260] sm:$0xff]
        %v2427 = vld [vmem:[#allocation13 + $0x268] sm:$0xff]
        %v2428 = vld [vmem:[#allocation13 + $0x270] sm:$0xff]
        %v2429 = vld [vmem:[#allocation13 + $0x278] sm:$0xff]
        %v2430 = vld [vmem:[#allocation13 + $0x280] sm:$0xff]
        %v2431 = vld [vmem:[#allocation13 + $0x288] sm:$0xff]
        %v2432 = vld [vmem:[#allocation13 + $0x290] sm:$0xff]
        %v2433 = vld [vmem:[#allocation13 + $0x298] sm:$0xff]
        %v2434 = vld [vmem:[#allocation13 + $0x2a0] sm:$0xff]
        %v2435 = vld [vmem:[#allocation13 + $0x2a8] sm:$0xff]
        %v2436 = vld [vmem:[#allocation13 + $0x2b0] sm:$0xff]
        %v2437 = vld [vmem:[#allocation13 + $0x2b8] sm:$0xff]
        %v2438 = vld [vmem:[#allocation13 + $0x2c0] sm:$0xff]
        %v2439 = vld [vmem:[#allocation13 + $0x2c8] sm:$0xff]
        %v2440 = vld [vmem:[#allocation13 + $0x2d0] sm:$0xff]
        %v2441 = vld [vmem:[#allocation13 + $0x2d8] sm:$0xff]
        %v2442 = vld [vmem:[#allocation13 + $0x2e0] sm:$0xff]
        %v2443 = vld [vmem:[#allocation13 + $0x2e8] sm:$0xff]
        %v2444 = vld [vmem:[#allocation13 + $0x2f0] sm:$0xff]
        %v2445 = vld [vmem:[#allocation13 + $0x2f8] sm:$0xff]
        %v2446 = vld [vmem:[#allocation13 + $0x300] sm:$0xff]
        %v2447 = vld [vmem:[#allocation13 + $0x308] sm:$0xff]
        %v2448 = vld [vmem:[#allocation13 + $0x310] sm:$0xff]
        %v2449 = vld [vmem:[#allocation13 + $0x318] sm:$0xff]
        %v2450 = vld [vmem:[#allocation13 + $0x320] sm:$0xff]
        %v2451 = vld [vmem:[#allocation13 + $0x328] sm:$0xff]
        %v2452 = vld [vmem:[#allocation13 + $0x330] sm:$0xff]
        %v2453 = vld [vmem:[#allocation13 + $0x338] sm:$0xff]
        %v2454 = vld [vmem:[#allocation13 + $0x340] sm:$0xff]
        %v2455 = vld [vmem:[#allocation13 + $0x348] sm:$0xff]
        %v2456 = vld [vmem:[#allocation13 + $0x350] sm:$0xff]
        %v2457 = vld [vmem:[#allocation13 + $0x358] sm:$0xff]
        %v2458 = vld [vmem:[#allocation13 + $0x360] sm:$0xff]
        %v2459 = vld [vmem:[#allocation13 + $0x368] sm:$0xff]
        %v2460 = vld [vmem:[#allocation13 + $0x370] sm:$0xff]
        %v2461 = vld [vmem:[#allocation13 + $0x378] sm:$0xff]
        %v2462 = vld [vmem:[#allocation13 + $0x380] sm:$0xff]
        %v2463 = vld [vmem:[#allocation13 + $0x388] sm:$0xff]
        %v2464 = vld [vmem:[#allocation13 + $0x390] sm:$0xff]
        %v2465 = vld [vmem:[#allocation13 + $0x398] sm:$0xff]
        %v2466 = vld [vmem:[#allocation13 + $0x3a0] sm:$0xff]
        %v2467 = vld [vmem:[#allocation13 + $0x3a8] sm:$0xff]
        %v2468 = vld [vmem:[#allocation13 + $0x3b0] sm:$0xff]
        %v2469 = vld [vmem:[#allocation13 + $0x3b8] sm:$0xff]
        %v2470 = vld [vmem:[#allocation13 + $0x3c0] sm:$0xff]
        %v2471 = vld [vmem:[#allocation13 + $0x3c8] sm:$0xff]
        %v2472 = vld [vmem:[#allocation13 + $0x3d0] sm:$0xff]
        %v2473 = vld [vmem:[#allocation13 + $0x3d8] sm:$0xff]
        %v2474 = vld [vmem:[#allocation13 + $0x3e0] sm:$0xff]
        %v2475 = vld [vmem:[#allocation13 + $0x3e8] sm:$0xff]
        %v2476 = vld [vmem:[#allocation13 + $0x3f0] sm:$0xff]
        %v2477 = vld [vmem:[#allocation13 + $0x3f8] sm:$0xff]
        %v2478 = vpack.c.bf16 %v2343, %v2341
        %v2479 = vpack.c.bf16 %v2344, %v2342
        %v2480 = vld [vmem:[#allocation15] sm:$0xff]
        %v2481 = vld [vmem:[#allocation15 + $0x8] sm:$0xff]
        %v2482 = vld [vmem:[#allocation15 + $0x10] sm:$0xff]
        %v2483 = vld [vmem:[#allocation15 + $0x18] sm:$0xff]
        %v2484 = vld [vmem:[#allocation15 + $0x20] sm:$0xff]
        %v2485 = vld [vmem:[#allocation15 + $0x28] sm:$0xff]
        %v2486 = vld [vmem:[#allocation15 + $0x30] sm:$0xff]
        %v2487 = vld [vmem:[#allocation15 + $0x38] sm:$0xff]
        %v2488 = vld [vmem:[#allocation15 + $0x40] sm:$0xff]
        %v2489 = vld [vmem:[#allocation15 + $0x48] sm:$0xff]
        %v2490 = vld [vmem:[#allocation15 + $0x50] sm:$0xff]
        %v2491 = vld [vmem:[#allocation15 + $0x58] sm:$0xff]
        %v2492 = vld [vmem:[#allocation15 + $0x60] sm:$0xff]
        %v2493 = vld [vmem:[#allocation15 + $0x68] sm:$0xff]
        %v2494 = vld [vmem:[#allocation15 + $0x70] sm:$0xff]
        %v2495 = vld [vmem:[#allocation15 + $0x78] sm:$0xff]
        %v2496 = vld [vmem:[#allocation15 + $0x80] sm:$0xff]
        %v2497 = vld [vmem:[#allocation15 + $0x88] sm:$0xff]
        %v2498 = vld [vmem:[#allocation15 + $0x90] sm:$0xff]
        %v2499 = vld [vmem:[#allocation15 + $0x98] sm:$0xff]
        %v2500 = vld [vmem:[#allocation15 + $0xa0] sm:$0xff]
        %v2501 = vld [vmem:[#allocation15 + $0xa8] sm:$0xff]
        %v2502 = vld [vmem:[#allocation15 + $0xb0] sm:$0xff]
        %v2503 = vld [vmem:[#allocation15 + $0xb8] sm:$0xff]
        %v2504 = vld [vmem:[#allocation15 + $0xc0] sm:$0xff]
        %v2505 = vld [vmem:[#allocation15 + $0xc8] sm:$0xff]
        %v2506 = vld [vmem:[#allocation15 + $0xd0] sm:$0xff]
        %v2507 = vld [vmem:[#allocation15 + $0xd8] sm:$0xff]
        %v2508 = vld [vmem:[#allocation15 + $0xe0] sm:$0xff]
        %v2509 = vld [vmem:[#allocation15 + $0xe8] sm:$0xff]
        %v2510 = vld [vmem:[#allocation15 + $0xf0] sm:$0xff]
        %v2511 = vld [vmem:[#allocation15 + $0xf8] sm:$0xff]
        %v2512 = vld [vmem:[#allocation15 + $0x100] sm:$0xff]
        %v2513 = vld [vmem:[#allocation15 + $0x108] sm:$0xff]
        %v2514 = vld [vmem:[#allocation15 + $0x110] sm:$0xff]
        %v2515 = vld [vmem:[#allocation15 + $0x118] sm:$0xff]
        %v2516 = vld [vmem:[#allocation15 + $0x120] sm:$0xff]
        %v2517 = vld [vmem:[#allocation15 + $0x128] sm:$0xff]
        %v2518 = vld [vmem:[#allocation15 + $0x130] sm:$0xff]
        %v2519 = vld [vmem:[#allocation15 + $0x138] sm:$0xff]
        %v2520 = vld [vmem:[#allocation15 + $0x140] sm:$0xff]
        %v2521 = vld [vmem:[#allocation15 + $0x148] sm:$0xff]
        %v2522 = vld [vmem:[#allocation15 + $0x150] sm:$0xff]
        %v2523 = vld [vmem:[#allocation15 + $0x158] sm:$0xff]
        %v2524 = vld [vmem:[#allocation15 + $0x160] sm:$0xff]
        %v2525 = vld [vmem:[#allocation15 + $0x168] sm:$0xff]
        %v2526 = vld [vmem:[#allocation15 + $0x170] sm:$0xff]
        %v2527 = vld [vmem:[#allocation15 + $0x178] sm:$0xff]
        %v2528 = vld [vmem:[#allocation15 + $0x180] sm:$0xff]
        %v2529 = vld [vmem:[#allocation15 + $0x188] sm:$0xff]
        %v2530 = vld [vmem:[#allocation15 + $0x190] sm:$0xff]
        %v2531 = vld [vmem:[#allocation15 + $0x198] sm:$0xff]
        %v2532 = vld [vmem:[#allocation15 + $0x1a0] sm:$0xff]
        %v2533 = vld [vmem:[#allocation15 + $0x1a8] sm:$0xff]
        %v2534 = vld [vmem:[#allocation15 + $0x1b0] sm:$0xff]
        %v2535 = vld [vmem:[#allocation15 + $0x1b8] sm:$0xff]
        %v2536 = vld [vmem:[#allocation15 + $0x1c0] sm:$0xff]
        %v2537 = vld [vmem:[#allocation15 + $0x1c8] sm:$0xff]
        %v2538 = vld [vmem:[#allocation15 + $0x1d0] sm:$0xff]
        %v2539 = vld [vmem:[#allocation15 + $0x1d8] sm:$0xff]
        %v2540 = vld [vmem:[#allocation15 + $0x1e0] sm:$0xff]
        %v2541 = vld [vmem:[#allocation15 + $0x1e8] sm:$0xff]
        %v2542 = vld [vmem:[#allocation15 + $0x1f0] sm:$0xff]
        %v2543 = vld [vmem:[#allocation15 + $0x1f8] sm:$0xff]
        %v2544 = vld [vmem:[#allocation15 + $0x200] sm:$0xff]
        %v2545 = vld [vmem:[#allocation15 + $0x208] sm:$0xff]
        %v2546 = vld [vmem:[#allocation15 + $0x210] sm:$0xff]
        %v2547 = vld [vmem:[#allocation15 + $0x218] sm:$0xff]
        %v2548 = vld [vmem:[#allocation15 + $0x220] sm:$0xff]
        %v2549 = vld [vmem:[#allocation15 + $0x228] sm:$0xff]
        %v2550 = vld [vmem:[#allocation15 + $0x230] sm:$0xff]
        %v2551 = vld [vmem:[#allocation15 + $0x238] sm:$0xff]
        %v2552 = vld [vmem:[#allocation15 + $0x240] sm:$0xff]
        %v2553 = vld [vmem:[#allocation15 + $0x248] sm:$0xff]
        %v2554 = vld [vmem:[#allocation15 + $0x250] sm:$0xff]
        %v2555 = vld [vmem:[#allocation15 + $0x258] sm:$0xff]
        %v2556 = vld [vmem:[#allocation15 + $0x260] sm:$0xff]
        %v2557 = vld [vmem:[#allocation15 + $0x268] sm:$0xff]
        %v2558 = vld [vmem:[#allocation15 + $0x270] sm:$0xff]
        %v2559 = vld [vmem:[#allocation15 + $0x278] sm:$0xff]
        %v2560 = vld [vmem:[#allocation15 + $0x280] sm:$0xff]
        %v2561 = vld [vmem:[#allocation15 + $0x288] sm:$0xff]
        %v2562 = vld [vmem:[#allocation15 + $0x290] sm:$0xff]
        %v2563 = vld [vmem:[#allocation15 + $0x298] sm:$0xff]
        %v2564 = vld [vmem:[#allocation15 + $0x2a0] sm:$0xff]
        %v2565 = vld [vmem:[#allocation15 + $0x2a8] sm:$0xff]
        %v2566 = vld [vmem:[#allocation15 + $0x2b0] sm:$0xff]
        %v2567 = vld [vmem:[#allocation15 + $0x2b8] sm:$0xff]
        %v2568 = vld [vmem:[#allocation15 + $0x2c0] sm:$0xff]
        %v2569 = vld [vmem:[#allocation15 + $0x2c8] sm:$0xff]
        %v2570 = vld [vmem:[#allocation15 + $0x2d0] sm:$0xff]
        %v2571 = vld [vmem:[#allocation15 + $0x2d8] sm:$0xff]
        %v2572 = vld [vmem:[#allocation15 + $0x2e0] sm:$0xff]
        %v2573 = vld [vmem:[#allocation15 + $0x2e8] sm:$0xff]
        %v2574 = vld [vmem:[#allocation15 + $0x2f0] sm:$0xff]
        %v2575 = vld [vmem:[#allocation15 + $0x2f8] sm:$0xff]
        %v2576 = vld [vmem:[#allocation15 + $0x300] sm:$0xff]
        %v2577 = vld [vmem:[#allocation15 + $0x308] sm:$0xff]
        %v2578 = vld [vmem:[#allocation15 + $0x310] sm:$0xff]
        %v2579 = vld [vmem:[#allocation15 + $0x318] sm:$0xff]
        %v2580 = vld [vmem:[#allocation15 + $0x320] sm:$0xff]
        %v2581 = vld [vmem:[#allocation15 + $0x328] sm:$0xff]
        %v2582 = vld [vmem:[#allocation15 + $0x330] sm:$0xff]
        %v2583 = vld [vmem:[#allocation15 + $0x338] sm:$0xff]
        %v2584 = vld [vmem:[#allocation15 + $0x340] sm:$0xff]
        %v2585 = vld [vmem:[#allocation15 + $0x348] sm:$0xff]
        %v2586 = vld [vmem:[#allocation15 + $0x350] sm:$0xff]
        %v2587 = vld [vmem:[#allocation15 + $0x358] sm:$0xff]
        %v2588 = vld [vmem:[#allocation15 + $0x360] sm:$0xff]
        %v2589 = vld [vmem:[#allocation15 + $0x368] sm:$0xff]
        %v2590 = vld [vmem:[#allocation15 + $0x370] sm:$0xff]
        %v2591 = vld [vmem:[#allocation15 + $0x378] sm:$0xff]
        %v2592 = vld [vmem:[#allocation15 + $0x380] sm:$0xff]
        %v2593 = vld [vmem:[#allocation15 + $0x388] sm:$0xff]
        %v2594 = vld [vmem:[#allocation15 + $0x390] sm:$0xff]
        %v2595 = vld [vmem:[#allocation15 + $0x398] sm:$0xff]
        %v2596 = vld [vmem:[#allocation15 + $0x3a0] sm:$0xff]
        %v2597 = vld [vmem:[#allocation15 + $0x3a8] sm:$0xff]
        %v2598 = vld [vmem:[#allocation15 + $0x3b0] sm:$0xff]
        %v2599 = vld [vmem:[#allocation15 + $0x3b8] sm:$0xff]
        %v2600 = vld [vmem:[#allocation15 + $0x3c0] sm:$0xff]
        %v2601 = vld [vmem:[#allocation15 + $0x3c8] sm:$0xff]
        %v2602 = vld [vmem:[#allocation15 + $0x3d0] sm:$0xff]
        %v2603 = vld [vmem:[#allocation15 + $0x3d8] sm:$0xff]
        %v2604 = vld [vmem:[#allocation15 + $0x3e0] sm:$0xff]
        %v2605 = vld [vmem:[#allocation15 + $0x3e8] sm:$0xff]
        %v2606 = vld [vmem:[#allocation15 + $0x3f0] sm:$0xff]
        %v2607 = vld [vmem:[#allocation15 + $0x3f8] sm:$0xff]
        %v2736 = vunpack.c.l.b16 %v2480
        %v2737 = vunpack.c.h.b16 %v2480
        %v2738 = vunpack.c.l.b16 %v2481
        %v2739 = vunpack.c.h.b16 %v2481
        %v2740 = vunpack.c.l.b16 %v2482
        %v2741 = vunpack.c.h.b16 %v2482
        %v2742 = vunpack.c.l.b16 %v2483
        %v2743 = vunpack.c.h.b16 %v2483
        %v2744 = vunpack.c.l.b16 %v2484
        %v2745 = vunpack.c.h.b16 %v2484
        %v2746 = vunpack.c.l.b16 %v2485
        %v2747 = vunpack.c.h.b16 %v2485
        %v2748 = vunpack.c.l.b16 %v2486
        %v2749 = vunpack.c.h.b16 %v2486
        %v2750 = vunpack.c.l.b16 %v2487
        %v2751 = vunpack.c.h.b16 %v2487
        %v2752 = vunpack.c.l.b16 %v2488
        %v2753 = vunpack.c.h.b16 %v2488
        %v2754 = vunpack.c.l.b16 %v2489
        %v2755 = vunpack.c.h.b16 %v2489
        %v2756 = vunpack.c.l.b16 %v2490
        %v2757 = vunpack.c.h.b16 %v2490
        %v2758 = vunpack.c.l.b16 %v2491
        %v2759 = vunpack.c.h.b16 %v2491
        %v2760 = vunpack.c.l.b16 %v2492
        %v2761 = vunpack.c.h.b16 %v2492
        %v2762 = vunpack.c.l.b16 %v2493
        %v2763 = vunpack.c.h.b16 %v2493
        %v2764 = vunpack.c.l.b16 %v2494
        %v2765 = vunpack.c.h.b16 %v2494
        %v2766 = vunpack.c.l.b16 %v2495
        %v2767 = vunpack.c.h.b16 %v2495
        %v2768 = vunpack.c.l.b16 %v2496
        %v2769 = vunpack.c.h.b16 %v2496
        %v2770 = vunpack.c.l.b16 %v2497
        %v2771 = vunpack.c.h.b16 %v2497
        %v2772 = vunpack.c.l.b16 %v2498
        %v2773 = vunpack.c.h.b16 %v2498
        %v2774 = vunpack.c.l.b16 %v2499
        %v2775 = vunpack.c.h.b16 %v2499
        %v2776 = vunpack.c.l.b16 %v2500
        %v2777 = vunpack.c.h.b16 %v2500
        %v2778 = vunpack.c.l.b16 %v2501
        %v2779 = vunpack.c.h.b16 %v2501
        %v2780 = vunpack.c.l.b16 %v2502
        %v2781 = vunpack.c.h.b16 %v2502
        %v2782 = vunpack.c.l.b16 %v2503
        %v2783 = vunpack.c.h.b16 %v2503
        %v2784 = vunpack.c.l.b16 %v2504
        %v2785 = vunpack.c.h.b16 %v2504
        %v2786 = vunpack.c.l.b16 %v2505
        %v2787 = vunpack.c.h.b16 %v2505
        %v2788 = vunpack.c.l.b16 %v2506
        %v2789 = vunpack.c.h.b16 %v2506
        %v2790 = vunpack.c.l.b16 %v2507
        %v2791 = vunpack.c.h.b16 %v2507
        %v2792 = vunpack.c.l.b16 %v2508
        %v2793 = vunpack.c.h.b16 %v2508
        %v2794 = vunpack.c.l.b16 %v2509
        %v2795 = vunpack.c.h.b16 %v2509
        %v2796 = vunpack.c.l.b16 %v2510
        %v2797 = vunpack.c.h.b16 %v2510
        %v2798 = vunpack.c.l.b16 %v2511
        %v2799 = vunpack.c.h.b16 %v2511
        %v2800 = vunpack.c.l.b16 %v2512
        %v2801 = vunpack.c.h.b16 %v2512
        %v2802 = vunpack.c.l.b16 %v2513
        %v2803 = vunpack.c.h.b16 %v2513
        %v2804 = vunpack.c.l.b16 %v2514
        %v2805 = vunpack.c.h.b16 %v2514
        %v2806 = vunpack.c.l.b16 %v2515
        %v2807 = vunpack.c.h.b16 %v2515
        %v2808 = vunpack.c.l.b16 %v2516
        %v2809 = vunpack.c.h.b16 %v2516
        %v2810 = vunpack.c.l.b16 %v2517
        %v2811 = vunpack.c.h.b16 %v2517
        %v2812 = vunpack.c.l.b16 %v2518
        %v2813 = vunpack.c.h.b16 %v2518
        %v2814 = vunpack.c.l.b16 %v2519
        %v2815 = vunpack.c.h.b16 %v2519
        %v2816 = vunpack.c.l.b16 %v2520
        %v2817 = vunpack.c.h.b16 %v2520
        %v2818 = vunpack.c.l.b16 %v2521
        %v2819 = vunpack.c.h.b16 %v2521
        %v2820 = vunpack.c.l.b16 %v2522
        %v2821 = vunpack.c.h.b16 %v2522
        %v2822 = vunpack.c.l.b16 %v2523
        %v2823 = vunpack.c.h.b16 %v2523
        %v2824 = vunpack.c.l.b16 %v2524
        %v2825 = vunpack.c.h.b16 %v2524
        %v2826 = vunpack.c.l.b16 %v2525
        %v2827 = vunpack.c.h.b16 %v2525
        %v2828 = vunpack.c.l.b16 %v2526
        %v2829 = vunpack.c.h.b16 %v2526
        %v2830 = vunpack.c.l.b16 %v2527
        %v2831 = vunpack.c.h.b16 %v2527
        %v2832 = vunpack.c.l.b16 %v2528
        %v2833 = vunpack.c.h.b16 %v2528
        %v2834 = vunpack.c.l.b16 %v2529
        %v2835 = vunpack.c.h.b16 %v2529
        %v2836 = vunpack.c.l.b16 %v2530
        %v2837 = vunpack.c.h.b16 %v2530
        %v2838 = vunpack.c.l.b16 %v2531
        %v2839 = vunpack.c.h.b16 %v2531
        %v2840 = vunpack.c.l.b16 %v2532
        %v2841 = vunpack.c.h.b16 %v2532
        %v2842 = vunpack.c.l.b16 %v2533
        %v2843 = vunpack.c.h.b16 %v2533
        %v2844 = vunpack.c.l.b16 %v2534
        %v2845 = vunpack.c.h.b16 %v2534
        %v2846 = vunpack.c.l.b16 %v2535
        %v2847 = vunpack.c.h.b16 %v2535
        %v2848 = vunpack.c.l.b16 %v2536
        %v2849 = vunpack.c.h.b16 %v2536
        %v2850 = vunpack.c.l.b16 %v2537
        %v2851 = vunpack.c.h.b16 %v2537
        %v2852 = vunpack.c.l.b16 %v2538
        %v2853 = vunpack.c.h.b16 %v2538
        %v2854 = vunpack.c.l.b16 %v2539
        %v2855 = vunpack.c.h.b16 %v2539
        %v2856 = vunpack.c.l.b16 %v2540
        %v2857 = vunpack.c.h.b16 %v2540
        %v2858 = vunpack.c.l.b16 %v2541
        %v2859 = vunpack.c.h.b16 %v2541
        %v2860 = vunpack.c.l.b16 %v2542
        %v2861 = vunpack.c.h.b16 %v2542
        %v2862 = vunpack.c.l.b16 %v2543
        %v2863 = vunpack.c.h.b16 %v2543
        %v2864 = vunpack.c.l.b16 %v2544
        %v2865 = vunpack.c.h.b16 %v2544
        %v2866 = vunpack.c.l.b16 %v2545
        %v2867 = vunpack.c.h.b16 %v2545
        %v2868 = vunpack.c.l.b16 %v2546
        %v2869 = vunpack.c.h.b16 %v2546
        %v2870 = vunpack.c.l.b16 %v2547
        %v2871 = vunpack.c.h.b16 %v2547
        %v2872 = vunpack.c.l.b16 %v2548
        %v2873 = vunpack.c.h.b16 %v2548
        %v2874 = vunpack.c.l.b16 %v2549
        %v2875 = vunpack.c.h.b16 %v2549
        %v2876 = vunpack.c.l.b16 %v2550
        %v2877 = vunpack.c.h.b16 %v2550
        %v2878 = vunpack.c.l.b16 %v2551
        %v2879 = vunpack.c.h.b16 %v2551
        %v2880 = vunpack.c.l.b16 %v2552
        %v2881 = vunpack.c.h.b16 %v2552
        %v2882 = vunpack.c.l.b16 %v2553
        %v2883 = vunpack.c.h.b16 %v2553
        %v2884 = vunpack.c.l.b16 %v2554
        %v2885 = vunpack.c.h.b16 %v2554
        %v2886 = vunpack.c.l.b16 %v2555
        %v2887 = vunpack.c.h.b16 %v2555
        %v2888 = vunpack.c.l.b16 %v2556
        %v2889 = vunpack.c.h.b16 %v2556
        %v2890 = vunpack.c.l.b16 %v2557
        %v2891 = vunpack.c.h.b16 %v2557
        %v2892 = vunpack.c.l.b16 %v2558
        %v2893 = vunpack.c.h.b16 %v2558
        %v2894 = vunpack.c.l.b16 %v2559
        %v2895 = vunpack.c.h.b16 %v2559
        %v2896 = vunpack.c.l.b16 %v2560
        %v2897 = vunpack.c.h.b16 %v2560
        %v2898 = vunpack.c.l.b16 %v2561
        %v2899 = vunpack.c.h.b16 %v2561
        %v2900 = vunpack.c.l.b16 %v2562
        %v2901 = vunpack.c.h.b16 %v2562
        %v2902 = vunpack.c.l.b16 %v2563
        %v2903 = vunpack.c.h.b16 %v2563
        %v2904 = vunpack.c.l.b16 %v2564
        %v2905 = vunpack.c.h.b16 %v2564
        %v2906 = vunpack.c.l.b16 %v2565
        %v2907 = vunpack.c.h.b16 %v2565
        %v2908 = vunpack.c.l.b16 %v2566
        %v2909 = vunpack.c.h.b16 %v2566
        %v2910 = vunpack.c.l.b16 %v2567
        %v2911 = vunpack.c.h.b16 %v2567
        %v2912 = vunpack.c.l.b16 %v2568
        %v2913 = vunpack.c.h.b16 %v2568
        %v2914 = vunpack.c.l.b16 %v2569
        %v2915 = vunpack.c.h.b16 %v2569
        %v2916 = vunpack.c.l.b16 %v2570
        %v2917 = vunpack.c.h.b16 %v2570
        %v2918 = vunpack.c.l.b16 %v2571
        %v2919 = vunpack.c.h.b16 %v2571
        %v2920 = vunpack.c.l.b16 %v2572
        %v2921 = vunpack.c.h.b16 %v2572
        %v2922 = vunpack.c.l.b16 %v2573
        %v2923 = vunpack.c.h.b16 %v2573
        %v2924 = vunpack.c.l.b16 %v2574
        %v2925 = vunpack.c.h.b16 %v2574
        %v2926 = vunpack.c.l.b16 %v2575
        %v2927 = vunpack.c.h.b16 %v2575
        %v2928 = vunpack.c.l.b16 %v2576
        %v2929 = vunpack.c.h.b16 %v2576
        %v2930 = vunpack.c.l.b16 %v2577
        %v2931 = vunpack.c.h.b16 %v2577
        %v2932 = vunpack.c.l.b16 %v2578
        %v2933 = vunpack.c.h.b16 %v2578
        %v2934 = vunpack.c.l.b16 %v2579
        %v2935 = vunpack.c.h.b16 %v2579
        %v2936 = vunpack.c.l.b16 %v2580
        %v2937 = vunpack.c.h.b16 %v2580
        %v2938 = vunpack.c.l.b16 %v2581
        %v2939 = vunpack.c.h.b16 %v2581
        %v2940 = vunpack.c.l.b16 %v2582
        %v2941 = vunpack.c.h.b16 %v2582
        %v2942 = vunpack.c.l.b16 %v2583
        %v2943 = vunpack.c.h.b16 %v2583
        %v2944 = vunpack.c.l.b16 %v2584
        %v2945 = vunpack.c.h.b16 %v2584
        %v2946 = vunpack.c.l.b16 %v2585
        %v2947 = vunpack.c.h.b16 %v2585
        %v2948 = vunpack.c.l.b16 %v2586
        %v2949 = vunpack.c.h.b16 %v2586
        %v2950 = vunpack.c.l.b16 %v2587
        %v2951 = vunpack.c.h.b16 %v2587
        %v2952 = vunpack.c.l.b16 %v2588
        %v2953 = vunpack.c.h.b16 %v2588
        %v2954 = vunpack.c.l.b16 %v2589
        %v2955 = vunpack.c.h.b16 %v2589
        %v2956 = vunpack.c.l.b16 %v2590
        %v2957 = vunpack.c.h.b16 %v2590
        %v2958 = vunpack.c.l.b16 %v2591
        %v2959 = vunpack.c.h.b16 %v2591
        %v2960 = vunpack.c.l.b16 %v2592
        %v2961 = vunpack.c.h.b16 %v2592
        %v2962 = vunpack.c.l.b16 %v2593
        %v2963 = vunpack.c.h.b16 %v2593
        %v2964 = vunpack.c.l.b16 %v2594
        %v2965 = vunpack.c.h.b16 %v2594
        %v2966 = vunpack.c.l.b16 %v2595
        %v2967 = vunpack.c.h.b16 %v2595
        %v2968 = vunpack.c.l.b16 %v2596
        %v2969 = vunpack.c.h.b16 %v2596
        %v2970 = vunpack.c.l.b16 %v2597
        %v2971 = vunpack.c.h.b16 %v2597
        %v2972 = vunpack.c.l.b16 %v2598
        %v2973 = vunpack.c.h.b16 %v2598
        %v2974 = vunpack.c.l.b16 %v2599
        %v2975 = vunpack.c.h.b16 %v2599
        %v2976 = vunpack.c.l.b16 %v2600
        %v2977 = vunpack.c.h.b16 %v2600
        %v2978 = vunpack.c.l.b16 %v2601
        %v2979 = vunpack.c.h.b16 %v2601
        %v2980 = vunpack.c.l.b16 %v2602
        %v2981 = vunpack.c.h.b16 %v2602
        %v2982 = vunpack.c.l.b16 %v2603
        %v2983 = vunpack.c.h.b16 %v2603
        %v2984 = vunpack.c.l.b16 %v2604
        %v2985 = vunpack.c.h.b16 %v2604
        %v2986 = vunpack.c.l.b16 %v2605
        %v2987 = vunpack.c.h.b16 %v2605
        %v2988 = vunpack.c.l.b16 %v2606
        %v2989 = vunpack.c.h.b16 %v2606
        %v2990 = vunpack.c.l.b16 %v2607
        %v2991 = vunpack.c.h.b16 %v2607
        %v2992 = vpack.c.b16 %v2744, %v2736
        %v2993 = vpack.c.b16 %v2745, %v2737
        %v2994 = vpack.c.b16 %v2746, %v2738
        %v2995 = vpack.c.b16 %v2747, %v2739
        %v2996 = vpack.c.b16 %v2748, %v2740
        %v2997 = vpack.c.b16 %v2749, %v2741
        %v2998 = vpack.c.b16 %v2750, %v2742
        %v2999 = vpack.c.b16 %v2751, %v2743
        %v3000 = vpack.c.b16 %v2760, %v2752
        %v3001 = vpack.c.b16 %v2761, %v2753
        %v3002 = vpack.c.b16 %v2762, %v2754
        %v3003 = vpack.c.b16 %v2763, %v2755
        %v3004 = vpack.c.b16 %v2764, %v2756
        %v3005 = vpack.c.b16 %v2765, %v2757
        %v3006 = vpack.c.b16 %v2766, %v2758
        %v3007 = vpack.c.b16 %v2767, %v2759
        %v3008 = vpack.c.b16 %v2776, %v2768
        %v3009 = vpack.c.b16 %v2777, %v2769
        %v3010 = vpack.c.b16 %v2778, %v2770
        %v3011 = vpack.c.b16 %v2779, %v2771
        %v3012 = vpack.c.b16 %v2780, %v2772
        %v3013 = vpack.c.b16 %v2781, %v2773
        %v3014 = vpack.c.b16 %v2782, %v2774
        %v3015 = vpack.c.b16 %v2783, %v2775
        %v3016 = vpack.c.b16 %v2792, %v2784
        %v3017 = vpack.c.b16 %v2793, %v2785
        %v3018 = vpack.c.b16 %v2794, %v2786
        %v3019 = vpack.c.b16 %v2795, %v2787
        %v3020 = vpack.c.b16 %v2796, %v2788
        %v3021 = vpack.c.b16 %v2797, %v2789
        %v3022 = vpack.c.b16 %v2798, %v2790
        %v3023 = vpack.c.b16 %v2799, %v2791
        %v3024 = vpack.c.b16 %v2808, %v2800
        %v3025 = vpack.c.b16 %v2809, %v2801
        %v3026 = vpack.c.b16 %v2810, %v2802
        %v3027 = vpack.c.b16 %v2811, %v2803
        %v3028 = vpack.c.b16 %v2812, %v2804
        %v3029 = vpack.c.b16 %v2813, %v2805
        %v3030 = vpack.c.b16 %v2814, %v2806
        %v3031 = vpack.c.b16 %v2815, %v2807
        %v3032 = vpack.c.b16 %v2824, %v2816
        %v3033 = vpack.c.b16 %v2825, %v2817
        %v3034 = vpack.c.b16 %v2826, %v2818
        %v3035 = vpack.c.b16 %v2827, %v2819
        %v3036 = vpack.c.b16 %v2828, %v2820
        %v3037 = vpack.c.b16 %v2829, %v2821
        %v3038 = vpack.c.b16 %v2830, %v2822
        %v3039 = vpack.c.b16 %v2831, %v2823
        %v3040 = vpack.c.b16 %v2840, %v2832
        %v3041 = vpack.c.b16 %v2841, %v2833
        %v3042 = vpack.c.b16 %v2842, %v2834
        %v3043 = vpack.c.b16 %v2843, %v2835
        %v3044 = vpack.c.b16 %v2844, %v2836
        %v3045 = vpack.c.b16 %v2845, %v2837
        %v3046 = vpack.c.b16 %v2846, %v2838
        %v3047 = vpack.c.b16 %v2847, %v2839
        %v3048 = vpack.c.b16 %v2856, %v2848
        %v3049 = vpack.c.b16 %v2857, %v2849
        %v3050 = vpack.c.b16 %v2858, %v2850
        %v3051 = vpack.c.b16 %v2859, %v2851
        %v3052 = vpack.c.b16 %v2860, %v2852
        %v3053 = vpack.c.b16 %v2861, %v2853
        %v3054 = vpack.c.b16 %v2862, %v2854
        %v3055 = vpack.c.b16 %v2863, %v2855
        %v3056 = vpack.c.b16 %v2872, %v2864
        %v3057 = vpack.c.b16 %v2873, %v2865
        %v3058 = vpack.c.b16 %v2874, %v2866
        %v3059 = vpack.c.b16 %v2875, %v2867
        %v3060 = vpack.c.b16 %v2876, %v2868
        %v3061 = vpack.c.b16 %v2877, %v2869
        %v3062 = vpack.c.b16 %v2878, %v2870
        %v3063 = vpack.c.b16 %v2879, %v2871
        %v3064 = vpack.c.b16 %v2888, %v2880
        %v3065 = vpack.c.b16 %v2889, %v2881
        %v3066 = vpack.c.b16 %v2890, %v2882
        %v3067 = vpack.c.b16 %v2891, %v2883
        %v3068 = vpack.c.b16 %v2892, %v2884
        %v3069 = vpack.c.b16 %v2893, %v2885
        %v3070 = vpack.c.b16 %v2894, %v2886
        %v3071 = vpack.c.b16 %v2895, %v2887
        %v3072 = vpack.c.b16 %v2904, %v2896
        %v3073 = vpack.c.b16 %v2905, %v2897
        %v3074 = vpack.c.b16 %v2906, %v2898
        %v3075 = vpack.c.b16 %v2907, %v2899
        %v3076 = vpack.c.b16 %v2908, %v2900
        %v3077 = vpack.c.b16 %v2909, %v2901
        %v3078 = vpack.c.b16 %v2910, %v2902
        %v3079 = vpack.c.b16 %v2911, %v2903
        %v3080 = vpack.c.b16 %v2920, %v2912
        %v3081 = vpack.c.b16 %v2921, %v2913
        %v3082 = vpack.c.b16 %v2922, %v2914
        %v3083 = vpack.c.b16 %v2923, %v2915
        %v3084 = vpack.c.b16 %v2924, %v2916
        %v3085 = vpack.c.b16 %v2925, %v2917
        %v3086 = vpack.c.b16 %v2926, %v2918
        %v3087 = vpack.c.b16 %v2927, %v2919
        %v3088 = vpack.c.b16 %v2936, %v2928
        %v3089 = vpack.c.b16 %v2937, %v2929
        %v3090 = vpack.c.b16 %v2938, %v2930
        %v3091 = vpack.c.b16 %v2939, %v2931
        %v3092 = vpack.c.b16 %v2940, %v2932
        %v3093 = vpack.c.b16 %v2941, %v2933
        %v3094 = vpack.c.b16 %v2942, %v2934
        %v3095 = vpack.c.b16 %v2943, %v2935
        %v3096 = vpack.c.b16 %v2952, %v2944
        %v3097 = vpack.c.b16 %v2953, %v2945
        %v3098 = vpack.c.b16 %v2954, %v2946
        %v3099 = vpack.c.b16 %v2955, %v2947
        %v3100 = vpack.c.b16 %v2956, %v2948
        %v3101 = vpack.c.b16 %v2957, %v2949
        %v3102 = vpack.c.b16 %v2958, %v2950
        %v3103 = vpack.c.b16 %v2959, %v2951
        %v3104 = vpack.c.b16 %v2968, %v2960
        %v3105 = vpack.c.b16 %v2969, %v2961
        %v3106 = vpack.c.b16 %v2970, %v2962
        %v3107 = vpack.c.b16 %v2971, %v2963
        %v3108 = vpack.c.b16 %v2972, %v2964
        %v3109 = vpack.c.b16 %v2973, %v2965
        %v3110 = vpack.c.b16 %v2974, %v2966
        %v3111 = vpack.c.b16 %v2975, %v2967
        %v3112 = vpack.c.b16 %v2984, %v2976
        %v3113 = vpack.c.b16 %v2985, %v2977
        %v3114 = vpack.c.b16 %v2986, %v2978
        %v3115 = vpack.c.b16 %v2987, %v2979
        %v3116 = vpack.c.b16 %v2988, %v2980
        %v3117 = vpack.c.b16 %v2989, %v2981
        %v3118 = vpack.c.b16 %v2990, %v2982
        %v3119 = vpack.c.b16 %v2991, %v2983
        %3248 = vmatprep.subr.bf16.mxu0 %v2993
        %3249 = vmatpush1.bf16.msra.mxu0 %v2992
        %3250 = vmatprep.subr.bf16.mxu0 %v3001
        %3251 = vmatpush1.bf16.msra.mxu0 %v3000
        %3252 = vmatprep.subr.bf16.mxu0 %v3009
        %3253 = vmatpush1.bf16.msra.mxu0 %v3008
        %3254 = vmatprep.subr.bf16.mxu0 %v3017
        %3255 = vmatpush1.bf16.msra.mxu0 %v3016
        %3256 = vmatprep.subr.bf16.mxu0 %v3025
        %3257 = vmatpush1.bf16.msra.mxu0 %v3024
        %3258 = vmatprep.subr.bf16.mxu0 %v3033
        %3259 = vmatpush1.bf16.msra.mxu0 %v3032
        %3260 = vmatprep.subr.bf16.mxu0 %v3041
        %3261 = vmatpush1.bf16.msra.mxu0 %v3040
        %3262 = vmatprep.subr.bf16.mxu0 %v3049
        %3263 = vmatpush1.bf16.msra.mxu0 %v3048
        %3264 = vmatprep.subr.bf16.mxu0 %v3057
        %3265 = vmatpush1.bf16.msra.mxu0 %v3056
        %3266 = vmatprep.subr.bf16.mxu0 %v3065
        %3267 = vmatpush1.bf16.msra.mxu0 %v3064
        %3268 = vmatprep.subr.bf16.mxu0 %v3073
        %3269 = vmatpush1.bf16.msra.mxu0 %v3072
        %3270 = vmatprep.subr.bf16.mxu0 %v3081
        %3271 = vmatpush1.bf16.msra.mxu0 %v3080
        %3272 = vmatprep.subr.bf16.mxu0 %v3089
        %3273 = vmatpush1.bf16.msra.mxu0 %v3088
        %3274 = vmatprep.subr.bf16.mxu0 %v3097
        %3275 = vmatpush1.bf16.msra.mxu0 %v3096
        %3276 = vmatprep.subr.bf16.mxu0 %v3105
        %3277 = vmatpush1.bf16.msra.mxu0 %v3104
        %3278 = vmatprep.subr.bf16.mxu0 %v3113
        %3279 = vmatpush1.bf16.msra.mxu0 %v3112
        %3280 = vmatprep.mubr.bf16.mxu0 %v2479
        %3281 = vmatmul.mubr.bf16.gmra.mrb[0].mxu0 %v2478
        %v3282 = vpop.f32.mrb[0].mxu0
        %v3283 = vadd.f32 0.0, %v3282
        %v3284 = vpop.f32.mrb[0].mxu0
        %v3285 = vadd.f32 0.0, %v3284
        %v3286 = vpop.f32.mrb[0].mxu0
        %v3287 = vadd.f32 0.0, %v3286
        %v3288 = vpop.f32.mrb[0].mxu0
        %v3289 = vadd.f32 0.0, %v3288
        %3290 = vdwg.mxu0
        %3291 = vmatprep.subr.bf16.mxu0 %v2995
        %3292 = vmatpush1.bf16.msra.mxu0 %v2994
        %3293 = vmatprep.subr.bf16.mxu0 %v3003
        %3294 = vmatpush1.bf16.msra.mxu0 %v3002
        %3295 = vmatprep.subr.bf16.mxu0 %v3011
        %3296 = vmatpush1.bf16.msra.mxu0 %v3010
        %3297 = vmatprep.subr.bf16.mxu0 %v3019
        %3298 = vmatpush1.bf16.msra.mxu0 %v3018
        %3299 = vmatprep.subr.bf16.mxu0 %v3027
        %3300 = vmatpush1.bf16.msra.mxu0 %v3026
        %3301 = vmatprep.subr.bf16.mxu0 %v3035
        %3302 = vmatpush1.bf16.msra.mxu0 %v3034
        %3303 = vmatprep.subr.bf16.mxu0 %v3043
        %3304 = vmatpush1.bf16.msra.mxu0 %v3042
        %3305 = vmatprep.subr.bf16.mxu0 %v3051
        %3306 = vmatpush1.bf16.msra.mxu0 %v3050
        %3307 = vmatprep.subr.bf16.mxu0 %v3059
        %3308 = vmatpush1.bf16.msra.mxu0 %v3058
        %3309 = vmatprep.subr.bf16.mxu0 %v3067
        %3310 = vmatpush1.bf16.msra.mxu0 %v3066
        %3311 = vmatprep.subr.bf16.mxu0 %v3075
        %3312 = vmatpush1.bf16.msra.mxu0 %v3074
        %3313 = vmatprep.subr.bf16.mxu0 %v3083
        %3314 = vmatpush1.bf16.msra.mxu0 %v3082
        %3315 = vmatprep.subr.bf16.mxu0 %v3091
        %3316 = vmatpush1.bf16.msra.mxu0 %v3090
        %3317 = vmatprep.subr.bf16.mxu0 %v3099
        %3318 = vmatpush1.bf16.msra.mxu0 %v3098
        %3319 = vmatprep.subr.bf16.mxu0 %v3107
        %3320 = vmatpush1.bf16.msra.mxu0 %v3106
        %3321 = vmatprep.subr.bf16.mxu0 %v3115
        %3322 = vmatpush1.bf16.msra.mxu0 %v3114
        %3323 = vmatprep.mubr.bf16.mxu0 %v2479
        %3324 = vmatmul.mubr.bf16.gmra.mrb[0].mxu0 %v2478
        %v3325 = vpop.f32.mrb[0].mxu0
        %v3326 = vadd.f32 0.0, %v3325
        %v3327 = vpop.f32.mrb[0].mxu0
        %v3328 = vadd.f32 0.0, %v3327
        %v3329 = vpop.f32.mrb[0].mxu0
        %v3330 = vadd.f32 0.0, %v3329
        %v3331 = vpop.f32.mrb[0].mxu0
        %v3332 = vadd.f32 0.0, %v3331
        %3333 = vdwg.mxu0
        %3334 = vmatprep.subr.bf16.mxu0 %v2997
        %3335 = vmatpush1.bf16.msra.mxu0 %v2996
        %3336 = vmatprep.subr.bf16.mxu0 %v3005
        %3337 = vmatpush1.bf16.msra.mxu0 %v3004
        %3338 = vmatprep.subr.bf16.mxu0 %v3013
        %3339 = vmatpush1.bf16.msra.mxu0 %v3012
        %3340 = vmatprep.subr.bf16.mxu0 %v3021
        %3341 = vmatpush1.bf16.msra.mxu0 %v3020
        %3342 = vmatprep.subr.bf16.mxu0 %v3029
        %3343 = vmatpush1.bf16.msra.mxu0 %v3028
        %3344 = vmatprep.subr.bf16.mxu0 %v3037
        %3345 = vmatpush1.bf16.msra.mxu0 %v3036
        %3346 = vmatprep.subr.bf16.mxu0 %v3045
        %3347 = vmatpush1.bf16.msra.mxu0 %v3044
        %3348 = vmatprep.subr.bf16.mxu0 %v3053
        %3349 = vmatpush1.bf16.msra.mxu0 %v3052
        %3350 = vmatprep.subr.bf16.mxu0 %v3061
        %3351 = vmatpush1.bf16.msra.mxu0 %v3060
        %3352 = vmatprep.subr.bf16.mxu0 %v3069
        %3353 = vmatpush1.bf16.msra.mxu0 %v3068
        %3354 = vmatprep.subr.bf16.mxu0 %v3077
        %3355 = vmatpush1.bf16.msra.mxu0 %v3076
        %3356 = vmatprep.subr.bf16.mxu0 %v3085
        %3357 = vmatpush1.bf16.msra.mxu0 %v3084
        %3358 = vmatprep.subr.bf16.mxu0 %v3093
        %3359 = vmatpush1.bf16.msra.mxu0 %v3092
        %3360 = vmatprep.subr.bf16.mxu0 %v3101
        %3361 = vmatpush1.bf16.msra.mxu0 %v3100
        %3362 = vmatprep.subr.bf16.mxu0 %v3109
        %3363 = vmatpush1.bf16.msra.mxu0 %v3108
        %3364 = vmatprep.subr.bf16.mxu0 %v3117
        %3365 = vmatpush1.bf16.msra.mxu0 %v3116
        %3366 = vmatprep.mubr.bf16.mxu0 %v2479
        %3367 = vmatmul.mubr.bf16.gmra.mrb[0].mxu0 %v2478
        %v3368 = vpop.f32.mrb[0].mxu0
        %v3369 = vadd.f32 0.0, %v3368
        %v3370 = vpop.f32.mrb[0].mxu0
        %v3371 = vadd.f32 0.0, %v3370
        %v3372 = vpop.f32.mrb[0].mxu0
        %v3373 = vadd.f32 0.0, %v3372
        %v3374 = vpop.f32.mrb[0].mxu0
        %v3375 = vadd.f32 0.0, %v3374
        %3376 = vdwg.mxu0
        %3377 = vmatprep.subr.bf16.mxu0 %v2999
        %3378 = vmatpush1.bf16.msra.mxu0 %v2998
        %3379 = vmatprep.subr.bf16.mxu0 %v3007
        %3380 = vmatpush1.bf16.msra.mxu0 %v3006
        %3381 = vmatprep.subr.bf16.mxu0 %v3015
        %3382 = vmatpush1.bf16.msra.mxu0 %v3014
        %3383 = vmatprep.subr.bf16.mxu0 %v3023
        %3384 = vmatpush1.bf16.msra.mxu0 %v3022
        %3385 = vmatprep.subr.bf16.mxu0 %v3031
        %3386 = vmatpush1.bf16.msra.mxu0 %v3030
        %3387 = vmatprep.subr.bf16.mxu0 %v3039
        %3388 = vmatpush1.bf16.msra.mxu0 %v3038
        %3389 = vmatprep.subr.bf16.mxu0 %v3047
        %3390 = vmatpush1.bf16.msra.mxu0 %v3046
        %3391 = vmatprep.subr.bf16.mxu0 %v3055
        %3392 = vmatpush1.bf16.msra.mxu0 %v3054
        %3393 = vmatprep.subr.bf16.mxu0 %v3063
        %3394 = vmatpush1.bf16.msra.mxu0 %v3062
        %3395 = vmatprep.subr.bf16.mxu0 %v3071
        %3396 = vmatpush1.bf16.msra.mxu0 %v3070
        %3397 = vmatprep.subr.bf16.mxu0 %v3079
        %3398 = vmatpush1.bf16.msra.mxu0 %v3078
        %3399 = vmatprep.subr.bf16.mxu0 %v3087
        %3400 = vmatpush1.bf16.msra.mxu0 %v3086
        %3401 = vmatprep.subr.bf16.mxu0 %v3095
        %3402 = vmatpush1.bf16.msra.mxu0 %v3094
        %3403 = vmatprep.subr.bf16.mxu0 %v3103
        %3404 = vmatpush1.bf16.msra.mxu0 %v3102
        %3405 = vmatprep.subr.bf16.mxu0 %v3111
        %3406 = vmatpush1.bf16.msra.mxu0 %v3110
        %3407 = vmatprep.subr.bf16.mxu0 %v3119
        %3408 = vmatpush1.bf16.msra.mxu0 %v3118
        %3409 = vmatprep.mubr.bf16.mxu0 %v2479
        %3410 = vmatmul.mubr.bf16.gmra.mrb[0].mxu0 %v2478
        %v3411 = vpop.f32.mrb[0].mxu0
        %v3412 = vadd.f32 0.0, %v3411
        %v3413 = vpop.f32.mrb[0].mxu0
        %v3414 = vadd.f32 0.0, %v3413
        %v3415 = vpop.f32.mrb[0].mxu0
        %v3416 = vadd.f32 0.0, %v3415
        %v3417 = vpop.f32.mrb[0].mxu0
        %v3418 = vadd.f32 0.0, %v3417
        %3419 = vdwg.mxu0
        %v3548 = vunpack.c.l.b16 %v2350
        %v3549 = vunpack.c.h.b16 %v2350
        %v3550 = vunpack.c.l.b16 %v2351
        %v3551 = vunpack.c.h.b16 %v2351
        %v3552 = vunpack.c.l.b16 %v2352
        %v3553 = vunpack.c.h.b16 %v2352
        %v3554 = vunpack.c.l.b16 %v2353
        %v3555 = vunpack.c.h.b16 %v2353
        %v3556 = vunpack.c.l.b16 %v2354
        %v3557 = vunpack.c.h.b16 %v2354
        %v3558 = vunpack.c.l.b16 %v2355
        %v3559 = vunpack.c.h.b16 %v2355
        %v3560 = vunpack.c.l.b16 %v2356
        %v3561 = vunpack.c.h.b16 %v2356
        %v3562 = vunpack.c.l.b16 %v2357
        %v3563 = vunpack.c.h.b16 %v2357
        %v3564 = vunpack.c.l.b16 %v2358
        %v3565 = vunpack.c.h.b16 %v2358
        %v3566 = vunpack.c.l.b16 %v2359
        %v3567 = vunpack.c.h.b16 %v2359
        %v3568 = vunpack.c.l.b16 %v2360
        %v3569 = vunpack.c.h.b16 %v2360
        %v3570 = vunpack.c.l.b16 %v2361
        %v3571 = vunpack.c.h.b16 %v2361
        %v3572 = vunpack.c.l.b16 %v2362
        %v3573 = vunpack.c.h.b16 %v2362
        %v3574 = vunpack.c.l.b16 %v2363
        %v3575 = vunpack.c.h.b16 %v2363
        %v3576 = vunpack.c.l.b16 %v2364
        %v3577 = vunpack.c.h.b16 %v2364
        %v3578 = vunpack.c.l.b16 %v2365
        %v3579 = vunpack.c.h.b16 %v2365
        %v3580 = vunpack.c.l.b16 %v2366
        %v3581 = vunpack.c.h.b16 %v2366
        %v3582 = vunpack.c.l.b16 %v2367
        %v3583 = vunpack.c.h.b16 %v2367
        %v3584 = vunpack.c.l.b16 %v2368
        %v3585 = vunpack.c.h.b16 %v2368
        %v3586 = vunpack.c.l.b16 %v2369
        %v3587 = vunpack.c.h.b16 %v2369
        %v3588 = vunpack.c.l.b16 %v2370
        %v3589 = vunpack.c.h.b16 %v2370
        %v3590 = vunpack.c.l.b16 %v2371
        %v3591 = vunpack.c.h.b16 %v2371
        %v3592 = vunpack.c.l.b16 %v2372
        %v3593 = vunpack.c.h.b16 %v2372
        %v3594 = vunpack.c.l.b16 %v2373
        %v3595 = vunpack.c.h.b16 %v2373
        %v3596 = vunpack.c.l.b16 %v2374
        %v3597 = vunpack.c.h.b16 %v2374
        %v3598 = vunpack.c.l.b16 %v2375
        %v3599 = vunpack.c.h.b16 %v2375
        %v3600 = vunpack.c.l.b16 %v2376
        %v3601 = vunpack.c.h.b16 %v2376
        %v3602 = vunpack.c.l.b16 %v2377
        %v3603 = vunpack.c.h.b16 %v2377
        %v3604 = vunpack.c.l.b16 %v2378
        %v3605 = vunpack.c.h.b16 %v2378
        %v3606 = vunpack.c.l.b16 %v2379
        %v3607 = vunpack.c.h.b16 %v2379
        %v3608 = vunpack.c.l.b16 %v2380
        %v3609 = vunpack.c.h.b16 %v2380
        %v3610 = vunpack.c.l.b16 %v2381
        %v3611 = vunpack.c.h.b16 %v2381
        %v3612 = vunpack.c.l.b16 %v2382
        %v3613 = vunpack.c.h.b16 %v2382
        %v3614 = vunpack.c.l.b16 %v2383
        %v3615 = vunpack.c.h.b16 %v2383
        %v3616 = vunpack.c.l.b16 %v2384
        %v3617 = vunpack.c.h.b16 %v2384
        %v3618 = vunpack.c.l.b16 %v2385
        %v3619 = vunpack.c.h.b16 %v2385
        %v3620 = vunpack.c.l.b16 %v2386
        %v3621 = vunpack.c.h.b16 %v2386
        %v3622 = vunpack.c.l.b16 %v2387
        %v3623 = vunpack.c.h.b16 %v2387
        %v3624 = vunpack.c.l.b16 %v2388
        %v3625 = vunpack.c.h.b16 %v2388
        %v3626 = vunpack.c.l.b16 %v2389
        %v3627 = vunpack.c.h.b16 %v2389
        %v3628 = vunpack.c.l.b16 %v2390
        %v3629 = vunpack.c.h.b16 %v2390
        %v3630 = vunpack.c.l.b16 %v2391
        %v3631 = vunpack.c.h.b16 %v2391
        %v3632 = vunpack.c.l.b16 %v2392
        %v3633 = vunpack.c.h.b16 %v2392
        %v3634 = vunpack.c.l.b16 %v2393
        %v3635 = vunpack.c.h.b16 %v2393
        %v3636 = vunpack.c.l.b16 %v2394
        %v3637 = vunpack.c.h.b16 %v2394
        %v3638 = vunpack.c.l.b16 %v2395
        %v3639 = vunpack.c.h.b16 %v2395
        %v3640 = vunpack.c.l.b16 %v2396
        %v3641 = vunpack.c.h.b16 %v2396
        %v3642 = vunpack.c.l.b16 %v2397
        %v3643 = vunpack.c.h.b16 %v2397
        %v3644 = vunpack.c.l.b16 %v2398
        %v3645 = vunpack.c.h.b16 %v2398
        %v3646 = vunpack.c.l.b16 %v2399
        %v3647 = vunpack.c.h.b16 %v2399
        %v3648 = vunpack.c.l.b16 %v2400
        %v3649 = vunpack.c.h.b16 %v2400
        %v3650 = vunpack.c.l.b16 %v2401
        %v3651 = vunpack.c.h.b16 %v2401
        %v3652 = vunpack.c.l.b16 %v2402
        %v3653 = vunpack.c.h.b16 %v2402
        %v3654 = vunpack.c.l.b16 %v2403
        %v3655 = vunpack.c.h.b16 %v2403
        %v3656 = vunpack.c.l.b16 %v2404
        %v3657 = vunpack.c.h.b16 %v2404
        %v3658 = vunpack.c.l.b16 %v2405
        %v3659 = vunpack.c.h.b16 %v2405
        %v3660 = vunpack.c.l.b16 %v2406
        %v3661 = vunpack.c.h.b16 %v2406
        %v3662 = vunpack.c.l.b16 %v2407
        %v3663 = vunpack.c.h.b16 %v2407
        %v3664 = vunpack.c.l.b16 %v2408
        %v3665 = vunpack.c.h.b16 %v2408
        %v3666 = vunpack.c.l.b16 %v2409
        %v3667 = vunpack.c.h.b16 %v2409
        %v3668 = vunpack.c.l.b16 %v2410
        %v3669 = vunpack.c.h.b16 %v2410
        %v3670 = vunpack.c.l.b16 %v2411
        %v3671 = vunpack.c.h.b16 %v2411
        %v3672 = vunpack.c.l.b16 %v2412
        %v3673 = vunpack.c.h.b16 %v2412
        %v3674 = vunpack.c.l.b16 %v2413
        %v3675 = vunpack.c.h.b16 %v2413
        %v3676 = vunpack.c.l.b16 %v2414
        %v3677 = vunpack.c.h.b16 %v2414
        %v3678 = vunpack.c.l.b16 %v2415
        %v3679 = vunpack.c.h.b16 %v2415
        %v3680 = vunpack.c.l.b16 %v2416
        %v3681 = vunpack.c.h.b16 %v2416
        %v3682 = vunpack.c.l.b16 %v2417
        %v3683 = vunpack.c.h.b16 %v2417
        %v3684 = vunpack.c.l.b16 %v2418
        %v3685 = vunpack.c.h.b16 %v2418
        %v3686 = vunpack.c.l.b16 %v2419
        %v3687 = vunpack.c.h.b16 %v2419
        %v3688 = vunpack.c.l.b16 %v2420
        %v3689 = vunpack.c.h.b16 %v2420
        %v3690 = vunpack.c.l.b16 %v2421
        %v3691 = vunpack.c.h.b16 %v2421
        %v3692 = vunpack.c.l.b16 %v2422
        %v3693 = vunpack.c.h.b16 %v2422
        %v3694 = vunpack.c.l.b16 %v2423
        %v3695 = vunpack.c.h.b16 %v2423
        %v3696 = vunpack.c.l.b16 %v2424
        %v3697 = vunpack.c.h.b16 %v2424
        %v3698 = vunpack.c.l.b16 %v2425
        %v3699 = vunpack.c.h.b16 %v2425
        %v3700 = vunpack.c.l.b16 %v2426
        %v3701 = vunpack.c.h.b16 %v2426
        %v3702 = vunpack.c.l.b16 %v2427
        %v3703 = vunpack.c.h.b16 %v2427
        %v3704 = vunpack.c.l.b16 %v2428
        %v3705 = vunpack.c.h.b16 %v2428
        %v3706 = vunpack.c.l.b16 %v2429
        %v3707 = vunpack.c.h.b16 %v2429
        %v3708 = vunpack.c.l.b16 %v2430
        %v3709 = vunpack.c.h.b16 %v2430
        %v3710 = vunpack.c.l.b16 %v2431
        %v3711 = vunpack.c.h.b16 %v2431
        %v3712 = vunpack.c.l.b16 %v2432
        %v3713 = vunpack.c.h.b16 %v2432
        %v3714 = vunpack.c.l.b16 %v2433
        %v3715 = vunpack.c.h.b16 %v2433
        %v3716 = vunpack.c.l.b16 %v2434
        %v3717 = vunpack.c.h.b16 %v2434
        %v3718 = vunpack.c.l.b16 %v2435
        %v3719 = vunpack.c.h.b16 %v2435
        %v3720 = vunpack.c.l.b16 %v2436
        %v3721 = vunpack.c.h.b16 %v2436
        %v3722 = vunpack.c.l.b16 %v2437
        %v3723 = vunpack.c.h.b16 %v2437
        %v3724 = vunpack.c.l.b16 %v2438
        %v3725 = vunpack.c.h.b16 %v2438
        %v3726 = vunpack.c.l.b16 %v2439
        %v3727 = vunpack.c.h.b16 %v2439
        %v3728 = vunpack.c.l.b16 %v2440
        %v3729 = vunpack.c.h.b16 %v2440
        %v3730 = vunpack.c.l.b16 %v2441
        %v3731 = vunpack.c.h.b16 %v2441
        %v3732 = vunpack.c.l.b16 %v2442
        %v3733 = vunpack.c.h.b16 %v2442
        %v3734 = vunpack.c.l.b16 %v2443
        %v3735 = vunpack.c.h.b16 %v2443
        %v3736 = vunpack.c.l.b16 %v2444
        %v3737 = vunpack.c.h.b16 %v2444
        %v3738 = vunpack.c.l.b16 %v2445
        %v3739 = vunpack.c.h.b16 %v2445
        %v3740 = vunpack.c.l.b16 %v2446
        %v3741 = vunpack.c.h.b16 %v2446
        %v3742 = vunpack.c.l.b16 %v2447
        %v3743 = vunpack.c.h.b16 %v2447
        %v3744 = vunpack.c.l.b16 %v2448
        %v3745 = vunpack.c.h.b16 %v2448
        %v3746 = vunpack.c.l.b16 %v2449
        %v3747 = vunpack.c.h.b16 %v2449
        %v3748 = vunpack.c.l.b16 %v2450
        %v3749 = vunpack.c.h.b16 %v2450
        %v3750 = vunpack.c.l.b16 %v2451
        %v3751 = vunpack.c.h.b16 %v2451
        %v3752 = vunpack.c.l.b16 %v2452
        %v3753 = vunpack.c.h.b16 %v2452
        %v3754 = vunpack.c.l.b16 %v2453
        %v3755 = vunpack.c.h.b16 %v2453
        %v3756 = vunpack.c.l.b16 %v2454
        %v3757 = vunpack.c.h.b16 %v2454
        %v3758 = vunpack.c.l.b16 %v2455
        %v3759 = vunpack.c.h.b16 %v2455
        %v3760 = vunpack.c.l.b16 %v2456
        %v3761 = vunpack.c.h.b16 %v2456
        %v3762 = vunpack.c.l.b16 %v2457
        %v3763 = vunpack.c.h.b16 %v2457
        %v3764 = vunpack.c.l.b16 %v2458
        %v3765 = vunpack.c.h.b16 %v2458
        %v3766 = vunpack.c.l.b16 %v2459
        %v3767 = vunpack.c.h.b16 %v2459
        %v3768 = vunpack.c.l.b16 %v2460
        %v3769 = vunpack.c.h.b16 %v2460
        %v3770 = vunpack.c.l.b16 %v2461
        %v3771 = vunpack.c.h.b16 %v2461
        %v3772 = vunpack.c.l.b16 %v2462
        %v3773 = vunpack.c.h.b16 %v2462
        %v3774 = vunpack.c.l.b16 %v2463
        %v3775 = vunpack.c.h.b16 %v2463
        %v3776 = vunpack.c.l.b16 %v2464
        %v3777 = vunpack.c.h.b16 %v2464
        %v3778 = vunpack.c.l.b16 %v2465
        %v3779 = vunpack.c.h.b16 %v2465
        %v3780 = vunpack.c.l.b16 %v2466
        %v3781 = vunpack.c.h.b16 %v2466
        %v3782 = vunpack.c.l.b16 %v2467
        %v3783 = vunpack.c.h.b16 %v2467
        %v3784 = vunpack.c.l.b16 %v2468
        %v3785 = vunpack.c.h.b16 %v2468
        %v3786 = vunpack.c.l.b16 %v2469
        %v3787 = vunpack.c.h.b16 %v2469
        %v3788 = vunpack.c.l.b16 %v2470
        %v3789 = vunpack.c.h.b16 %v2470
        %v3790 = vunpack.c.l.b16 %v2471
        %v3791 = vunpack.c.h.b16 %v2471
        %v3792 = vunpack.c.l.b16 %v2472
        %v3793 = vunpack.c.h.b16 %v2472
        %v3794 = vunpack.c.l.b16 %v2473
        %v3795 = vunpack.c.h.b16 %v2473
        %v3796 = vunpack.c.l.b16 %v2474
        %v3797 = vunpack.c.h.b16 %v2474
        %v3798 = vunpack.c.l.b16 %v2475
        %v3799 = vunpack.c.h.b16 %v2475
        %v3800 = vunpack.c.l.b16 %v2476
        %v3801 = vunpack.c.h.b16 %v2476
        %v3802 = vunpack.c.l.b16 %v2477
        %v3803 = vunpack.c.h.b16 %v2477
        %v3804 = vpack.c.b16 %v3556, %v3548
        %v3805 = vpack.c.b16 %v3557, %v3549
        %v3806 = vpack.c.b16 %v3558, %v3550
        %v3807 = vpack.c.b16 %v3559, %v3551
        %v3808 = vpack.c.b16 %v3560, %v3552
        %v3809 = vpack.c.b16 %v3561, %v3553
        %v3810 = vpack.c.b16 %v3562, %v3554
        %v3811 = vpack.c.b16 %v3563, %v3555
        %v3812 = vpack.c.b16 %v3572, %v3564
        %v3813 = vpack.c.b16 %v3573, %v3565
        %v3814 = vpack.c.b16 %v3574, %v3566
        %v3815 = vpack.c.b16 %v3575, %v3567
        %v3816 = vpack.c.b16 %v3576, %v3568
        %v3817 = vpack.c.b16 %v3577, %v3569
        %v3818 = vpack.c.b16 %v3578, %v3570
        %v3819 = vpack.c.b16 %v3579, %v3571
        %v3820 = vpack.c.b16 %v3588, %v3580
        %v3821 = vpack.c.b16 %v3589, %v3581
        %v3822 = vpack.c.b16 %v3590, %v3582
        %v3823 = vpack.c.b16 %v3591, %v3583
        %v3824 = vpack.c.b16 %v3592, %v3584
        %v3825 = vpack.c.b16 %v3593, %v3585
        %v3826 = vpack.c.b16 %v3594, %v3586
        %v3827 = vpack.c.b16 %v3595, %v3587
        %v3828 = vpack.c.b16 %v3604, %v3596
        %v3829 = vpack.c.b16 %v3605, %v3597
        %v3830 = vpack.c.b16 %v3606, %v3598
        %v3831 = vpack.c.b16 %v3607, %v3599
        %v3832 = vpack.c.b16 %v3608, %v3600
        %v3833 = vpack.c.b16 %v3609, %v3601
        %v3834 = vpack.c.b16 %v3610, %v3602
        %v3835 = vpack.c.b16 %v3611, %v3603
        %v3836 = vpack.c.b16 %v3620, %v3612
        %v3837 = vpack.c.b16 %v3621, %v3613
        %v3838 = vpack.c.b16 %v3622, %v3614
        %v3839 = vpack.c.b16 %v3623, %v3615
        %v3840 = vpack.c.b16 %v3624, %v3616
        %v3841 = vpack.c.b16 %v3625, %v3617
        %v3842 = vpack.c.b16 %v3626, %v3618
        %v3843 = vpack.c.b16 %v3627, %v3619
        %v3844 = vpack.c.b16 %v3636, %v3628
        %v3845 = vpack.c.b16 %v3637, %v3629
        %v3846 = vpack.c.b16 %v3638, %v3630
        %v3847 = vpack.c.b16 %v3639, %v3631
        %v3848 = vpack.c.b16 %v3640, %v3632
        %v3849 = vpack.c.b16 %v3641, %v3633
        %v3850 = vpack.c.b16 %v3642, %v3634
        %v3851 = vpack.c.b16 %v3643, %v3635
        %v3852 = vpack.c.b16 %v3652, %v3644
        %v3853 = vpack.c.b16 %v3653, %v3645
        %v3854 = vpack.c.b16 %v3654, %v3646
        %v3855 = vpack.c.b16 %v3655, %v3647
        %v3856 = vpack.c.b16 %v3656, %v3648
        %v3857 = vpack.c.b16 %v3657, %v3649
        %v3858 = vpack.c.b16 %v3658, %v3650
        %v3859 = vpack.c.b16 %v3659, %v3651
        %v3860 = vpack.c.b16 %v3668, %v3660
        %v3861 = vpack.c.b16 %v3669, %v3661
        %v3862 = vpack.c.b16 %v3670, %v3662
        %v3863 = vpack.c.b16 %v3671, %v3663
        %v3864 = vpack.c.b16 %v3672, %v3664
        %v3865 = vpack.c.b16 %v3673, %v3665
        %v3866 = vpack.c.b16 %v3674, %v3666
        %v3867 = vpack.c.b16 %v3675, %v3667
        %v3868 = vpack.c.b16 %v3684, %v3676
        %v3869 = vpack.c.b16 %v3685, %v3677
        %v3870 = vpack.c.b16 %v3686, %v3678
        %v3871 = vpack.c.b16 %v3687, %v3679
        %v3872 = vpack.c.b16 %v3688, %v3680
        %v3873 = vpack.c.b16 %v3689, %v3681
        %v3874 = vpack.c.b16 %v3690, %v3682
        %v3875 = vpack.c.b16 %v3691, %v3683
        %v3876 = vpack.c.b16 %v3700, %v3692
        %v3877 = vpack.c.b16 %v3701, %v3693
        %v3878 = vpack.c.b16 %v3702, %v3694
        %v3879 = vpack.c.b16 %v3703, %v3695
        %v3880 = vpack.c.b16 %v3704, %v3696
        %v3881 = vpack.c.b16 %v3705, %v3697
        %v3882 = vpack.c.b16 %v3706, %v3698
        %v3883 = vpack.c.b16 %v3707, %v3699
        %v3884 = vpack.c.b16 %v3716, %v3708
        %v3885 = vpack.c.b16 %v3717, %v3709
        %v3886 = vpack.c.b16 %v3718, %v3710
        %v3887 = vpack.c.b16 %v3719, %v3711
        %v3888 = vpack.c.b16 %v3720, %v3712
        %v3889 = vpack.c.b16 %v3721, %v3713
        %v3890 = vpack.c.b16 %v3722, %v3714
        %v3891 = vpack.c.b16 %v3723, %v3715
        %v3892 = vpack.c.b16 %v3732, %v3724
        %v3893 = vpack.c.b16 %v3733, %v3725
        %v3894 = vpack.c.b16 %v3734, %v3726
        %v3895 = vpack.c.b16 %v3735, %v3727
        %v3896 = vpack.c.b16 %v3736, %v3728
        %v3897 = vpack.c.b16 %v3737, %v3729
        %v3898 = vpack.c.b16 %v3738, %v3730
        %v3899 = vpack.c.b16 %v3739, %v3731
        %v3900 = vpack.c.b16 %v3748, %v3740
        %v3901 = vpack.c.b16 %v3749, %v3741
        %v3902 = vpack.c.b16 %v3750, %v3742
        %v3903 = vpack.c.b16 %v3751, %v3743
        %v3904 = vpack.c.b16 %v3752, %v3744
        %v3905 = vpack.c.b16 %v3753, %v3745
        %v3906 = vpack.c.b16 %v3754, %v3746
        %v3907 = vpack.c.b16 %v3755, %v3747
        %v3908 = vpack.c.b16 %v3764, %v3756
        %v3909 = vpack.c.b16 %v3765, %v3757
        %v3910 = vpack.c.b16 %v3766, %v3758
        %v3911 = vpack.c.b16 %v3767, %v3759
        %v3912 = vpack.c.b16 %v3768, %v3760
        %v3913 = vpack.c.b16 %v3769, %v3761
        %v3914 = vpack.c.b16 %v3770, %v3762
        %v3915 = vpack.c.b16 %v3771, %v3763
        %v3916 = vpack.c.b16 %v3780, %v3772
        %v3917 = vpack.c.b16 %v3781, %v3773
        %v3918 = vpack.c.b16 %v3782, %v3774
        %v3919 = vpack.c.b16 %v3783, %v3775
        %v3920 = vpack.c.b16 %v3784, %v3776
        %v3921 = vpack.c.b16 %v3785, %v3777
        %v3922 = vpack.c.b16 %v3786, %v3778
        %v3923 = vpack.c.b16 %v3787, %v3779
        %v3924 = vpack.c.b16 %v3796, %v3788
        %v3925 = vpack.c.b16 %v3797, %v3789
        %v3926 = vpack.c.b16 %v3798, %v3790
        %v3927 = vpack.c.b16 %v3799, %v3791
        %v3928 = vpack.c.b16 %v3800, %v3792
        %v3929 = vpack.c.b16 %v3801, %v3793
        %v3930 = vpack.c.b16 %v3802, %v3794
        %v3931 = vpack.c.b16 %v3803, %v3795
        %4060 = vmatprep.subr.bf16.mxu0 %v3805
        %4061 = vmatpush1.bf16.msra.mxu0 %v3804
        %4062 = vmatprep.subr.bf16.mxu0 %v3813
        %4063 = vmatpush1.bf16.msra.mxu0 %v3812
        %4064 = vmatprep.subr.bf16.mxu0 %v3821
        %4065 = vmatpush1.bf16.msra.mxu0 %v3820
        %4066 = vmatprep.subr.bf16.mxu0 %v3829
        %4067 = vmatpush1.bf16.msra.mxu0 %v3828
        %4068 = vmatprep.subr.bf16.mxu0 %v3837
        %4069 = vmatpush1.bf16.msra.mxu0 %v3836
        %4070 = vmatprep.subr.bf16.mxu0 %v3845
        %4071 = vmatpush1.bf16.msra.mxu0 %v3844
        %4072 = vmatprep.subr.bf16.mxu0 %v3853
        %4073 = vmatpush1.bf16.msra.mxu0 %v3852
        %4074 = vmatprep.subr.bf16.mxu0 %v3861
        %4075 = vmatpush1.bf16.msra.mxu0 %v3860
        %4076 = vmatprep.subr.bf16.mxu0 %v3869
        %4077 = vmatpush1.bf16.msra.mxu0 %v3868
        %4078 = vmatprep.subr.bf16.mxu0 %v3877
        %4079 = vmatpush1.bf16.msra.mxu0 %v3876
        %4080 = vmatprep.subr.bf16.mxu0 %v3885
        %4081 = vmatpush1.bf16.msra.mxu0 %v3884
        %4082 = vmatprep.subr.bf16.mxu0 %v3893
        %4083 = vmatpush1.bf16.msra.mxu0 %v3892
        %4084 = vmatprep.subr.bf16.mxu0 %v3901
        %4085 = vmatpush1.bf16.msra.mxu0 %v3900
        %4086 = vmatprep.subr.bf16.mxu0 %v3909
        %4087 = vmatpush1.bf16.msra.mxu0 %v3908
        %4088 = vmatprep.subr.bf16.mxu0 %v3917
        %4089 = vmatpush1.bf16.msra.mxu0 %v3916
        %4090 = vmatprep.subr.bf16.mxu0 %v3925
        %4091 = vmatpush1.bf16.msra.mxu0 %v3924
        %4092 = vmatprep.mubr.bf16.mxu0 %v2339
        %4093 = vmatmul.mubr.bf16.gmra.mrb[0].mxu0 %v2338
        %v4094 = vpop.f32.mrb[0].mxu0
        %v4095 = vadd.f32 %v3283, %v4094
        %v4096 = vpop.f32.mrb[0].mxu0
        %v4097 = vadd.f32 %v3285, %v4096
        %v4098 = vpop.f32.mrb[0].mxu0
        %v4099 = vadd.f32 %v3287, %v4098
        %v4100 = vpop.f32.mrb[0].mxu0
        %v4101 = vadd.f32 %v3289, %v4100
        %4102 = vdwg.mxu0
        %4103 = vmatprep.subr.bf16.mxu0 %v3807
        %4104 = vmatpush1.bf16.msra.mxu0 %v3806
        %4105 = vmatprep.subr.bf16.mxu0 %v3815
        %4106 = vmatpush1.bf16.msra.mxu0 %v3814
        %4107 = vmatprep.subr.bf16.mxu0 %v3823
        %4108 = vmatpush1.bf16.msra.mxu0 %v3822
        %4109 = vmatprep.subr.bf16.mxu0 %v3831
        %4110 = vmatpush1.bf16.msra.mxu0 %v3830
        %4111 = vmatprep.subr.bf16.mxu0 %v3839
        %4112 = vmatpush1.bf16.msra.mxu0 %v3838
        %4113 = vmatprep.subr.bf16.mxu0 %v3847
        %4114 = vmatpush1.bf16.msra.mxu0 %v3846
        %4115 = vmatprep.subr.bf16.mxu0 %v3855
        %4116 = vmatpush1.bf16.msra.mxu0 %v3854
        %4117 = vmatprep.subr.bf16.mxu0 %v3863
        %4118 = vmatpush1.bf16.msra.mxu0 %v3862
        %4119 = vmatprep.subr.bf16.mxu0 %v3871
        %4120 = vmatpush1.bf16.msra.mxu0 %v3870
        %4121 = vmatprep.subr.bf16.mxu0 %v3879
        %4122 = vmatpush1.bf16.msra.mxu0 %v3878
        %4123 = vmatprep.subr.bf16.mxu0 %v3887
        %4124 = vmatpush1.bf16.msra.mxu0 %v3886
        %4125 = vmatprep.subr.bf16.mxu0 %v3895
        %4126 = vmatpush1.bf16.msra.mxu0 %v3894
        %4127 = vmatprep.subr.bf16.mxu0 %v3903
        %4128 = vmatpush1.bf16.msra.mxu0 %v3902
        %4129 = vmatprep.subr.bf16.mxu0 %v3911
        %4130 = vmatpush1.bf16.msra.mxu0 %v3910
        %4131 = vmatprep.subr.bf16.mxu0 %v3919
        %4132 = vmatpush1.bf16.msra.mxu0 %v3918
        %4133 = vmatprep.subr.bf16.mxu0 %v3927
        %4134 = vmatpush1.bf16.msra.mxu0 %v3926
        %4135 = vmatprep.mubr.bf16.mxu0 %v2339
        %4136 = vmatmul.mubr.bf16.gmra.mrb[0].mxu0 %v2338
        %v4137 = vpop.f32.mrb[0].mxu0
        %v4138 = vadd.f32 %v3326, %v4137
        %v4139 = vpop.f32.mrb[0].mxu0
        %v4140 = vadd.f32 %v3328, %v4139
        %v4141 = vpop.f32.mrb[0].mxu0
        %v4142 = vadd.f32 %v3330, %v4141
        %v4143 = vpop.f32.mrb[0].mxu0
        %v4144 = vadd.f32 %v3332, %v4143
        %4145 = vdwg.mxu0
        %4146 = vmatprep.subr.bf16.mxu0 %v3809
        %4147 = vmatpush1.bf16.msra.mxu0 %v3808
        %4148 = vmatprep.subr.bf16.mxu0 %v3817
        %4149 = vmatpush1.bf16.msra.mxu0 %v3816
        %4150 = vmatprep.subr.bf16.mxu0 %v3825
        %4151 = vmatpush1.bf16.msra.mxu0 %v3824
        %4152 = vmatprep.subr.bf16.mxu0 %v3833
        %4153 = vmatpush1.bf16.msra.mxu0 %v3832
        %4154 = vmatprep.subr.bf16.mxu0 %v3841
        %4155 = vmatpush1.bf16.msra.mxu0 %v3840
        %4156 = vmatprep.subr.bf16.mxu0 %v3849
        %4157 = vmatpush1.bf16.msra.mxu0 %v3848
        %4158 = vmatprep.subr.bf16.mxu0 %v3857
        %4159 = vmatpush1.bf16.msra.mxu0 %v3856
        %4160 = vmatprep.subr.bf16.mxu0 %v3865
        %4161 = vmatpush1.bf16.msra.mxu0 %v3864
        %4162 = vmatprep.subr.bf16.mxu0 %v3873
        %4163 = vmatpush1.bf16.msra.mxu0 %v3872
        %4164 = vmatprep.subr.bf16.mxu0 %v3881
        %4165 = vmatpush1.bf16.msra.mxu0 %v3880
        %4166 = vmatprep.subr.bf16.mxu0 %v3889
        %4167 = vmatpush1.bf16.msra.mxu0 %v3888
        %4168 = vmatprep.subr.bf16.mxu0 %v3897
        %4169 = vmatpush1.bf16.msra.mxu0 %v3896
        %4170 = vmatprep.subr.bf16.mxu0 %v3905
        %4171 = vmatpush1.bf16.msra.mxu0 %v3904
        %4172 = vmatprep.subr.bf16.mxu0 %v3913
        %4173 = vmatpush1.bf16.msra.mxu0 %v3912
        %4174 = vmatprep.subr.bf16.mxu0 %v3921
        %4175 = vmatpush1.bf16.msra.mxu0 %v3920
        %4176 = vmatprep.subr.bf16.mxu0 %v3929
        %4177 = vmatpush1.bf16.msra.mxu0 %v3928
        %4178 = vmatprep.mubr.bf16.mxu0 %v2339
        %4179 = vmatmul.mubr.bf16.gmra.mrb[0].mxu0 %v2338
        %v4180 = vpop.f32.mrb[0].mxu0
        %v4181 = vadd.f32 %v3369, %v4180
        %v4182 = vpop.f32.mrb[0].mxu0
        %v4183 = vadd.f32 %v3371, %v4182
        %v4184 = vpop.f32.mrb[0].mxu0
        %v4185 = vadd.f32 %v3373, %v4184
        %v4186 = vpop.f32.mrb[0].mxu0
        %v4187 = vadd.f32 %v3375, %v4186
        %4188 = vdwg.mxu0
        %4189 = vmatprep.subr.bf16.mxu0 %v3811
        %4190 = vmatpush1.bf16.msra.mxu0 %v3810
        %4191 = vmatprep.subr.bf16.mxu0 %v3819
        %4192 = vmatpush1.bf16.msra.mxu0 %v3818
        %4193 = vmatprep.subr.bf16.mxu0 %v3827
        %4194 = vmatpush1.bf16.msra.mxu0 %v3826
        %4195 = vmatprep.subr.bf16.mxu0 %v3835
        %4196 = vmatpush1.bf16.msra.mxu0 %v3834
        %4197 = vmatprep.subr.bf16.mxu0 %v3843
        %4198 = vmatpush1.bf16.msra.mxu0 %v3842
        %4199 = vmatprep.subr.bf16.mxu0 %v3851
        %4200 = vmatpush1.bf16.msra.mxu0 %v3850
        %4201 = vmatprep.subr.bf16.mxu0 %v3859
        %4202 = vmatpush1.bf16.msra.mxu0 %v3858
        %4203 = vmatprep.subr.bf16.mxu0 %v3867
        %4204 = vmatpush1.bf16.msra.mxu0 %v3866
        %4205 = vmatprep.subr.bf16.mxu0 %v3875
        %4206 = vmatpush1.bf16.msra.mxu0 %v3874
        %4207 = vmatprep.subr.bf16.mxu0 %v3883
        %4208 = vmatpush1.bf16.msra.mxu0 %v3882
        %4209 = vmatprep.subr.bf16.mxu0 %v3891
        %4210 = vmatpush1.bf16.msra.mxu0 %v3890
        %4211 = vmatprep.subr.bf16.mxu0 %v3899
        %4212 = vmatpush1.bf16.msra.mxu0 %v3898
        %4213 = vmatprep.subr.bf16.mxu0 %v3907
        %4214 = vmatpush1.bf16.msra.mxu0 %v3906
        %4215 = vmatprep.subr.bf16.mxu0 %v3915
        %4216 = vmatpush1.bf16.msra.mxu0 %v3914
        %4217 = vmatprep.subr.bf16.mxu0 %v3923
        %4218 = vmatpush1.bf16.msra.mxu0 %v3922
        %4219 = vmatprep.subr.bf16.mxu0 %v3931
        %4220 = vmatpush1.bf16.msra.mxu0 %v3930
        %4221 = vmatprep.mubr.bf16.mxu0 %v2339
        %4222 = vmatmul.mubr.bf16.gmra.mrb[0].mxu0 %v2338
        %v4223 = vpop.f32.mrb[0].mxu0
        %v4224 = vadd.f32 %v3412, %v4223
        %v4225 = vpop.f32.mrb[0].mxu0
        %v4226 = vadd.f32 %v3414, %v4225
        %v4227 = vpop.f32.mrb[0].mxu0
        %v4228 = vadd.f32 %v3416, %v4227
        %v4229 = vpop.f32.mrb[0].mxu0
        %v4230 = vadd.f32 %v3418, %v4229
        %4231 = vdwg.mxu0
        %v4232 = vld [vmem:[%s8] sm:$0xff]
        %v4234 = vlaneseq
        %v4235 = vshrl.u32 %v4234, 7
        %v4236 = vsub.s32 0, %v4235
        %v4237 = vrot.slane %v4232, %v4236
        %v4238 = vlaneseq
        %v4239 = vshrl.u32 %v4238, 7
        %v4240 = vsub.s32 1, %v4239
        %v4241 = vrot.slane %v4232, %v4240
        %v4242 = vlaneseq
        %v4243 = vshrl.u32 %v4242, 7
        %v4244 = vsub.s32 2, %v4243
        %v4245 = vrot.slane %v4232, %v4244
        %v4246 = vlaneseq
        %v4247 = vshrl.u32 %v4246, 7
        %v4248 = vsub.s32 3, %v4247
        %v4249 = vrot.slane %v4232, %v4248
        %v4250 = vlaneseq
        %v4251 = vshrl.u32 %v4250, 7
        %v4252 = vsub.s32 4, %v4251
        %v4253 = vrot.slane %v4232, %v4252
        %v4254 = vlaneseq
        %v4255 = vshrl.u32 %v4254, 7
        %v4256 = vsub.s32 5, %v4255
        %v4257 = vrot.slane %v4232, %v4256
        %v4258 = vlaneseq
        %v4259 = vshrl.u32 %v4258, 7
        %v4260 = vsub.s32 6, %v4259
        %v4261 = vrot.slane %v4232, %v4260
        %v4262 = vlaneseq
        %v4263 = vshrl.u32 %v4262, 7
        %v4264 = vsub.s32 7, %v4263
        %v4265 = vrot.slane %v4232, %v4264
        %v4274 = vadd.f32 %v4095, %v4237
        %v4275 = vadd.f32 %v4097, %v4241
        %v4276 = vadd.f32 %v4138, %v4245
        %v4277 = vadd.f32 %v4140, %v4249
        %v4278 = vadd.f32 %v4181, %v4253
        %v4279 = vadd.f32 %v4183, %v4257
        %v4280 = vadd.f32 %v4224, %v4261
        %v4281 = vadd.f32 %v4226, %v4265
        %v4282 = vadd.f32 %v4099, %v4237
        %v4283 = vadd.f32 %v4101, %v4241
        %v4284 = vadd.f32 %v4142, %v4245
        %v4285 = vadd.f32 %v4144, %v4249
        %v4286 = vadd.f32 %v4185, %v4253
        %v4287 = vadd.f32 %v4187, %v4257
        %v4288 = vadd.f32 %v4228, %v4261
        %v4289 = vadd.f32 %v4230, %v4265
        %v4290 = vxor.u32 %v4274, 2147483648
        %v4291 = vxor.u32 %v4275, 2147483648
        %v4292 = vxor.u32 %v4282, 2147483648
        %v4293 = vxor.u32 %v4283, 2147483648
        %v4294 = vmul.f32 %v4290, 1.442695
        %v4295 = vpow.pop %v4294
        %v4296 = vmul.f32 %v4291, 1.442695
        %v4297 = vpow.pop %v4296
        %v4298 = vmul.f32 %v4292, 1.442695
        %v4299 = vpow.pop %v4298
        %v4300 = vmul.f32 %v4293, 1.442695
        %v4301 = vpow.pop %v4300
        %v4302 = vadd.f32 %v4295, 1.0
        %v4303 = vadd.f32 %v4297, 1.0
        %v4304 = vadd.f32 %v4299, 1.0
        %v4305 = vadd.f32 %v4301, 1.0
        %v4306 = vrcp.pop %v4302
        %v4307 = vmul.f32 1.0, %v4306
        %v4308 = vrcp.pop %v4303
        %v4309 = vmul.f32 1.0, %v4308
        %v4310 = vrcp.pop %v4304
        %v4311 = vmul.f32 1.0, %v4310
        %v4312 = vrcp.pop %v4305
        %v4313 = vmul.f32 1.0, %v4312
        %v4314 = vxor.u32 %v4276, 2147483648
        %v4315 = vxor.u32 %v4277, 2147483648
        %v4316 = vxor.u32 %v4284, 2147483648
        %v4317 = vxor.u32 %v4285, 2147483648
        %v4318 = vmul.f32 %v4314, 1.442695
        %v4319 = vpow.pop %v4318
        %v4320 = vmul.f32 %v4315, 1.442695
        %v4321 = vpow.pop %v4320
        %v4322 = vmul.f32 %v4316, 1.442695
        %v4323 = vpow.pop %v4322
        %v4324 = vmul.f32 %v4317, 1.442695
        %v4325 = vpow.pop %v4324
        %v4326 = vadd.f32 %v4319, 1.0
        %v4327 = vadd.f32 %v4321, 1.0
        %v4328 = vadd.f32 %v4323, 1.0
        %v4329 = vadd.f32 %v4325, 1.0
        %v4330 = vrcp.pop %v4326
        %v4331 = vmul.f32 1.0, %v4330
        %v4332 = vrcp.pop %v4327
        %v4333 = vmul.f32 1.0, %v4332
        %v4334 = vrcp.pop %v4328
        %v4335 = vmul.f32 1.0, %v4334
        %v4336 = vrcp.pop %v4329
        %v4337 = vmul.f32 1.0, %v4336
        %v4338 = vtanh.pop %v4278
        %v4339 = vtanh.pop %v4279
        %v4340 = vtanh.pop %v4286
        %v4341 = vtanh.pop %v4287
        %v4342 = vxor.u32 %v4280, 2147483648
        %v4343 = vxor.u32 %v4281, 2147483648
        %v4344 = vxor.u32 %v4288, 2147483648
        %v4345 = vxor.u32 %v4289, 2147483648
        %v4346 = vmul.f32 %v4342, 1.442695
        %v4347 = vpow.pop %v4346
        %v4348 = vmul.f32 %v4343, 1.442695
        %v4349 = vpow.pop %v4348
        %v4350 = vmul.f32 %v4344, 1.442695
        %v4351 = vpow.pop %v4350
        %v4352 = vmul.f32 %v4345, 1.442695
        %v4353 = vpow.pop %v4352
        %v4354 = vadd.f32 %v4347, 1.0
        %v4355 = vadd.f32 %v4349, 1.0
        %v4356 = vadd.f32 %v4351, 1.0
        %v4357 = vadd.f32 %v4353, 1.0
        %v4358 = vrcp.pop %v4354
        %v4359 = vmul.f32 1.0, %v4358
        %v4360 = vrcp.pop %v4355
        %v4361 = vmul.f32 1.0, %v4360
        %v4362 = vrcp.pop %v4356
        %v4363 = vmul.f32 1.0, %v4362
        %v4364 = vrcp.pop %v4357
        %v4365 = vmul.f32 1.0, %v4364
        %v4366 = vmul.f32 %v4331, %v2346
        %v4367 = vmul.f32 %v4333, %v2347
        %v4368 = vmul.f32 %v4335, %v2348
        %v4369 = vmul.f32 %v4337, %v2349
        %v4370 = vmul.f32 %v4307, %v4338
        %v4371 = vmul.f32 %v4309, %v4339
        %v4372 = vmul.f32 %v4311, %v4340
        %v4373 = vmul.f32 %v4313, %v4341
        %v4374 = vadd.f32 %v4366, %v4370
        %v4375 = vadd.f32 %v4367, %v4371
        %v4376 = vadd.f32 %v4368, %v4372
        %v4377 = vadd.f32 %v4369, %v4373
        %v4378 = vtanh.pop %v4374
        %v4379 = vtanh.pop %v4375
        %v4380 = vtanh.pop %v4376
        %v4381 = vtanh.pop %v4377
        %v4382 = vmul.f32 %v4359, %v4378
        %v4383 = vmul.f32 %v4361, %v4379
        %v4384 = vmul.f32 %v4363, %v4380
        %v4385 = vmul.f32 %v4365, %v4381
        %4386 = vst [vmem:[%s2340] sm:$0xff] %v4382
        %4387 = vst [vmem:[%s2340 + $0x8] sm:$0xff] %v4383
        %4388 = vst [vmem:[%s2340 + $0x10] sm:$0xff] %v4384
        %4389 = vst [vmem:[%s2340 + $0x18] sm:$0xff] %v4385
        %4390 = vst [vmem:[%s2345] sm:$0xff] %v4374
        %4391 = vst [vmem:[%s2345 + $0x8] sm:$0xff] %v4375
        %4392 = vst [vmem:[%s2345 + $0x10] sm:$0xff] %v4376
        %4393 = vst [vmem:[%s2345 + $0x18] sm:$0xff] %v4377
        %v4394 = vpack.c.bf16 %v4384, %v4382
        %v4395 = vpack.c.bf16 %v4385, %v4383
        %v4396 = vld [vmem:[#allocation16] sm:$0xff]
        %v4397 = vld [vmem:[#allocation16 + $0x8] sm:$0xff]
        %v4398 = vld [vmem:[#allocation16 + $0x10] sm:$0xff]
        %v4399 = vld [vmem:[#allocation16 + $0x18] sm:$0xff]
        %v4400 = vld [vmem:[#allocation16 + $0x20] sm:$0xff]
        %v4401 = vld [vmem:[#allocation16 + $0x28] sm:$0xff]
        %v4402 = vld [vmem:[#allocation16 + $0x30] sm:$0xff]
        %v4403 = vld [vmem:[#allocation16 + $0x38] sm:$0xff]
        %v4404 = vld [vmem:[#allocation16 + $0x40] sm:$0xff]
        %v4405 = vld [vmem:[#allocation16 + $0x48] sm:$0xff]
        %v4406 = vld [vmem:[#allocation16 + $0x50] sm:$0xff]
        %v4407 = vld [vmem:[#allocation16 + $0x58] sm:$0xff]
        %v4408 = vld [vmem:[#allocation16 + $0x60] sm:$0xff]
        %v4409 = vld [vmem:[#allocation16 + $0x68] sm:$0xff]
        %v4410 = vld [vmem:[#allocation16 + $0x70] sm:$0xff]
        %v4411 = vld [vmem:[#allocation16 + $0x78] sm:$0xff]
        %v4412 = vld [vmem:[#allocation16 + $0x80] sm:$0xff]
        %v4413 = vld [vmem:[#allocation16 + $0x88] sm:$0xff]
        %v4414 = vld [vmem:[#allocation16 + $0x90] sm:$0xff]
        %v4415 = vld [vmem:[#allocation16 + $0x98] sm:$0xff]
        %v4416 = vld [vmem:[#allocation16 + $0xa0] sm:$0xff]
        %v4417 = vld [vmem:[#allocation16 + $0xa8] sm:$0xff]
        %v4418 = vld [vmem:[#allocation16 + $0xb0] sm:$0xff]
        %v4419 = vld [vmem:[#allocation16 + $0xb8] sm:$0xff]
        %v4420 = vld [vmem:[#allocation16 + $0xc0] sm:$0xff]
        %v4421 = vld [vmem:[#allocation16 + $0xc8] sm:$0xff]
        %v4422 = vld [vmem:[#allocation16 + $0xd0] sm:$0xff]
        %v4423 = vld [vmem:[#allocation16 + $0xd8] sm:$0xff]
        %v4424 = vld [vmem:[#allocation16 + $0xe0] sm:$0xff]
        %v4425 = vld [vmem:[#allocation16 + $0xe8] sm:$0xff]
        %v4426 = vld [vmem:[#allocation16 + $0xf0] sm:$0xff]
        %v4427 = vld [vmem:[#allocation16 + $0xf8] sm:$0xff]
        %v4428 = vld [vmem:[%s10] sm:$0x3]
        %v4430 = vlaneseq
        %v4431 = vshrl.u32 %v4430, 7
        %v4432 = vsub.s32 0, %v4431
        %v4433 = vrot.slane %v4428, %v4432
        %v4434 = vlaneseq
        %v4435 = vshrl.u32 %v4434, 7
        %v4436 = vsub.s32 1, %v4435
        %v4437 = vrot.slane %v4428, %v4436
        %v4472 = vunpack.c.l.b16 %v4396
        %v4473 = vunpack.c.h.b16 %v4396
        %v4474 = vunpack.c.l.b16 %v4397
        %v4475 = vunpack.c.h.b16 %v4397
        %v4476 = vunpack.c.l.b16 %v4398
        %v4477 = vunpack.c.h.b16 %v4398
        %v4478 = vunpack.c.l.b16 %v4399
        %v4479 = vunpack.c.h.b16 %v4399
        %v4480 = vunpack.c.l.b16 %v4400
        %v4481 = vunpack.c.h.b16 %v4400
        %v4482 = vunpack.c.l.b16 %v4401
        %v4483 = vunpack.c.h.b16 %v4401
        %v4484 = vunpack.c.l.b16 %v4402
        %v4485 = vunpack.c.h.b16 %v4402
        %v4486 = vunpack.c.l.b16 %v4403
        %v4487 = vunpack.c.h.b16 %v4403
        %v4488 = vunpack.c.l.b16 %v4404
        %v4489 = vunpack.c.h.b16 %v4404
        %v4490 = vunpack.c.l.b16 %v4405
        %v4491 = vunpack.c.h.b16 %v4405
        %v4492 = vunpack.c.l.b16 %v4406
        %v4493 = vunpack.c.h.b16 %v4406
        %v4494 = vunpack.c.l.b16 %v4407
        %v4495 = vunpack.c.h.b16 %v4407
        %v4496 = vunpack.c.l.b16 %v4408
        %v4497 = vunpack.c.h.b16 %v4408
        %v4498 = vunpack.c.l.b16 %v4409
        %v4499 = vunpack.c.h.b16 %v4409
        %v4500 = vunpack.c.l.b16 %v4410
        %v4501 = vunpack.c.h.b16 %v4410
        %v4502 = vunpack.c.l.b16 %v4411
        %v4503 = vunpack.c.h.b16 %v4411
        %v4504 = vunpack.c.l.b16 %v4412
        %v4505 = vunpack.c.h.b16 %v4412
        %v4506 = vunpack.c.l.b16 %v4413
        %v4507 = vunpack.c.h.b16 %v4413
        %v4508 = vunpack.c.l.b16 %v4414
        %v4509 = vunpack.c.h.b16 %v4414
        %v4510 = vunpack.c.l.b16 %v4415
        %v4511 = vunpack.c.h.b16 %v4415
        %v4512 = vunpack.c.l.b16 %v4416
        %v4513 = vunpack.c.h.b16 %v4416
        %v4514 = vunpack.c.l.b16 %v4417
        %v4515 = vunpack.c.h.b16 %v4417
        %v4516 = vunpack.c.l.b16 %v4418
        %v4517 = vunpack.c.h.b16 %v4418
        %v4518 = vunpack.c.l.b16 %v4419
        %v4519 = vunpack.c.h.b16 %v4419
        %v4520 = vunpack.c.l.b16 %v4420
        %v4521 = vunpack.c.h.b16 %v4420
        %v4522 = vunpack.c.l.b16 %v4421
        %v4523 = vunpack.c.h.b16 %v4421
        %v4524 = vunpack.c.l.b16 %v4422
        %v4525 = vunpack.c.h.b16 %v4422
        %v4526 = vunpack.c.l.b16 %v4423
        %v4527 = vunpack.c.h.b16 %v4423
        %v4528 = vunpack.c.l.b16 %v4424
        %v4529 = vunpack.c.h.b16 %v4424
        %v4530 = vunpack.c.l.b16 %v4425
        %v4531 = vunpack.c.h.b16 %v4425
        %v4532 = vunpack.c.l.b16 %v4426
        %v4533 = vunpack.c.h.b16 %v4426
        %v4534 = vunpack.c.l.b16 %v4427
        %v4535 = vunpack.c.h.b16 %v4427
        %v4536 = vpack.c.b16 %v4474, %v4472
        %v4537 = vpack.c.b16 %v4475, %v4473
        %v4538 = vpack.c.b16 %v4478, %v4476
        %v4539 = vpack.c.b16 %v4479, %v4477
        %v4540 = vpack.c.b16 %v4482, %v4480
        %v4541 = vpack.c.b16 %v4483, %v4481
        %v4542 = vpack.c.b16 %v4486, %v4484
        %v4543 = vpack.c.b16 %v4487, %v4485
        %v4544 = vpack.c.b16 %v4490, %v4488
        %v4545 = vpack.c.b16 %v4491, %v4489
        %v4546 = vpack.c.b16 %v4494, %v4492
        %v4547 = vpack.c.b16 %v4495, %v4493
        %v4548 = vpack.c.b16 %v4498, %v4496
        %v4549 = vpack.c.b16 %v4499, %v4497
        %v4550 = vpack.c.b16 %v4502, %v4500
        %v4551 = vpack.c.b16 %v4503, %v4501
        %v4552 = vpack.c.b16 %v4506, %v4504
        %v4553 = vpack.c.b16 %v4507, %v4505
        %v4554 = vpack.c.b16 %v4510, %v4508
        %v4555 = vpack.c.b16 %v4511, %v4509
        %v4556 = vpack.c.b16 %v4514, %v4512
        %v4557 = vpack.c.b16 %v4515, %v4513
        %v4558 = vpack.c.b16 %v4518, %v4516
        %v4559 = vpack.c.b16 %v4519, %v4517
        %v4560 = vpack.c.b16 %v4522, %v4520
        %v4561 = vpack.c.b16 %v4523, %v4521
        %v4562 = vpack.c.b16 %v4526, %v4524
        %v4563 = vpack.c.b16 %v4527, %v4525
        %v4564 = vpack.c.b16 %v4530, %v4528
        %v4565 = vpack.c.b16 %v4531, %v4529
        %v4566 = vpack.c.b16 %v4534, %v4532
        %v4567 = vpack.c.b16 %v4535, %v4533
        %4600 = vmatprep.subr.bf16.mxu0 %v4537
        %4601 = vmatpush1.bf16.msra.mxu0 %v4536
        %4602 = vmatprep.subr.bf16.mxu0 %v4539
        %4603 = vmatpush1.bf16.msra.mxu0 %v4538
        %4604 = vmatprep.subr.bf16.mxu0 %v4541
        %4605 = vmatpush1.bf16.msra.mxu0 %v4540
        %4606 = vmatprep.subr.bf16.mxu0 %v4543
        %4607 = vmatpush1.bf16.msra.mxu0 %v4542
        %4608 = vmatprep.subr.bf16.mxu0 %v4545
        %4609 = vmatpush1.bf16.msra.mxu0 %v4544
        %4610 = vmatprep.subr.bf16.mxu0 %v4547
        %4611 = vmatpush1.bf16.msra.mxu0 %v4546
        %4612 = vmatprep.subr.bf16.mxu0 %v4549
        %4613 = vmatpush1.bf16.msra.mxu0 %v4548
        %4614 = vmatprep.subr.bf16.mxu0 %v4551
        %4615 = vmatpush1.bf16.msra.mxu0 %v4550
        %4616 = vmatprep.subr.bf16.mxu0 %v4553
        %4617 = vmatpush1.bf16.msra.mxu0 %v4552
        %4618 = vmatprep.subr.bf16.mxu0 %v4555
        %4619 = vmatpush1.bf16.msra.mxu0 %v4554
        %4620 = vmatprep.subr.bf16.mxu0 %v4557
        %4621 = vmatpush1.bf16.msra.mxu0 %v4556
        %4622 = vmatprep.subr.bf16.mxu0 %v4559
        %4623 = vmatpush1.bf16.msra.mxu0 %v4558
        %4624 = vmatprep.subr.bf16.mxu0 %v4561
        %4625 = vmatpush1.bf16.msra.mxu0 %v4560
        %4626 = vmatprep.subr.bf16.mxu0 %v4563
        %4627 = vmatpush1.bf16.msra.mxu0 %v4562
        %4628 = vmatprep.subr.bf16.mxu0 %v4565
        %4629 = vmatpush1.bf16.msra.mxu0 %v4564
        %4630 = vmatprep.subr.bf16.mxu0 %v4567
        %4631 = vmatpush1.bf16.msra.mxu0 %v4566
        %4632 = vmatprep.mubr.bf16.mxu0 %v4395
        %4633 = vmatmul.mubr.bf16.gmra.mrb[0].mxu0 %v4394
        %v4634 = vpop.f32.mrb[0].mxu0
        %v4635 = vadd.f32 %v4433, %v4634
        %v4636 = vpop.f32.mrb[0].mxu0
        %v4637 = vadd.f32 %v4437, %v4636
        %v4638 = vpop.f32.mrb[0].mxu0
        %v4639 = vadd.f32 %v4433, %v4638
        %v4640 = vpop.f32.mrb[0].mxu0
        %v4641 = vadd.f32 %v4437, %v4640
        %4642 = vdwg.mxu0
        %v4643 = vmax.f32 %v4635, 0.0
        %v4644 = vmax.f32 %v4637, 0.0
        %v4645 = vmax.f32 %v4639, 0.0
        %v4646 = vmax.f32 %v4641, 0.0
        %v4647 = vpack.c.bf16 %v4645, %v4643
        %v4648 = vpack.c.bf16 %v4646, %v4644
        %v4649 = vld [vmem:[#allocation18] sm:$0xf]
        %v4650 = vld [vmem:[#allocation18 + $0x4] sm:$0xf]
        %v4651 = vld [vmem:[#allocation18 + $0x8] sm:$0xf]
        %v4652 = vld [vmem:[#allocation18 + $0xc] sm:$0xf]
        %v4653 = vld [vmem:[#allocation18 + $0x10] sm:$0xf]
        %v4654 = vld [vmem:[#allocation18 + $0x14] sm:$0xf]
        %v4655 = vld [vmem:[#allocation18 + $0x18] sm:$0xf]
        %v4656 = vld [vmem:[#allocation18 + $0x1c] sm:$0xf]
        %v4657 = vld [vmem:[#allocation18 + $0x20] sm:$0xf]
        %v4658 = vld [vmem:[#allocation18 + $0x24] sm:$0xf]
        %v4659 = vld [vmem:[#allocation18 + $0x28] sm:$0xf]
        %v4660 = vld [vmem:[#allocation18 + $0x2c] sm:$0xf]
        %v4661 = vld [vmem:[#allocation18 + $0x30] sm:$0xf]
        %v4662 = vld [vmem:[#allocation18 + $0x34] sm:$0xf]
        %v4663 = vld [vmem:[#allocation18 + $0x38] sm:$0xf]
        %v4664 = vld [vmem:[#allocation18 + $0x3c] sm:$0xf]
        %v4665 = vld [vmem:[#allocation18 + $0x40] sm:$0xf]
        %v4666 = vld [vmem:[#allocation18 + $0x44] sm:$0xf]
        %v4667 = vld [vmem:[#allocation18 + $0x48] sm:$0xf]
        %v4668 = vld [vmem:[#allocation18 + $0x4c] sm:$0xf]
        %v4669 = vld [vmem:[#allocation18 + $0x50] sm:$0xf]
        %v4670 = vld [vmem:[#allocation18 + $0x54] sm:$0xf]
        %v4671 = vld [vmem:[#allocation18 + $0x58] sm:$0xf]
        %v4672 = vld [vmem:[#allocation18 + $0x5c] sm:$0xf]
        %v4673 = vld [vmem:[#allocation18 + $0x60] sm:$0xf]
        %v4674 = vld [vmem:[#allocation18 + $0x64] sm:$0xf]
        %v4675 = vld [vmem:[#allocation18 + $0x68] sm:$0xf]
        %v4676 = vld [vmem:[#allocation18 + $0x6c] sm:$0xf]
        %v4677 = vld [vmem:[#allocation18 + $0x70] sm:$0xf]
        %v4678 = vld [vmem:[#allocation18 + $0x74] sm:$0xf]
        %v4679 = vld [vmem:[#allocation18 + $0x78] sm:$0xf]
        %v4680 = vld [vmem:[#allocation18 + $0x7c] sm:$0xf]
        %v4681 = vld [vmem:[%s12] sm:$0x1]
        %v4683 = vlaneseq
        %v4684 = vshrl.u32 %v4683, 7
        %v4685 = vsub.s32 0, %v4684
        %v4686 = vrot.slane %v4681, %v4685
        %v4720 = vunpack.c.l.b16 %v4649
        %v4721 = vunpack.c.l.b16 %v4650
        %v4722 = vunpack.c.l.b16 %v4651
        %v4723 = vunpack.c.l.b16 %v4652
        %v4724 = vunpack.c.l.b16 %v4653
        %v4725 = vunpack.c.l.b16 %v4654
        %v4726 = vunpack.c.l.b16 %v4655
        %v4727 = vunpack.c.l.b16 %v4656
        %v4728 = vunpack.c.l.b16 %v4657
        %v4729 = vunpack.c.l.b16 %v4658
        %v4730 = vunpack.c.l.b16 %v4659
        %v4731 = vunpack.c.l.b16 %v4660
        %v4732 = vunpack.c.l.b16 %v4661
        %v4733 = vunpack.c.l.b16 %v4662
        %v4734 = vunpack.c.l.b16 %v4663
        %v4735 = vunpack.c.l.b16 %v4664
        %v4736 = vunpack.c.l.b16 %v4665
        %v4737 = vunpack.c.l.b16 %v4666
        %v4738 = vunpack.c.l.b16 %v4667
        %v4739 = vunpack.c.l.b16 %v4668
        %v4740 = vunpack.c.l.b16 %v4669
        %v4741 = vunpack.c.l.b16 %v4670
        %v4742 = vunpack.c.l.b16 %v4671
        %v4743 = vunpack.c.l.b16 %v4672
        %v4744 = vunpack.c.l.b16 %v4673
        %v4745 = vunpack.c.l.b16 %v4674
        %v4746 = vunpack.c.l.b16 %v4675
        %v4747 = vunpack.c.l.b16 %v4676
        %v4748 = vunpack.c.l.b16 %v4677
        %v4749 = vunpack.c.l.b16 %v4678
        %v4750 = vunpack.c.l.b16 %v4679
        %v4751 = vunpack.c.l.b16 %v4680
        %v4752 = vpack.c.b16 %v4721, %v4720
        %v4753 = vpack.c.b16 %v4723, %v4722
        %v4754 = vpack.c.b16 %v4725, %v4724
        %v4755 = vpack.c.b16 %v4727, %v4726
        %v4756 = vpack.c.b16 %v4729, %v4728
        %v4757 = vpack.c.b16 %v4731, %v4730
        %v4758 = vpack.c.b16 %v4733, %v4732
        %v4759 = vpack.c.b16 %v4735, %v4734
        %v4760 = vpack.c.b16 %v4737, %v4736
        %v4761 = vpack.c.b16 %v4739, %v4738
        %v4762 = vpack.c.b16 %v4741, %v4740
        %v4763 = vpack.c.b16 %v4743, %v4742
        %v4764 = vpack.c.b16 %v4745, %v4744
        %v4765 = vpack.c.b16 %v4747, %v4746
        %v4766 = vpack.c.b16 %v4749, %v4748
        %v4767 = vpack.c.b16 %v4751, %v4750
        %4784 = vmatprep.subr.bf16.mxu0 0
        %4785 = vmatpush1.bf16.msra.mxu0 %v4752
        %4786 = vmatprep.subr.bf16.mxu0 0
        %4787 = vmatpush1.bf16.msra.mxu0 %v4753
        %4788 = vmatprep.subr.bf16.mxu0 0
        %4789 = vmatpush1.bf16.msra.mxu0 %v4754
        %4790 = vmatprep.subr.bf16.mxu0 0
        %4791 = vmatpush1.bf16.msra.mxu0 %v4755
        %4792 = vmatprep.subr.bf16.mxu0 0
        %4793 = vmatpush1.bf16.msra.mxu0 %v4756
        %4794 = vmatprep.subr.bf16.mxu0 0
        %4795 = vmatpush1.bf16.msra.mxu0 %v4757
        %4796 = vmatprep.subr.bf16.mxu0 0
        %4797 = vmatpush1.bf16.msra.mxu0 %v4758
        %4798 = vmatprep.subr.bf16.mxu0 0
        %4799 = vmatpush1.bf16.msra.mxu0 %v4759
        %4800 = vmatprep.subr.bf16.mxu0 0
        %4801 = vmatpush1.bf16.msra.mxu0 %v4760
        %4802 = vmatprep.subr.bf16.mxu0 0
        %4803 = vmatpush1.bf16.msra.mxu0 %v4761
        %4804 = vmatprep.subr.bf16.mxu0 0
        %4805 = vmatpush1.bf16.msra.mxu0 %v4762
        %4806 = vmatprep.subr.bf16.mxu0 0
        %4807 = vmatpush1.bf16.msra.mxu0 %v4763
        %4808 = vmatprep.subr.bf16.mxu0 0
        %4809 = vmatpush1.bf16.msra.mxu0 %v4764
        %4810 = vmatprep.subr.bf16.mxu0 0
        %4811 = vmatpush1.bf16.msra.mxu0 %v4765
        %4812 = vmatprep.subr.bf16.mxu0 0
        %4813 = vmatpush1.bf16.msra.mxu0 %v4766
        %4814 = vmatprep.subr.bf16.mxu0 0
        %4815 = vmatpush1.bf16.msra.mxu0 %v4767
        %4816 = vmatprep.mubr.bf16.mxu0 %v4648
        %4817 = vmatmul.mubr.bf16.gmra.mrb[0].mxu0 %v4647
        %v4818 = vpop.f32.mrb[0].mxu0
        %v4819 = vadd.f32 %v4686, %v4818
        %v4820 = vpop.f32.mrb[0].mxu0
        %v4821 = vpop.f32.mrb[0].mxu0
        %v4822 = vadd.f32 %v4686, %v4821
        %v4823 = vpop.f32.mrb[0].mxu0
        %4824 = vdwg.mxu0
        %4825 = vst [vmem:[%s620] sm:$0xff] %v4819
        %4826 = vst [vmem:[%s620 + $0x8] sm:$0xff] %v4822
        %p4827 = scmp.eq.s32.totalorder %s38, 5
        // Predicated region
        $region113: #{npi_forward_seq.1} parent=71 // pred_check
          %p4828 = pneg %p4827
        $region114: #{npi_forward_seq.1} parent=71 // pred_check_branch
          %4830 = sbr.rel (%p4828) target = $region116
        $region115: #{npi_forward_seq.1} parent=71 // pred_region
          %v4831 = vld [vmem:[#allocation2] sm:$0xff]
          %v4832 = vld [vmem:[#allocation2 + $0x8] sm:$0xff]
          %v4833 = vld [vmem:[#allocation2 + $0x10] sm:$0xff]
          %v4834 = vld [vmem:[#allocation2 + $0x18] sm:$0xff]
          %v4835 = vld [vmem:[#allocation2 + $0x20] sm:$0xff]
          %v4836 = vld [vmem:[#allocation2 + $0x28] sm:$0xff]
          %v4837 = vld [vmem:[#allocation2 + $0x30] sm:$0xff]
          %v4838 = vld [vmem:[#allocation2 + $0x38] sm:$0xff]
          %4839 = vst [vmem:[#allocation20] sm:$0xff] %v4831
          %4840 = vst [vmem:[#allocation20 + $0x8] sm:$0xff] %v4832
          %4841 = vst [vmem:[#allocation20 + $0x10] sm:$0xff] %v4833
          %4842 = vst [vmem:[#allocation20 + $0x18] sm:$0xff] %v4834
          %4843 = vst [vmem:[#allocation20 + $0x20] sm:$0xff] %v4835
          %4844 = vst [vmem:[#allocation20 + $0x28] sm:$0xff] %v4836
          %4845 = vst [vmem:[#allocation20 + $0x30] sm:$0xff] %v4837
          %4846 = vst [vmem:[#allocation20 + $0x38] sm:$0xff] %v4838
          %v4847 = vld [vmem:[#allocation3] sm:$0xff]
          %v4848 = vld [vmem:[#allocation3 + $0x8] sm:$0xff]
          %v4849 = vld [vmem:[#allocation3 + $0x10] sm:$0xff]
          %v4850 = vld [vmem:[#allocation3 + $0x18] sm:$0xff]
          %v4851 = vld [vmem:[#allocation3 + $0x20] sm:$0xff]
          %v4852 = vld [vmem:[#allocation3 + $0x28] sm:$0xff]
          %v4853 = vld [vmem:[#allocation3 + $0x30] sm:$0xff]
          %v4854 = vld [vmem:[#allocation3 + $0x38] sm:$0xff]
          %4855 = vst [vmem:[#allocation22] sm:$0xff] %v4847
          %4856 = vst [vmem:[#allocation22 + $0x8] sm:$0xff] %v4848
          %4857 = vst [vmem:[#allocation22 + $0x10] sm:$0xff] %v4849
          %4858 = vst [vmem:[#allocation22 + $0x18] sm:$0xff] %v4850
          %4859 = vst [vmem:[#allocation22 + $0x20] sm:$0xff] %v4851
          %4860 = vst [vmem:[#allocation22 + $0x28] sm:$0xff] %v4852
          %4861 = vst [vmem:[#allocation22 + $0x30] sm:$0xff] %v4853
          %4862 = vst [vmem:[#allocation22 + $0x38] sm:$0xff] %v4854
        $region116: #{npi_forward_seq.1} parent=71 // pred_fallthru
          _
        %s4863 = sand.u32 %s324, 1
        %s4864 = scalar_lea.sflag [#allocation6], %s4863
        %s4865 = sand.u32 %s324, 1
        %s4866 = smul.addr %s4865, 16
        %s4867 = scalar_lea.vmem [#allocation19], %s4866
        // Predicated region
        $region117: #{npi_forward_seq.1} parent=71 // pred_check
          %p4868 = pneg %p334
        $region118: #{npi_forward_seq.1} parent=71 // pred_check_branch
          %4870 = sbr.rel (%p4868) target = $region120
        $region119: #{npi_forward_seq.1} parent=71 // pred_region
          %s4872 = ssub.s32 256, 256
          %4873 = vsyncadd %s4864, %s4872
          %s4874 = smul.addr %s38, 2
          %s4875 = smul.addr %s4874, 128
          %s4876 = scalar_lea.hbm %s13, %s4875
          %s4877 = sshll.u32 %s4867, 4
          %s4878 = int_to_ptr.vmem [resolvable:$true] %s4877
          %4883 = dma.vmem_to_hbm [thread:$0]  %s4878, 256, %s4876, %s4864, 128, 128, 8
        $region120: #{npi_forward_seq.1} parent=71 // pred_fallthru
          _
        // Predicated region
        $region121: #{npi_forward_seq.1} parent=71 // pred_check
          %p4884 = pneg %p355
        $region122: #{npi_forward_seq.1} parent=71 // pred_check_branch
          %4886 = sbr.rel (%p4884) target = $region124
        $region123: #{npi_forward_seq.1} parent=71 // pred_region
          %s4888 = ssub.s32 1024, 1024
          %4889 = vsyncadd [#allocation21], %s4888
          %s4890 = sshll.u32 [#allocation20], 4
          %s4891 = int_to_ptr.vmem [resolvable:$true] %s4890
          %4896 = dma.vmem_to_hbm [thread:$0]  %s4891, 1024, %s14, [#allocation21], 256, 256, 16
        $region124: #{npi_forward_seq.1} parent=71 // pred_fallthru
          _
        // Predicated region
        $region125: #{npi_forward_seq.1} parent=71 // pred_check
          %p4897 = pneg %p376
        $region126: #{npi_forward_seq.1} parent=71 // pred_check_branch
          %4899 = sbr.rel (%p4897) target = $region128
        $region127: #{npi_forward_seq.1} parent=71 // pred_region
          %s4901 = ssub.s32 1024, 1024
          %4902 = vsyncadd [#allocation21], %s4901
          %s4903 = sshll.u32 [#allocation22], 4
          %s4904 = int_to_ptr.vmem [resolvable:$true] %s4903
          %4909 = dma.vmem_to_hbm [thread:$0]  %s4904, 1024, %s15, [#allocation21], 256, 256, 16
        $region128: #{npi_forward_seq.1} parent=71 // pred_fallthru
          _
        // Predicated region
        $region129: #{npi_forward_seq.1} parent=71 // pred_check
          %p4910 = pneg %p355
        $region130: #{npi_forward_seq.1} parent=71 // pred_check_branch
          %4912 = sbr.rel (%p4910) target = $region132
        $region131: #{npi_forward_seq.1} parent=71 // pred_region
          %4913 = dma.done [#allocation21], 1024
        $region132: #{npi_forward_seq.1} parent=71 // pred_fallthru
          _
        // Predicated region
        $region133: #{npi_forward_seq.1} parent=71 // pred_check
          %p4914 = pneg %p376
        $region134: #{npi_forward_seq.1} parent=71 // pred_check_branch
          %4916 = sbr.rel (%p4914) target = $region136
        $region135: #{npi_forward_seq.1} parent=71 // pred_region
          %4917 = dma.done [#allocation21], 1024
        $region136: #{npi_forward_seq.1} parent=71 // pred_fallthru
          _
      $region72: #{npi_forward_seq.1} parent=5 // pred_fallthru
        _
      %p4918 = scmp.le.s32.totalorder 2, %s33
      // Predicated region
      $region137: #{npi_forward_seq.1} parent=5 // pred_check
        %p4919 = pneg %p4918
      $region138: #{npi_forward_seq.1} parent=5 // pred_check_branch
        %4921 = sbr.rel (%p4919) target = $region140
      $region139: #{npi_forward_seq.1} parent=5 // pred_region
        %s4922 = ssub.s32 %s33, 2
        // Predicated region
        $region141: #{npi_forward_seq.1} parent=139 // pred_check
          %p4923 = pneg %p340
        $region142: #{npi_forward_seq.1} parent=139 // pred_check_branch
          %4925 = sbr.rel (%p4923) target = $region144
        $region143: #{npi_forward_seq.1} parent=139 // pred_region
          %s4926 = sand.u32 %s325, 1
          %s4927 = scalar_lea.sflag [#allocation6], %s4926
          %s4928 = sand.u32 %s325, 1
          %s4929 = smul.addr %s4928, 16
          %s4930 = scalar_lea.vmem [#allocation19], %s4929
          %4931 = dma.done %s4927, 256
        $region144: #{npi_forward_seq.1} parent=139 // pred_fallthru
          _
      $region140: #{npi_forward_seq.1} parent=5 // pred_fallthru
        _
    $region6: #{npi_forward_seq.1} parent=1 // loop_footer
      %s37 = sadd.s32 1, %s33
    $region7: #{npi_forward_seq.1} parent=1 // loop_footer_branch
      %32 = sbr.rel target = $region3
    $region8: #{npi_forward_seq.1} parent=1 // loop_exit
      _
    %4932 = vsyncpa [#allocation5], 1
    %s4933 = scalar_lea.sflag [#allocation5], 1
    %4934 = vsyncpa %s4933, 1
    %4935 = vsyncpa [#allocation8], 1
    %4936 = vsyncpa [#allocation11], 1
    %4937 = vsyncpa [#allocation14], 1
    %4938 = vsyncpa [#allocation17], 1
    %4939 = vsyncpa [#allocation6], 1
    %s4940 = scalar_lea.sflag [#allocation6], 1
    %4941 = vsyncpa %s4940, 1
    %4942 = vsyncpa [#allocation21], 1

</llo_original>
